<compile_context>
chip_gen: v7x
topology: tpu7x:2x2x1
jax: 0.10.0
libtpu: 0.0.40
codegen_flags: <defaults>
</compile_context>

<pallas_src>
import numpy as np
import jax
import jax.numpy as jnp
from jax import lax
from jax.experimental import pallas as pl
from jax.experimental.pallas import tpu as pltpu


# ------------------------------ Pallas kernel -------------------------------

def lenet_fused_kernel(x_ref, w1_ref, b1_ref, w2_ref, b2_ref, w3_ref, b3_ref, o_ref):
    # x_ref : (TB, 784)  f32   flattened 28x28 image (row-major)
    # w1_ref: (6, 200, 512) bf16  banded conv1 weights; band py uses image rows
    #                             4*py..4*py+6; cols = (dy*2+dx)*128 + px*16 + c
    # b1_ref: (1, 512)  f32
    # w2_ref: (768, 512) bf16  banded conv2; rows = py*128+px*16+ci,
    #                          cols = (dy*2+dx)*128 + ry*32 + rx*16 + co
    # b2_ref: (1, 512)  f32
    # w3_ref: (128, 128) bf16  FC weights (logits in cols 0..9, rest zero)
    # b3_ref: (1, 128)  f32
    # o_ref : (TB, 128) f32   logits in cols 0..9
    b1 = b1_ref[...]

    # ---- conv1 (5x5, stride 2) + bias + ReLU + MaxPool(2), 6 row-bands -------
    p1_slabs = []
    for py in range(6):                                   # static unroll
        xb = x_ref[:, 112 * py: 112 * py + 200].astype(jnp.bfloat16)     # (TB, 200)
        y = jnp.dot(xb, w1_ref[py], preferred_element_type=jnp.float32)  # (TB, 512)
        y = jnp.maximum(y + b1, 0.0)
        # MaxPool(2): the 4 pool-window positions are 4 aligned 128-lane slabs
        p = jnp.maximum(jnp.maximum(y[:, 0:128], y[:, 128:256]),
                        jnp.maximum(y[:, 256:384], y[:, 384:512]))       # (TB, 128)
        p1_slabs.append(p)
    p1 = jnp.concatenate(p1_slabs, axis=1)                               # (TB, 768)

    # ---- conv2 (3x3, stride 1) + bias + ReLU + MaxPool(2) --------------------
    y2 = jnp.dot(p1.astype(jnp.bfloat16), w2_ref[...],
                 preferred_element_type=jnp.float32)                     # (TB, 512)
    y2 = jnp.maximum(y2 + b2_ref[...], 0.0)
    p2 = jnp.maximum(jnp.maximum(y2[:, 0:128], y2[:, 128:256]),
                     jnp.maximum(y2[:, 256:384], y2[:, 384:512]))        # (TB, 128)

    # ---- Linear(64 -> 10), padded to a lane-dense 128-column output ----------
    out = jnp.dot(p2.astype(jnp.bfloat16), w3_ref[...],
                  preferred_element_type=jnp.float32) + b3_ref[...]
    o_ref[...] = out.astype(o_ref.dtype)


# ------------------------------- JAX wrapper --------------------------------

def cnn_forward(x, kernel_params, tb=128):
    # x: [B, 1, 28, 28] float32 (NCHW, as in PyTorch).
    # tb: batch tile.  128 keeps >=2 "parallel" grid steps at B>=256 (uses both v7x
    #     TensorCores); on single-TC v5e/v6e pass tb=512..1024 for large batches.
    B = x.shape[0]
    w1, b1, w2, b2, w3, b3 = kernel_params
    x2 = x.reshape(B, 28 * 28).astype(jnp.float32)

    TB = max(8, min(tb, ((B + 7) // 8) * 8))     # multiple of 8 sublanes
    Bp = ((B + TB - 1) // TB) * TB
    if Bp != B:
        x2 = jnp.pad(x2, ((0, Bp - B), (0, 0)))

    # banded/bf16 cost model (review item: keep the estimate accurate)
    flops = 2 * Bp * (6 * 200 * 512 + 768 * 512 + 128 * 128)
    bytes_accessed = (4 * Bp * (784 + 128)                              # x in, out
                      + 2 * (6 * 200 * 512 + 768 * 512 + 128 * 128)     # bf16 weights
                      + 4 * (512 + 512 + 128))                          # f32 biases

    out = pl.pallas_call(
        lenet_fused_kernel,
        out_shape=jax.ShapeDtypeStruct((Bp, 128), jnp.float32),
        grid=(Bp // TB,),
        in_specs=[
            pl.BlockSpec((TB, 784), lambda i: (i, 0)),
            pl.BlockSpec((6, 200, 512), lambda i: (0, 0, 0)),   # constant -> resident
            pl.BlockSpec((1, 512), lambda i: (0, 0)),
            pl.BlockSpec((768, 512), lambda i: (0, 0)),
            pl.BlockSpec((1, 512), lambda i: (0, 0)),
            pl.BlockSpec((128, 128), lambda i: (0, 0)),
            pl.BlockSpec((1, 128), lambda i: (0, 0)),
        ],
        out_specs=pl.BlockSpec((TB, 128), lambda i: (i, 0)),
        compiler_params=pltpu.CompilerParams(
            dimension_semantics=("parallel",),
            vmem_limit_bytes=48 * 1024 * 1024),   # safe on v7x's 64 MiB; usage ~6 MiB
        cost_estimate=pl.CostEstimate(flops=flops, transcendentals=0,
                                      bytes_accessed=bytes_accessed),
    )(x2, w1, b1, w2, b2, w3, b3)
    return out[:B, :10]


# --------------------------- parameter handling -----------------------------

def init_params(key):
    # PyTorch-layout parameters (deterministic synthetic init)
    ks = jax.random.split(key, 6)
    conv1_w = jax.random.normal(ks[0], (16, 1, 5, 5), jnp.float32) * 0.1
    conv1_b = jax.random.normal(ks[1], (16,), jnp.float32) * 0.1
    conv2_w = jax.random.normal(ks[2], (16, 16, 3, 3), jnp.float32) * 0.1
    conv2_b = jax.random.normal(ks[3], (16,), jnp.float32) * 0.1
    fc_w = jax.random.normal(ks[4], (10, 64), jnp.float32) * 0.1
    fc_b = jax.random.normal(ks[5], (10,), jnp.float32) * 0.1
    return (conv1_w, conv1_b, conv2_w, conv2_b, fc_w, fc_b)


def pack_params_for_kernels(torch_style):
    """Build banded (Toeplitz-style) bf16 matmul weights from PyTorch-layout params."""
    conv1_w, conv1_b, conv2_w, conv2_b, fc_w, fc_b = [
        np.asarray(a, np.float32) for a in torch_style]

    # conv1, banded: band py covers pooled output row py (conv rows 2py, 2py+1) and
    # reads only image rows 4py..4py+6 (196 pixels, K padded to 200).  Band column =
    # (dy*2+dx)*128 + px*16 + c  (lanes 96..127 of each 128-slab are structural pad).
    w1 = np.zeros((6, 200, 512), np.float32)
    b1 = np.zeros((512,), np.float32)
    for py in range(6):
        for dy in range(2):
            for dx in range(2):
                s = dy * 2 + dx
                for px in range(6):
                    for c in range(16):
                        col = s * 128 + px * 16 + c
                        b1[col] = conv1_b[c]
                        for ky in range(5):
                            for kx in range(5):
                                # conv out (2py+dy, 2px+dx) reads image pixel
                                # (4py+2dy+ky, 4px+2dx+kx); band-local flat index:
                                row = (2 * dy + ky) * 28 + (4 * px + 2 * dx + kx)
                                w1[py, row, col] = conv1_w[c, 0, ky, kx]

    # conv2, dense banded: rows = pooled1 lane py*128 + px*16 + ci (768 rows, lanes
    # *128+96.. are pad and stay zero); cols = (dy*2+dx)*128 + ry*32 + rx*16 + co.
    w2 = np.zeros((768, 512), np.float32)
    b2 = np.zeros((512,), np.float32)
    for dy in range(2):
        for dx in range(2):
            t = dy * 2 + dx
            for ry in range(2):
                for rx in range(2):
                    qy, qx = 2 * ry + dy, 2 * rx + dx        # conv2 output position
                    for co in range(16):
                        col = t * 128 + ry * 32 + rx * 16 + co
                        b2[col] = conv2_b[co]
                        for ky in range(3):
                            for kx in range(3):
                                for ci in range(16):
                                    row = (qy + ky) * 128 + (qx + kx) * 16 + ci
                                    w2[row, col] = conv2_w[co, ci, ky, kx]

    # FC: pooled2 lane j = ry*32 + rx*16 + co ; PyTorch .view() flatten = co*4+ry*2+rx
    w3 = np.zeros((128, 128), np.float32)
    b3 = np.zeros((128,), np.float32)
    for ry in range(2):
        for rx in range(2):
            for co in range(16):
                w3[ry * 32 + rx * 16 + co, :10] = fc_w[:, co * 4 + ry * 2 + rx]
    b3[:10] = fc_b

    return (jnp.asarray(w1, jnp.bfloat16), jnp.asarray(b1).reshape(1, -1),
            jnp.asarray(w2, jnp.bfloat16), jnp.asarray(b2).reshape(1, -1),
            jnp.asarray(w3, jnp.bfloat16), jnp.asarray(b3).reshape(1, -1))


# ---------------------------- pure-JAX reference ----------------------------

def ref_forward(x, torch_style):
    """Pure-JAX reference mirroring the kernel's numerics: bf16 matmul operands
    (weights AND activations), f32 accumulation, f32 bias/ReLU/pool."""
    conv1_w, conv1_b, conv2_w, conv2_b, fc_w, fc_b = torch_style
    bf = jnp.bfloat16
    B = x.shape[0]
    dn = ('NCHW', 'OIHW', 'NCHW')
    y = lax.conv_general_dilated(x.astype(bf), conv1_w.astype(bf), (2, 2), 'VALID',
                                 dimension_numbers=dn,
                                 preferred_element_type=jnp.float32)
    y = jnp.maximum(y + conv1_b[None, :, None, None], 0.0)
    y = y.reshape(B, 16, 6, 2, 6, 2).max(axis=(3, 5))
    y = lax.conv_general_dilated(y.astype(bf), conv2_w.astype(bf), (1, 1), 'VALID',
                                 dimension_numbers=dn,
                                 preferred_element_type=jnp.float32)
    y = jnp.maximum(y + conv2_b[None, :, None, None], 0.0)
    y = y.reshape(B, 16, 2, 2, 2, 2).max(axis=(3, 5))
    flat = y.reshape(B, -1)                              # PyTorch (c, h, w) flatten
    return jnp.dot(flat.astype(bf), fc_w.T.astype(bf),
                   preferred_element_type=jnp.float32) + fc_b[None, :]


if __name__ == "__main__":
    key = jax.random.PRNGKey(0)
    kx, kp = jax.random.split(key)
    B = 2
    x = jax.random.normal(kx, (B, 1, 28, 28), jnp.float32)   # 28x28 -> 2*2*16 = 64 flat

    torch_style = init_params(kp)
    kernel_params = pack_params_for_kernels(torch_style)

    out = jax.block_until_ready(cnn_forward(x, kernel_params))
    ref = jax.block_until_ready(ref_forward(x, torch_style))

    assert out.shape == (B, 10)
    if not np.allclose(np.asarray(out), np.asarray(ref), atol=2e-3, rtol=2e-3):
        raise AssertionError("Pallas output does not match the pure-JAX reference")
    print("KERNEL_OK")
</pallas_src>

<mosaic_0001>
module attributes {stable_mosaic.version = 11 : i64} {
  func.func @lenet_fused_kernel(%arg0: i32, %arg1: memref<8x784xf32, #tpu.memory_space<vmem>>, %arg2: memref<6x200x512xbf16, #tpu.memory_space<vmem>>, %arg3: memref<1x512xf32, #tpu.memory_space<vmem>>, %arg4: memref<768x512xbf16, #tpu.memory_space<vmem>>, %arg5: memref<1x512xf32, #tpu.memory_space<vmem>>, %arg6: memref<128x128xbf16, #tpu.memory_space<vmem>>, %arg7: memref<1x128xf32, #tpu.memory_space<vmem>>, %arg8: memref<8x128xf32, #tpu.memory_space<vmem>>) attributes {dimension_semantics = [#tpu.dimension_semantics<parallel>], iteration_bounds = array<i64: 1>, scalar_prefetch = 0 : i64, scratch_operands = 0 : i64, tpu.core_type = #tpu.core_type<tc>, window_params = [{transform_indices = @transform_0, window_bounds = array<i64: 8, 784>}, {pipeline_mode = #tpu.pipeline_mode<synchronous>, transform_indices = @transform_1, window_bounds = array<i64: 6, 200, 512>}, {pipeline_mode = #tpu.pipeline_mode<synchronous>, transform_indices = @transform_2, window_bounds = array<i64: 1, 512>}, {pipeline_mode = #tpu.pipeline_mode<synchronous>, transform_indices = @transform_3, window_bounds = array<i64: 768, 512>}, {pipeline_mode = #tpu.pipeline_mode<synchronous>, transform_indices = @transform_4, window_bounds = array<i64: 1, 512>}, {pipeline_mode = #tpu.pipeline_mode<synchronous>, transform_indices = @transform_5, window_bounds = array<i64: 128, 128>}, {pipeline_mode = #tpu.pipeline_mode<synchronous>, transform_indices = @transform_6, window_bounds = array<i64: 1, 128>}, {transform_indices = @transform_7, window_bounds = array<i64: 8, 128>}]} {
    %c0 = arith.constant 0 : index
    %c0_0 = arith.constant 0 : index
    %0 = vector.load %arg3[%c0, %c0_0] : memref<1x512xf32, #tpu.memory_space<vmem>>, vector<1x512xf32>
    %c0_1 = arith.constant 0 : index
    %c0_2 = arith.constant 0 : index
    %1 = vector.load %arg1[%c0_1, %c0_2] : memref<8x784xf32, #tpu.memory_space<vmem>>, vector<8x200xf32>
    %2 = arith.truncf %1 : vector<8x200xf32> to vector<8x200xbf16>
    %c0_3 = arith.constant 0 : index
    %c0_4 = arith.constant 0 : index
    %c0_5 = arith.constant 0 : index
    %3 = vector.load %arg2[%c0_3, %c0_4, %c0_5] : memref<6x200x512xbf16, #tpu.memory_space<vmem>>, vector<1x200x512xbf16>
    %4 = vector.shape_cast %3 : vector<1x200x512xbf16> to vector<200x512xbf16>
    %cst = arith.constant dense<0.000000e+00> : vector<8x512xf32>
    %5 = tpu.matmul %2, %4, %cst {dimension_numbers = #tpu.dot_dimension_numbers<[1], [0], [0], [1], [0, 0, 1, 1], [], []>} : vector<8x200xbf16>, vector<200x512xbf16>, vector<8x512xf32> -> vector<8x512xf32>
    %6 = vector.broadcast %0 : vector<1x512xf32> to vector<8x512xf32>
    %7 = arith.addf %5, %6 : vector<8x512xf32>
    %cst_6 = arith.constant 0.000000e+00 : f32
    %8 = vector.broadcast %cst_6 : f32 to vector<8x512xf32>
    %9 = arith.maximumf %7, %8 : vector<8x512xf32>
    %10 = vector.extract_strided_slice %9 {offsets = [0, 0], sizes = [8, 128], strides = [1, 1]} : vector<8x512xf32> to vector<8x128xf32>
    %11 = vector.extract_strided_slice %9 {offsets = [0, 128], sizes = [8, 128], strides = [1, 1]} : vector<8x512xf32> to vector<8x128xf32>
    %12 = arith.maximumf %10, %11 : vector<8x128xf32>
    %13 = vector.extract_strided_slice %9 {offsets = [0, 256], sizes = [8, 128], strides = [1, 1]} : vector<8x512xf32> to vector<8x128xf32>
    %14 = vector.extract_strided_slice %9 {offsets = [0, 384], sizes = [8, 128], strides = [1, 1]} : vector<8x512xf32> to vector<8x128xf32>
    %15 = arith.maximumf %13, %14 : vector<8x128xf32>
    %16 = arith.maximumf %12, %15 : vector<8x128xf32>
    %c0_7 = arith.constant 0 : index
    %c112 = arith.constant 112 : index
    %17 = vector.load %arg1[%c0_7, %c112] : memref<8x784xf32, #tpu.memory_space<vmem>>, vector<8x200xf32>
    %18 = arith.truncf %17 : vector<8x200xf32> to vector<8x200xbf16>
    %c1 = arith.constant 1 : index
    %c0_8 = arith.constant 0 : index
    %c0_9 = arith.constant 0 : index
    %19 = vector.load %arg2[%c1, %c0_8, %c0_9] : memref<6x200x512xbf16, #tpu.memory_space<vmem>>, vector<1x200x512xbf16>
    %20 = vector.shape_cast %19 : vector<1x200x512xbf16> to vector<200x512xbf16>
    %cst_10 = arith.constant dense<0.000000e+00> : vector<8x512xf32>
    %21 = tpu.matmul %18, %20, %cst_10 {dimension_numbers = #tpu.dot_dimension_numbers<[1], [0], [0], [1], [0, 0, 1, 1], [], []>} : vector<8x200xbf16>, vector<200x512xbf16>, vector<8x512xf32> -> vector<8x512xf32>
    %22 = vector.broadcast %0 : vector<1x512xf32> to vector<8x512xf32>
    %23 = arith.addf %21, %22 : vector<8x512xf32>
    %cst_11 = arith.constant 0.000000e+00 : f32
    %24 = vector.broadcast %cst_11 : f32 to vector<8x512xf32>
    %25 = arith.maximumf %23, %24 : vector<8x512xf32>
    %26 = vector.extract_strided_slice %25 {offsets = [0, 0], sizes = [8, 128], strides = [1, 1]} : vector<8x512xf32> to vector<8x128xf32>
    %27 = vector.extract_strided_slice %25 {offsets = [0, 128], sizes = [8, 128], strides = [1, 1]} : vector<8x512xf32> to vector<8x128xf32>
    %28 = arith.maximumf %26, %27 : vector<8x128xf32>
    %29 = vector.extract_strided_slice %25 {offsets = [0, 256], sizes = [8, 128], strides = [1, 1]} : vector<8x512xf32> to vector<8x128xf32>
    %30 = vector.extract_strided_slice %25 {offsets = [0, 384], sizes = [8, 128], strides = [1, 1]} : vector<8x512xf32> to vector<8x128xf32>
    %31 = arith.maximumf %29, %30 : vector<8x128xf32>
    %32 = arith.maximumf %28, %31 : vector<8x128xf32>
    %c0_12 = arith.constant 0 : index
    %c224 = arith.constant 224 : index
    %33 = vector.load %arg1[%c0_12, %c224] : memref<8x784xf32, #tpu.memory_space<vmem>>, vector<8x200xf32>
    %34 = arith.truncf %33 : vector<8x200xf32> to vector<8x200xbf16>
    %c2 = arith.constant 2 : index
    %c0_13 = arith.constant 0 : index
    %c0_14 = arith.constant 0 : index
    %35 = vector.load %arg2[%c2, %c0_13, %c0_14] : memref<6x200x512xbf16, #tpu.memory_space<vmem>>, vector<1x200x512xbf16>
    %36 = vector.shape_cast %35 : vector<1x200x512xbf16> to vector<200x512xbf16>
    %cst_15 = arith.constant dense<0.000000e+00> : vector<8x512xf32>
    %37 = tpu.matmul %34, %36, %cst_15 {dimension_numbers = #tpu.dot_dimension_numbers<[1], [0], [0], [1], [0, 0, 1, 1], [], []>} : vector<8x200xbf16>, vector<200x512xbf16>, vector<8x512xf32> -> vector<8x512xf32>
    %38 = vector.broadcast %0 : vector<1x512xf32> to vector<8x512xf32>
    %39 = arith.addf %37, %38 : vector<8x512xf32>
    %cst_16 = arith.constant 0.000000e+00 : f32
    %40 = vector.broadcast %cst_16 : f32 to vector<8x512xf32>
    %41 = arith.maximumf %39, %40 : vector<8x512xf32>
    %42 = vector.extract_strided_slice %41 {offsets = [0, 0], sizes = [8, 128], strides = [1, 1]} : vector<8x512xf32> to vector<8x128xf32>
    %43 = vector.extract_strided_slice %41 {offsets = [0, 128], sizes = [8, 128], strides = [1, 1]} : vector<8x512xf32> to vector<8x128xf32>
    %44 = arith.maximumf %42, %43 : vector<8x128xf32>
    %45 = vector.extract_strided_slice %41 {offsets = [0, 256], sizes = [8, 128], strides = [1, 1]} : vector<8x512xf32> to vector<8x128xf32>
    %46 = vector.extract_strided_slice %41 {offsets = [0, 384], sizes = [8, 128], strides = [1, 1]} : vector<8x512xf32> to vector<8x128xf32>
    %47 = arith.maximumf %45, %46 : vector<8x128xf32>
    %48 = arith.maximumf %44, %47 : vector<8x128xf32>
    %c0_17 = arith.constant 0 : index
    %c336 = arith.constant 336 : index
    %49 = vector.load %arg1[%c0_17, %c336] : memref<8x784xf32, #tpu.memory_space<vmem>>, vector<8x200xf32>
    %50 = arith.truncf %49 : vector<8x200xf32> to vector<8x200xbf16>
    %c3 = arith.constant 3 : index
    %c0_18 = arith.constant 0 : index
    %c0_19 = arith.constant 0 : index
    %51 = vector.load %arg2[%c3, %c0_18, %c0_19] : memref<6x200x512xbf16, #tpu.memory_space<vmem>>, vector<1x200x512xbf16>
    %52 = vector.shape_cast %51 : vector<1x200x512xbf16> to vector<200x512xbf16>
    %cst_20 = arith.constant dense<0.000000e+00> : vector<8x512xf32>
    %53 = tpu.matmul %50, %52, %cst_20 {dimension_numbers = #tpu.dot_dimension_numbers<[1], [0], [0], [1], [0, 0, 1, 1], [], []>} : vector<8x200xbf16>, vector<200x512xbf16>, vector<8x512xf32> -> vector<8x512xf32>
    %54 = vector.broadcast %0 : vector<1x512xf32> to vector<8x512xf32>
    %55 = arith.addf %53, %54 : vector<8x512xf32>
    %cst_21 = arith.constant 0.000000e+00 : f32
    %56 = vector.broadcast %cst_21 : f32 to vector<8x512xf32>
    %57 = arith.maximumf %55, %56 : vector<8x512xf32>
    %58 = vector.extract_strided_slice %57 {offsets = [0, 0], sizes = [8, 128], strides = [1, 1]} : vector<8x512xf32> to vector<8x128xf32>
    %59 = vector.extract_strided_slice %57 {offsets = [0, 128], sizes = [8, 128], strides = [1, 1]} : vector<8x512xf32> to vector<8x128xf32>
    %60 = arith.maximumf %58, %59 : vector<8x128xf32>
    %61 = vector.extract_strided_slice %57 {offsets = [0, 256], sizes = [8, 128], strides = [1, 1]} : vector<8x512xf32> to vector<8x128xf32>
    %62 = vector.extract_strided_slice %57 {offsets = [0, 384], sizes = [8, 128], strides = [1, 1]} : vector<8x512xf32> to vector<8x128xf32>
    %63 = arith.maximumf %61, %62 : vector<8x128xf32>
    %64 = arith.maximumf %60, %63 : vector<8x128xf32>
    %c0_22 = arith.constant 0 : index
    %c448 = arith.constant 448 : index
    %65 = vector.load %arg1[%c0_22, %c448] : memref<8x784xf32, #tpu.memory_space<vmem>>, vector<8x200xf32>
    %66 = arith.truncf %65 : vector<8x200xf32> to vector<8x200xbf16>
    %c4 = arith.constant 4 : index
    %c0_23 = arith.constant 0 : index
    %c0_24 = arith.constant 0 : index
    %67 = vector.load %arg2[%c4, %c0_23, %c0_24] : memref<6x200x512xbf16, #tpu.memory_space<vmem>>, vector<1x200x512xbf16>
    %68 = vector.shape_cast %67 : vector<1x200x512xbf16> to vector<200x512xbf16>
    %cst_25 = arith.constant dense<0.000000e+00> : vector<8x512xf32>
    %69 = tpu.matmul %66, %68, %cst_25 {dimension_numbers = #tpu.dot_dimension_numbers<[1], [0], [0], [1], [0, 0, 1, 1], [], []>} : vector<8x200xbf16>, vector<200x512xbf16>, vector<8x512xf32> -> vector<8x512xf32>
    %70 = vector.broadcast %0 : vector<1x512xf32> to vector<8x512xf32>
    %71 = arith.addf %69, %70 : vector<8x512xf32>
    %cst_26 = arith.constant 0.000000e+00 : f32
    %72 = vector.broadcast %cst_26 : f32 to vector<8x512xf32>
    %73 = arith.maximumf %71, %72 : vector<8x512xf32>
    %74 = vector.extract_strided_slice %73 {offsets = [0, 0], sizes = [8, 128], strides = [1, 1]} : vector<8x512xf32> to vector<8x128xf32>
    %75 = vector.extract_strided_slice %73 {offsets = [0, 128], sizes = [8, 128], strides = [1, 1]} : vector<8x512xf32> to vector<8x128xf32>
    %76 = arith.maximumf %74, %75 : vector<8x128xf32>
    %77 = vector.extract_strided_slice %73 {offsets = [0, 256], sizes = [8, 128], strides = [1, 1]} : vector<8x512xf32> to vector<8x128xf32>
    %78 = vector.extract_strided_slice %73 {offsets = [0, 384], sizes = [8, 128], strides = [1, 1]} : vector<8x512xf32> to vector<8x128xf32>
    %79 = arith.maximumf %77, %78 : vector<8x128xf32>
    %80 = arith.maximumf %76, %79 : vector<8x128xf32>
    %c0_27 = arith.constant 0 : index
    %c560 = arith.constant 560 : index
    %81 = vector.load %arg1[%c0_27, %c560] : memref<8x784xf32, #tpu.memory_space<vmem>>, vector<8x200xf32>
    %82 = arith.truncf %81 : vector<8x200xf32> to vector<8x200xbf16>
    %c5 = arith.constant 5 : index
    %c0_28 = arith.constant 0 : index
    %c0_29 = arith.constant 0 : index
    %83 = vector.load %arg2[%c5, %c0_28, %c0_29] : memref<6x200x512xbf16, #tpu.memory_space<vmem>>, vector<1x200x512xbf16>
    %84 = vector.shape_cast %83 : vector<1x200x512xbf16> to vector<200x512xbf16>
    %cst_30 = arith.constant dense<0.000000e+00> : vector<8x512xf32>
    %85 = tpu.matmul %82, %84, %cst_30 {dimension_numbers = #tpu.dot_dimension_numbers<[1], [0], [0], [1], [0, 0, 1, 1], [], []>} : vector<8x200xbf16>, vector<200x512xbf16>, vector<8x512xf32> -> vector<8x512xf32>
    %86 = vector.broadcast %0 : vector<1x512xf32> to vector<8x512xf32>
    %87 = arith.addf %85, %86 : vector<8x512xf32>
    %cst_31 = arith.constant 0.000000e+00 : f32
    %88 = vector.broadcast %cst_31 : f32 to vector<8x512xf32>
    %89 = arith.maximumf %87, %88 : vector<8x512xf32>
    %90 = vector.extract_strided_slice %89 {offsets = [0, 0], sizes = [8, 128], strides = [1, 1]} : vector<8x512xf32> to vector<8x128xf32>
    %91 = vector.extract_strided_slice %89 {offsets = [0, 128], sizes = [8, 128], strides = [1, 1]} : vector<8x512xf32> to vector<8x128xf32>
    %92 = arith.maximumf %90, %91 : vector<8x128xf32>
    %93 = vector.extract_strided_slice %89 {offsets = [0, 256], sizes = [8, 128], strides = [1, 1]} : vector<8x512xf32> to vector<8x128xf32>
    %94 = vector.extract_strided_slice %89 {offsets = [0, 384], sizes = [8, 128], strides = [1, 1]} : vector<8x512xf32> to vector<8x128xf32>
    %95 = arith.maximumf %93, %94 : vector<8x128xf32>
    %96 = arith.maximumf %92, %95 : vector<8x128xf32>
    %97 = tpu.concatenate %16, %32, %48, %64, %80, %96 in 1 : vector<8x128xf32>, vector<8x128xf32>, vector<8x128xf32>, vector<8x128xf32>, vector<8x128xf32>, vector<8x128xf32> -> vector<8x768xf32>
    %98 = arith.truncf %97 : vector<8x768xf32> to vector<8x768xbf16>
    %c0_32 = arith.constant 0 : index
    %c0_33 = arith.constant 0 : index
    %99 = vector.load %arg4[%c0_32, %c0_33] : memref<768x512xbf16, #tpu.memory_space<vmem>>, vector<768x512xbf16>
    %cst_34 = arith.constant dense<0.000000e+00> : vector<8x512xf32>
    %100 = tpu.matmul %98, %99, %cst_34 {dimension_numbers = #tpu.dot_dimension_numbers<[1], [0], [0], [1], [0, 0, 1, 1], [], []>} : vector<8x768xbf16>, vector<768x512xbf16>, vector<8x512xf32> -> vector<8x512xf32>
    %c0_35 = arith.constant 0 : index
    %c0_36 = arith.constant 0 : index
    %101 = vector.load %arg5[%c0_35, %c0_36] : memref<1x512xf32, #tpu.memory_space<vmem>>, vector<1x512xf32>
    %102 = vector.broadcast %101 : vector<1x512xf32> to vector<8x512xf32>
    %103 = arith.addf %100, %102 : vector<8x512xf32>
    %cst_37 = arith.constant 0.000000e+00 : f32
    %104 = vector.broadcast %cst_37 : f32 to vector<8x512xf32>
    %105 = arith.maximumf %103, %104 : vector<8x512xf32>
    %106 = vector.extract_strided_slice %105 {offsets = [0, 0], sizes = [8, 128], strides = [1, 1]} : vector<8x512xf32> to vector<8x128xf32>
    %107 = vector.extract_strided_slice %105 {offsets = [0, 128], sizes = [8, 128], strides = [1, 1]} : vector<8x512xf32> to vector<8x128xf32>
    %108 = arith.maximumf %106, %107 : vector<8x128xf32>
    %109 = vector.extract_strided_slice %105 {offsets = [0, 256], sizes = [8, 128], strides = [1, 1]} : vector<8x512xf32> to vector<8x128xf32>
    %110 = vector.extract_strided_slice %105 {offsets = [0, 384], sizes = [8, 128], strides = [1, 1]} : vector<8x512xf32> to vector<8x128xf32>
    %111 = arith.maximumf %109, %110 : vector<8x128xf32>
    %112 = arith.maximumf %108, %111 : vector<8x128xf32>
    %113 = arith.truncf %112 : vector<8x128xf32> to vector<8x128xbf16>
    %c0_38 = arith.constant 0 : index
    %c0_39 = arith.constant 0 : index
    %114 = vector.load %arg6[%c0_38, %c0_39] : memref<128x128xbf16, #tpu.memory_space<vmem>>, vector<128x128xbf16>
    %cst_40 = arith.constant dense<0.000000e+00> : vector<8x128xf32>
    %115 = tpu.matmul %113, %114, %cst_40 {dimension_numbers = #tpu.dot_dimension_numbers<[1], [0], [0], [1], [0, 0, 1, 1], [], []>} : vector<8x128xbf16>, vector<128x128xbf16>, vector<8x128xf32> -> vector<8x128xf32>
    %c0_41 = arith.constant 0 : index
    %c0_42 = arith.constant 0 : index
    %116 = vector.load %arg7[%c0_41, %c0_42] : memref<1x128xf32, #tpu.memory_space<vmem>>, vector<1x128xf32>
    %117 = vector.broadcast %116 : vector<1x128xf32> to vector<8x128xf32>
    %118 = arith.addf %115, %117 : vector<8x128xf32>
    %c0_43 = arith.constant 0 : index
    %c0_44 = arith.constant 0 : index
    %119 = vector.load %arg8[%c0_43, %c0_44] : memref<8x128xf32, #tpu.memory_space<vmem>>, vector<8x128xf32>
    tpu.vector_store %arg8[%c0_43, %c0_44], %118 {strides = array<i32>} : memref<8x128xf32, #tpu.memory_space<vmem>>, vector<8x128xf32>,
    return
  }
  func.func @transform_0(%arg0: i32) -> (i32, i32) {
    %c0_i32 = arith.constant 0 : i32
    %c0_i32_0 = arith.constant 0 : i32
    return %arg0, %c0_i32 : i32, i32
  }
  func.func @transform_1(%arg0: i32) -> (i32, i32, i32) {
    %c0_i32 = arith.constant 0 : i32
    %c0_i32_0 = arith.constant 0 : i32
    %c0_i32_1 = arith.constant 0 : i32
    %c0_i32_2 = arith.constant 0 : i32
    return %c0_i32, %c0_i32_0, %c0_i32_1 : i32, i32, i32
  }
  func.func @transform_2(%arg0: i32) -> (i32, i32) {
    %c0_i32 = arith.constant 0 : i32
    %c0_i32_0 = arith.constant 0 : i32
    %c0_i32_1 = arith.constant 0 : i32
    return %c0_i32, %c0_i32_0 : i32, i32
  }
  func.func @transform_3(%arg0: i32) -> (i32, i32) {
    %c0_i32 = arith.constant 0 : i32
    %c0_i32_0 = arith.constant 0 : i32
    %c0_i32_1 = arith.constant 0 : i32
    return %c0_i32, %c0_i32_0 : i32, i32
  }
  func.func @transform_4(%arg0: i32) -> (i32, i32) {
    %c0_i32 = arith.constant 0 : i32
    %c0_i32_0 = arith.constant 0 : i32
    %c0_i32_1 = arith.constant 0 : i32
    return %c0_i32, %c0_i32_0 : i32, i32
  }
  func.func @transform_5(%arg0: i32) -> (i32, i32) {
    %c0_i32 = arith.constant 0 : i32
    %c0_i32_0 = arith.constant 0 : i32
    %c0_i32_1 = arith.constant 0 : i32
    return %c0_i32, %c0_i32_0 : i32, i32
  }
  func.func @transform_6(%arg0: i32) -> (i32, i32) {
    %c0_i32 = arith.constant 0 : i32
    %c0_i32_0 = arith.constant 0 : i32
    %c0_i32_1 = arith.constant 0 : i32
    return %c0_i32, %c0_i32_0 : i32, i32
  }
  func.func @transform_7(%arg0: i32) -> (i32, i32) {
    %c0_i32 = arith.constant 0 : i32
    %c0_i32_0 = arith.constant 0 : i32
    return %arg0, %c0_i32 : i32, i32
  }
}

</mosaic_0001>

<llo_original>
// kernel: tpu_custom_call.1
$region0: #{tpu_custom_call.1}
  #allocation0 [shape = 'u32[]', space=smem, size = 0x4, offset = 0x4, fixed_abs, tag = 'smem constant byte address 0x4 - core index']
  #allocation1 [shape = 'u32[144,128]{1,0:T(1,128)}', space=vmem, size = 0x12000, scoped, tag = 'internal scratch']
  %s0 = inlined_call_operand.hbm [shape: f32[8,784], index: 0, kind: input, shape index: {}]
  %s1 = inlined_call_operand.hbm [shape: bf16[6,200,512], index: 1, kind: input, shape index: {}]
  %s2 = inlined_call_operand.hbm [shape: f32[1,512], index: 2, kind: input, shape index: {}]
  %s3 = inlined_call_operand.hbm [shape: bf16[768,512], index: 3, kind: input, shape index: {}]
  %s4 = inlined_call_operand.hbm [shape: f32[1,512], index: 4, kind: input, shape index: {}]
  %s5 = inlined_call_operand.hbm [shape: bf16[128,128], index: 5, kind: input, shape index: {}]
  %s6 = inlined_call_operand.hbm [shape: f32[1,128], index: 6, kind: input, shape index: {}]
  %s7 = inlined_call_operand.hbm [shape: f32[8,128], index: 7, kind: output, shape index: {}]
  %s8 = sld [smem:[#allocation0]]
  $region66: #{tpu_custom_call.1} parent=0
    _
  %s10 = ssub.s32 1, %s8
  %s11 = scalar_select 0, %s10, %s8
  $region1: #{tpu_custom_call.1} parent=0
    #allocation2 [shape = 'u8[28672]{0}', space=vmem, size = 0x7000, scoped, tag = 'input window, operand 0, single buffered']
    #allocation3 [shape = 's32[1]{0}', space=sflag, size = 0x4, scoped, tag = 'scoped memory for tpu_custom_call.1']
    #allocation4 [shape = 's32[1]{0}', space=sflag, size = 0x4, scoped, tag = 'scoped memory for tpu_custom_call.1']
    #allocation5 [shape = 'u8[1228800]{0}', space=vmem, size = 0x12c000, scoped, tag = 'input window, operand 1, single buffered']
    #allocation6 [shape = 's32[1]{0}', space=sflag, size = 0x4, scoped, tag = 'scoped memory for tpu_custom_call.1']
    #allocation7 [shape = 'u8[2048]{0}', space=vmem, size = 0x800, scoped, tag = 'input window, operand 2, single buffered']
    #allocation8 [shape = 'u8[786432]{0}', space=vmem, size = 0xc0000, scoped, tag = 'input window, operand 3, single buffered']
    #allocation9 [shape = 's32[1]{0}', space=sflag, size = 0x4, scoped, tag = 'scoped memory for tpu_custom_call.1']
    #allocation10 [shape = 'u8[2048]{0}', space=vmem, size = 0x800, scoped, tag = 'input window, operand 4, single buffered']
    #allocation11 [shape = 'u8[32768]{0}', space=vmem, size = 0x8000, scoped, tag = 'input window, operand 5, single buffered']
    #allocation12 [shape = 's32[1]{0}', space=sflag, size = 0x4, scoped, tag = 'scoped memory for tpu_custom_call.1']
    #allocation13 [shape = 'u8[512]{0}', space=vmem, size = 0x400, scoped, tag = 'input window, operand 6, single buffered']
    #allocation14 [shape = 'u8[4096]{0}', space=vmem, size = 0x1000, scoped, tag = 'output window, operand 0, single buffered']
    %12 = vsyncpa [#allocation3], 0
    %13 = vsyncpa [#allocation6], 0
    %14 = vsyncpa [#allocation9], 0
    %15 = vsyncpa [#allocation12], 0
    %16 = vsyncpa [#allocation4], 0
    // Predicated region
    $region2: #{tpu_custom_call.1} parent=1 // pred_check
      _
    $region3: #{tpu_custom_call.1} parent=1 // pred_check_branch
      %18 = sbr.rel (0) target = $region5
    $region4: #{tpu_custom_call.1} parent=1 // pred_region
      %s20 = ssub.s32 896, 896
      %21 = vsyncadd [#allocation3], %s20
      %s23 = sshll.u32 [#allocation2], 4
      %s24 = int_to_ptr.vmem [resolvable:$true] %s23
      %26 = dma.hbm_to_vmem [thread:$0]  %s0, 896, %s24, [#allocation3]
    $region5: #{tpu_custom_call.1} parent=1 // pred_fallthru
      _
    // Predicated region
    $region6: #{tpu_custom_call.1} parent=1 // pred_check
      _
    $region7: #{tpu_custom_call.1} parent=1 // pred_check_branch
      %28 = sbr.rel (0) target = $region9
    $region8: #{tpu_custom_call.1} parent=1 // pred_region
      %s30 = ssub.s32 38400, 38400
      %31 = vsyncadd [#allocation6], %s30
      %s32 = sshll.u32 [#allocation5], 4
      %s33 = int_to_ptr.vmem [resolvable:$true] %s32
      %38 = dma.hbm_to_vmem [thread:$0]  %s1, 38400, %s33, [#allocation6], 256, 256, 16
    $region9: #{tpu_custom_call.1} parent=1 // pred_fallthru
      _
    // Predicated region
    $region10: #{tpu_custom_call.1} parent=1 // pred_check
      _
    $region11: #{tpu_custom_call.1} parent=1 // pred_check_branch
      %40 = sbr.rel (0) target = $region13
    $region12: #{tpu_custom_call.1} parent=1 // pred_region
      %s42 = ssub.s32 64, 64
      %43 = vsyncadd [#allocation6], %s42
      %s45 = sshll.u32 [#allocation7], 4
      %s46 = int_to_ptr.vmem [resolvable:$true] %s45
      %48 = dma.hbm_to_vmem [thread:$0]  %s2, 64, %s46, [#allocation6]
    $region13: #{tpu_custom_call.1} parent=1 // pred_fallthru
      _
    // Predicated region
    $region14: #{tpu_custom_call.1} parent=1 // pred_check
      _
    $region15: #{tpu_custom_call.1} parent=1 // pred_check_branch
      %50 = sbr.rel (0) target = $region17
    $region16: #{tpu_custom_call.1} parent=1 // pred_region
      %s52 = ssub.s32 24576, 24576
      %53 = vsyncadd [#allocation9], %s52
      %s54 = sshll.u32 [#allocation8], 4
      %s55 = int_to_ptr.vmem [resolvable:$true] %s54
      %60 = dma.hbm_to_vmem [thread:$0]  %s3, 24576, %s55, [#allocation9], 256, 256, 16
    $region17: #{tpu_custom_call.1} parent=1 // pred_fallthru
      _
    // Predicated region
    $region18: #{tpu_custom_call.1} parent=1 // pred_check
      _
    $region19: #{tpu_custom_call.1} parent=1 // pred_check_branch
      %62 = sbr.rel (0) target = $region21
    $region20: #{tpu_custom_call.1} parent=1 // pred_region
      %s64 = ssub.s32 64, 64
      %65 = vsyncadd [#allocation9], %s64
      %s67 = sshll.u32 [#allocation10], 4
      %s68 = int_to_ptr.vmem [resolvable:$true] %s67
      %70 = dma.hbm_to_vmem [thread:$0]  %s4, 64, %s68, [#allocation9]
    $region21: #{tpu_custom_call.1} parent=1 // pred_fallthru
      _
    // Predicated region
    $region22: #{tpu_custom_call.1} parent=1 // pred_check
      _
    $region23: #{tpu_custom_call.1} parent=1 // pred_check_branch
      %72 = sbr.rel (0) target = $region25
    $region24: #{tpu_custom_call.1} parent=1 // pred_region
      %s74 = ssub.s32 1024, 1024
      %75 = vsyncadd [#allocation12], %s74
      %s76 = sshll.u32 [#allocation11], 4
      %s77 = int_to_ptr.vmem [resolvable:$true] %s76
      %82 = dma.hbm_to_vmem [thread:$0]  %s5, 1024, %s77, [#allocation12], 64, 64, 4
    $region25: #{tpu_custom_call.1} parent=1 // pred_fallthru
      _
    // Predicated region
    $region26: #{tpu_custom_call.1} parent=1 // pred_check
      _
    $region27: #{tpu_custom_call.1} parent=1 // pred_check_branch
      %84 = sbr.rel (0) target = $region29
    $region28: #{tpu_custom_call.1} parent=1 // pred_region
      %s86 = ssub.s32 16, 16
      %87 = vsyncadd [#allocation12], %s86
      %s89 = sshll.u32 [#allocation13], 4
      %s90 = int_to_ptr.vmem [resolvable:$true] %s89
      %92 = dma.hbm_to_vmem [thread:$0]  %s6, 16, %s90, [#allocation12]
    $region29: #{tpu_custom_call.1} parent=1 // pred_fallthru
      _
    // Predicated region
    $region30: #{tpu_custom_call.1} parent=1 // pred_check
      _
    $region31: #{tpu_custom_call.1} parent=1 // pred_check_branch
      %94 = sbr.rel (0) target = $region33
    $region32: #{tpu_custom_call.1} parent=1 // pred_region
      %95 = dma.done [#allocation3], 896
    $region33: #{tpu_custom_call.1} parent=1 // pred_fallthru
      _
    // Predicated region
    $region34: #{tpu_custom_call.1} parent=1 // pred_check
      _
    $region35: #{tpu_custom_call.1} parent=1 // pred_check_branch
      %97 = sbr.rel (0) target = $region37
    $region36: #{tpu_custom_call.1} parent=1 // pred_region
      %98 = dma.done [#allocation6], 38400
    $region37: #{tpu_custom_call.1} parent=1 // pred_fallthru
      _
    // Predicated region
    $region38: #{tpu_custom_call.1} parent=1 // pred_check
      _
    $region39: #{tpu_custom_call.1} parent=1 // pred_check_branch
      %100 = sbr.rel (0) target = $region41
    $region40: #{tpu_custom_call.1} parent=1 // pred_region
      %101 = dma.done [#allocation6], 64
    $region41: #{tpu_custom_call.1} parent=1 // pred_fallthru
      _
    // Predicated region
    $region42: #{tpu_custom_call.1} parent=1 // pred_check
      _
    $region43: #{tpu_custom_call.1} parent=1 // pred_check_branch
      %103 = sbr.rel (0) target = $region45
    $region44: #{tpu_custom_call.1} parent=1 // pred_region
      %104 = dma.done [#allocation9], 24576
    $region45: #{tpu_custom_call.1} parent=1 // pred_fallthru
      _
    // Predicated region
    $region46: #{tpu_custom_call.1} parent=1 // pred_check
      _
    $region47: #{tpu_custom_call.1} parent=1 // pred_check_branch
      %106 = sbr.rel (0) target = $region49
    $region48: #{tpu_custom_call.1} parent=1 // pred_region
      %107 = dma.done [#allocation9], 64
    $region49: #{tpu_custom_call.1} parent=1 // pred_fallthru
      _
    // Predicated region
    $region50: #{tpu_custom_call.1} parent=1 // pred_check
      _
    $region51: #{tpu_custom_call.1} parent=1 // pred_check_branch
      %109 = sbr.rel (0) target = $region53
    $region52: #{tpu_custom_call.1} parent=1 // pred_region
      %110 = dma.done [#allocation12], 1024
    $region53: #{tpu_custom_call.1} parent=1 // pred_fallthru
      _
    // Predicated region
    $region54: #{tpu_custom_call.1} parent=1 // pred_check
      _
    $region55: #{tpu_custom_call.1} parent=1 // pred_check_branch
      %112 = sbr.rel (0) target = $region57
    $region56: #{tpu_custom_call.1} parent=1 // pred_region
      %113 = dma.done [#allocation12], 16
    $region57: #{tpu_custom_call.1} parent=1 // pred_fallthru
      _
    %v115 = vld [vmem:[#allocation7] sm:$0xf]
    %v116 = vld [vmem:[#allocation2] sm:$0xff]
    %v117 = vld [vmem:[#allocation2 + $0x8] sm:$0xff]
    %v118 = vpack.c.bf16 %v116, %v116
    %v119 = vpack.c.bf16 %v117, %v117
    %v120 = vld [vmem:[#allocation5] sm:$0xff]
    %v121 = vld [vmem:[#allocation5 + $0x8] sm:$0xff]
    %v122 = vld [vmem:[#allocation5 + $0x10] sm:$0xff]
    %v123 = vld [vmem:[#allocation5 + $0x18] sm:$0xff]
    %v124 = vld [vmem:[#allocation5 + $0x20] sm:$0xff]
    %v125 = vld [vmem:[#allocation5 + $0x28] sm:$0xff]
    %v126 = vld [vmem:[#allocation5 + $0x30] sm:$0xff]
    %v127 = vld [vmem:[#allocation5 + $0x38] sm:$0xff]
    %v128 = vld [vmem:[#allocation5 + $0x40] sm:$0xff]
    %v129 = vld [vmem:[#allocation5 + $0x48] sm:$0xff]
    %v130 = vld [vmem:[#allocation5 + $0x50] sm:$0xff]
    %v131 = vld [vmem:[#allocation5 + $0x58] sm:$0xff]
    %v132 = vld [vmem:[#allocation5 + $0x60] sm:$0xff]
    %v133 = vld [vmem:[#allocation5 + $0x68] sm:$0xff]
    %v134 = vld [vmem:[#allocation5 + $0x70] sm:$0xff]
    %v135 = vld [vmem:[#allocation5 + $0x78] sm:$0xff]
    %v136 = vld [vmem:[#allocation5 + $0x80] sm:$0xff]
    %v137 = vld [vmem:[#allocation5 + $0x88] sm:$0xff]
    %v138 = vld [vmem:[#allocation5 + $0x90] sm:$0xff]
    %v139 = vld [vmem:[#allocation5 + $0x98] sm:$0xff]
    %v140 = vld [vmem:[#allocation5 + $0xa0] sm:$0xff]
    %v141 = vld [vmem:[#allocation5 + $0xa8] sm:$0xff]
    %v142 = vld [vmem:[#allocation5 + $0xb0] sm:$0xff]
    %v143 = vld [vmem:[#allocation5 + $0xb8] sm:$0xff]
    %v144 = vld [vmem:[#allocation5 + $0xc0] sm:$0xff]
    %v145 = vld [vmem:[#allocation5 + $0xc8] sm:$0xff]
    %v146 = vld [vmem:[#allocation5 + $0xd0] sm:$0xff]
    %v147 = vld [vmem:[#allocation5 + $0xd8] sm:$0xff]
    %v148 = vld [vmem:[#allocation5 + $0xe0] sm:$0xff]
    %v149 = vld [vmem:[#allocation5 + $0xe8] sm:$0xff]
    %v150 = vld [vmem:[#allocation5 + $0xf0] sm:$0xff]
    %v151 = vld [vmem:[#allocation5 + $0xf8] sm:$0xff]
    %v152 = vld [vmem:[#allocation5 + $0x100] sm:$0xff]
    %v153 = vld [vmem:[#allocation5 + $0x108] sm:$0xff]
    %v154 = vld [vmem:[#allocation5 + $0x110] sm:$0xff]
    %v155 = vld [vmem:[#allocation5 + $0x118] sm:$0xff]
    %v156 = vld [vmem:[#allocation5 + $0x120] sm:$0xff]
    %v157 = vld [vmem:[#allocation5 + $0x128] sm:$0xff]
    %v158 = vld [vmem:[#allocation5 + $0x130] sm:$0xff]
    %v159 = vld [vmem:[#allocation5 + $0x138] sm:$0xff]
    %v160 = vld [vmem:[#allocation5 + $0x140] sm:$0xff]
    %v161 = vld [vmem:[#allocation5 + $0x148] sm:$0xff]
    %v162 = vld [vmem:[#allocation5 + $0x150] sm:$0xff]
    %v163 = vld [vmem:[#allocation5 + $0x158] sm:$0xff]
    %v164 = vld [vmem:[#allocation5 + $0x160] sm:$0xff]
    %v165 = vld [vmem:[#allocation5 + $0x168] sm:$0xff]
    %v166 = vld [vmem:[#allocation5 + $0x170] sm:$0xff]
    %v167 = vld [vmem:[#allocation5 + $0x178] sm:$0xff]
    %v168 = vld [vmem:[#allocation5 + $0x180] sm:$0xff]
    %v169 = vld [vmem:[#allocation5 + $0x188] sm:$0xff]
    %v171 = vlaneseq
    %v172 = vshrl.u32 %v171, 7
    %v173 = vsub.s32 0, %v172
    %v174 = vrot.slane %v115, %v173
    %v175 = vlaneseq
    %v176 = vshrl.u32 %v175, 7
    %v177 = vsub.s32 1, %v176
    %v178 = vrot.slane %v115, %v177
    %v179 = vlaneseq
    %v180 = vshrl.u32 %v179, 7
    %v181 = vsub.s32 2, %v180
    %v182 = vrot.slane %v115, %v181
    %v183 = vlaneseq
    %v184 = vshrl.u32 %v183, 7
    %v185 = vsub.s32 3, %v184
    %v186 = vrot.slane %v115, %v185
    %v241 = vunpack.c.l.b16 %v120
    %v242 = vunpack.c.h.b16 %v120
    %v243 = vunpack.c.l.b16 %v121
    %v244 = vunpack.c.h.b16 %v121
    %v245 = vunpack.c.l.b16 %v122
    %v246 = vunpack.c.h.b16 %v122
    %v247 = vunpack.c.l.b16 %v123
    %v248 = vunpack.c.h.b16 %v123
    %v249 = vunpack.c.l.b16 %v124
    %v250 = vunpack.c.h.b16 %v124
    %v251 = vunpack.c.l.b16 %v125
    %v252 = vunpack.c.h.b16 %v125
    %v253 = vunpack.c.l.b16 %v126
    %v254 = vunpack.c.h.b16 %v126
    %v255 = vunpack.c.l.b16 %v127
    %v256 = vunpack.c.h.b16 %v127
    %v257 = vunpack.c.l.b16 %v128
    %v258 = vunpack.c.h.b16 %v128
    %v259 = vunpack.c.l.b16 %v129
    %v260 = vunpack.c.h.b16 %v129
    %v261 = vunpack.c.l.b16 %v130
    %v262 = vunpack.c.h.b16 %v130
    %v263 = vunpack.c.l.b16 %v131
    %v264 = vunpack.c.h.b16 %v131
    %v265 = vunpack.c.l.b16 %v132
    %v266 = vunpack.c.h.b16 %v132
    %v267 = vunpack.c.l.b16 %v133
    %v268 = vunpack.c.h.b16 %v133
    %v269 = vunpack.c.l.b16 %v134
    %v270 = vunpack.c.h.b16 %v134
    %v271 = vunpack.c.l.b16 %v135
    %v272 = vunpack.c.h.b16 %v135
    %v273 = vunpack.c.l.b16 %v136
    %v274 = vunpack.c.h.b16 %v136
    %v275 = vunpack.c.l.b16 %v137
    %v276 = vunpack.c.h.b16 %v137
    %v277 = vunpack.c.l.b16 %v138
    %v278 = vunpack.c.h.b16 %v138
    %v279 = vunpack.c.l.b16 %v139
    %v280 = vunpack.c.h.b16 %v139
    %v281 = vunpack.c.l.b16 %v140
    %v282 = vunpack.c.h.b16 %v140
    %v283 = vunpack.c.l.b16 %v141
    %v284 = vunpack.c.h.b16 %v141
    %v285 = vunpack.c.l.b16 %v142
    %v286 = vunpack.c.h.b16 %v142
    %v287 = vunpack.c.l.b16 %v143
    %v288 = vunpack.c.h.b16 %v143
    %v289 = vunpack.c.l.b16 %v144
    %v290 = vunpack.c.h.b16 %v144
    %v291 = vunpack.c.l.b16 %v145
    %v292 = vunpack.c.h.b16 %v145
    %v293 = vunpack.c.l.b16 %v146
    %v294 = vunpack.c.h.b16 %v146
    %v295 = vunpack.c.l.b16 %v147
    %v296 = vunpack.c.h.b16 %v147
    %v297 = vunpack.c.l.b16 %v148
    %v298 = vunpack.c.h.b16 %v148
    %v299 = vunpack.c.l.b16 %v149
    %v300 = vunpack.c.h.b16 %v149
    %v301 = vunpack.c.l.b16 %v150
    %v302 = vunpack.c.h.b16 %v150
    %v303 = vunpack.c.l.b16 %v151
    %v304 = vunpack.c.h.b16 %v151
    %v305 = vunpack.c.l.b16 %v152
    %v306 = vunpack.c.h.b16 %v152
    %v307 = vunpack.c.l.b16 %v153
    %v308 = vunpack.c.h.b16 %v153
    %v309 = vunpack.c.l.b16 %v154
    %v310 = vunpack.c.h.b16 %v154
    %v311 = vunpack.c.l.b16 %v155
    %v312 = vunpack.c.h.b16 %v155
    %v313 = vunpack.c.l.b16 %v156
    %v314 = vunpack.c.h.b16 %v156
    %v315 = vunpack.c.l.b16 %v157
    %v316 = vunpack.c.h.b16 %v157
    %v317 = vunpack.c.l.b16 %v158
    %v318 = vunpack.c.h.b16 %v158
    %v319 = vunpack.c.l.b16 %v159
    %v320 = vunpack.c.h.b16 %v159
    %v321 = vunpack.c.l.b16 %v160
    %v322 = vunpack.c.h.b16 %v160
    %v323 = vunpack.c.l.b16 %v161
    %v324 = vunpack.c.h.b16 %v161
    %v325 = vunpack.c.l.b16 %v162
    %v326 = vunpack.c.h.b16 %v162
    %v327 = vunpack.c.l.b16 %v163
    %v328 = vunpack.c.h.b16 %v163
    %v329 = vunpack.c.l.b16 %v164
    %v330 = vunpack.c.h.b16 %v164
    %v331 = vunpack.c.l.b16 %v165
    %v332 = vunpack.c.h.b16 %v165
    %v333 = vunpack.c.l.b16 %v166
    %v334 = vunpack.c.h.b16 %v166
    %v335 = vunpack.c.l.b16 %v167
    %v336 = vunpack.c.h.b16 %v167
    %v337 = vunpack.c.l.b16 %v168
    %v338 = vunpack.c.h.b16 %v168
    %v339 = vunpack.c.l.b16 %v169
    %v340 = vunpack.c.h.b16 %v169
    %v341 = vpack.c.b16 %v245, %v241
    %v342 = vpack.c.b16 %v246, %v242
    %v343 = vpack.c.b16 %v247, %v243
    %v344 = vpack.c.b16 %v248, %v244
    %v345 = vpack.c.b16 %v253, %v249
    %v346 = vpack.c.b16 %v254, %v250
    %v347 = vpack.c.b16 %v255, %v251
    %v348 = vpack.c.b16 %v256, %v252
    %v349 = vpack.c.b16 %v261, %v257
    %v350 = vpack.c.b16 %v262, %v258
    %v351 = vpack.c.b16 %v263, %v259
    %v352 = vpack.c.b16 %v264, %v260
    %v353 = vpack.c.b16 %v269, %v265
    %v354 = vpack.c.b16 %v270, %v266
    %v355 = vpack.c.b16 %v271, %v267
    %v356 = vpack.c.b16 %v272, %v268
    %v357 = vpack.c.b16 %v277, %v273
    %v358 = vpack.c.b16 %v278, %v274
    %v359 = vpack.c.b16 %v279, %v275
    %v360 = vpack.c.b16 %v280, %v276
    %v361 = vpack.c.b16 %v285, %v281
    %v362 = vpack.c.b16 %v286, %v282
    %v363 = vpack.c.b16 %v287, %v283
    %v364 = vpack.c.b16 %v288, %v284
    %v365 = vpack.c.b16 %v293, %v289
    %v366 = vpack.c.b16 %v294, %v290
    %v367 = vpack.c.b16 %v295, %v291
    %v368 = vpack.c.b16 %v296, %v292
    %v369 = vpack.c.b16 %v301, %v297
    %v370 = vpack.c.b16 %v302, %v298
    %v371 = vpack.c.b16 %v303, %v299
    %v372 = vpack.c.b16 %v304, %v300
    %v373 = vpack.c.b16 %v309, %v305
    %v374 = vpack.c.b16 %v310, %v306
    %v375 = vpack.c.b16 %v311, %v307
    %v376 = vpack.c.b16 %v312, %v308
    %v377 = vpack.c.b16 %v317, %v313
    %v378 = vpack.c.b16 %v318, %v314
    %v379 = vpack.c.b16 %v319, %v315
    %v380 = vpack.c.b16 %v320, %v316
    %v381 = vpack.c.b16 %v325, %v321
    %v382 = vpack.c.b16 %v326, %v322
    %v383 = vpack.c.b16 %v327, %v323
    %v384 = vpack.c.b16 %v328, %v324
    %v385 = vpack.c.b16 %v333, %v329
    %v386 = vpack.c.b16 %v334, %v330
    %v387 = vpack.c.b16 %v335, %v331
    %v388 = vpack.c.b16 %v336, %v332
    %v389 = vpack.c.b16 %v337, %v337
    %v390 = vpack.c.b16 %v338, %v338
    %v391 = vpack.c.b16 %v339, %v339
    %v392 = vpack.c.b16 %v340, %v340
    %vm441 = vcmask 588800
    %v443 = vsel %vm441, %v119, 0
    %vm445 = vcmask 1043456
    %v447 = vsel %vm445, %v389, 0
    %v450 = vsel %vm445, %v390, 0
    %v453 = vsel %vm445, %v391, 0
    %v456 = vsel %vm445, %v392, 0
    %458 = vmatprep.subr.bf16.mxu0 %v342
    %459 = vmatpush1.bf16.msra.mxu0 %v341
    %460 = vmatprep.subr.bf16.mxu0 %v346
    %461 = vmatpush1.bf16.msra.mxu0 %v345
    %462 = vmatprep.subr.bf16.mxu0 %v350
    %463 = vmatpush1.bf16.msra.mxu0 %v349
    %464 = vmatprep.subr.bf16.mxu0 %v354
    %465 = vmatpush1.bf16.msra.mxu0 %v353
    %466 = vmatprep.subr.bf16.mxu0 %v358
    %467 = vmatpush1.bf16.msra.mxu0 %v357
    %468 = vmatprep.subr.bf16.mxu0 %v362
    %469 = vmatpush1.bf16.msra.mxu0 %v361
    %470 = vmatprep.subr.bf16.mxu0 %v366
    %471 = vmatpush1.bf16.msra.mxu0 %v365
    %472 = vmatprep.subr.bf16.mxu0 %v370
    %473 = vmatpush1.bf16.msra.mxu0 %v369
    %474 = vmatprep.subr.bf16.mxu0 %v374
    %475 = vmatpush1.bf16.msra.mxu0 %v373
    %476 = vmatprep.subr.bf16.mxu0 %v378
    %477 = vmatpush1.bf16.msra.mxu0 %v377
    %478 = vmatprep.subr.bf16.mxu0 %v382
    %479 = vmatpush1.bf16.msra.mxu0 %v381
    %480 = vmatprep.subr.bf16.mxu0 %v386
    %481 = vmatpush1.bf16.msra.mxu0 %v385
    %482 = vmatprep.subr.bf16.mxu0 %v450
    %483 = vmatpush1.bf16.msra.mxu0 %v447
    %484 = vmatprep.subr.bf16.mxu0 0
    %485 = vmatpush1.bf16.msra.mxu0 0
    %486 = vmatprep.subr.bf16.mxu0 0
    %487 = vmatpush1.bf16.msra.mxu0 0
    %488 = vmatprep.subr.bf16.mxu0 0
    %489 = vmatpush1.bf16.msra.mxu0 0
    %490 = vmatprep.mubr.bf16.mxu0 %v443
    %491 = vmatmul.mubr.bf16.gmra.mrb[0].mxu0 %v118
    %v492 = vpop.f32.mrb[0].mxu0
    %v493 = vadd.f32 %v174, %v492
    %v494 = vpop.f32.mrb[0].mxu0
    %v495 = vadd.f32 %v178, %v494
    %v496 = vpop.f32.mrb[0].mxu0
    %v497 = vpop.f32.mrb[0].mxu0
    %498 = vdwg.mxu0
    %499 = vmatprep.subr.bf16.mxu0 %v344
    %500 = vmatpush1.bf16.msra.mxu0 %v343
    %501 = vmatprep.subr.bf16.mxu0 %v348
    %502 = vmatpush1.bf16.msra.mxu0 %v347
    %503 = vmatprep.subr.bf16.mxu0 %v352
    %504 = vmatpush1.bf16.msra.mxu0 %v351
    %505 = vmatprep.subr.bf16.mxu0 %v356
    %506 = vmatpush1.bf16.msra.mxu0 %v355
    %507 = vmatprep.subr.bf16.mxu0 %v360
    %508 = vmatpush1.bf16.msra.mxu0 %v359
    %509 = vmatprep.subr.bf16.mxu0 %v364
    %510 = vmatpush1.bf16.msra.mxu0 %v363
    %511 = vmatprep.subr.bf16.mxu0 %v368
    %512 = vmatpush1.bf16.msra.mxu0 %v367
    %513 = vmatprep.subr.bf16.mxu0 %v372
    %514 = vmatpush1.bf16.msra.mxu0 %v371
    %515 = vmatprep.subr.bf16.mxu0 %v376
    %516 = vmatpush1.bf16.msra.mxu0 %v375
    %517 = vmatprep.subr.bf16.mxu0 %v380
    %518 = vmatpush1.bf16.msra.mxu0 %v379
    %519 = vmatprep.subr.bf16.mxu0 %v384
    %520 = vmatpush1.bf16.msra.mxu0 %v383
    %521 = vmatprep.subr.bf16.mxu0 %v388
    %522 = vmatpush1.bf16.msra.mxu0 %v387
    %523 = vmatprep.subr.bf16.mxu0 %v456
    %524 = vmatpush1.bf16.msra.mxu0 %v453
    %525 = vmatprep.subr.bf16.mxu0 0
    %526 = vmatpush1.bf16.msra.mxu0 0
    %527 = vmatprep.subr.bf16.mxu0 0
    %528 = vmatpush1.bf16.msra.mxu0 0
    %529 = vmatprep.subr.bf16.mxu0 0
    %530 = vmatpush1.bf16.msra.mxu0 0
    %531 = vmatprep.mubr.bf16.mxu0 %v443
    %532 = vmatmul.mubr.bf16.gmra.mrb[0].mxu0 %v118
    %v533 = vpop.f32.mrb[0].mxu0
    %v534 = vadd.f32 %v182, %v533
    %v535 = vpop.f32.mrb[0].mxu0
    %v536 = vadd.f32 %v186, %v535
    %v537 = vpop.f32.mrb[0].mxu0
    %v538 = vpop.f32.mrb[0].mxu0
    %539 = vdwg.mxu0
    %v540 = vmax.f32 %v493, 0.0
    %v541 = vmax.f32 %v495, 0.0
    %v542 = vmax.f32 %v534, 0.0
    %v543 = vmax.f32 %v536, 0.0
    %v544 = vmax.f32 %v540, %v541
    %v545 = vmax.f32 %v542, %v543
    %v546 = vmax.f32 %v544, %v545
    %v547 = vld [vmem:[#allocation2] sm:$0xff]
    %v548 = vld [vmem:[#allocation2 + $0x8] sm:$0xff]
    %v549 = vld [vmem:[#allocation2 + $0x10] sm:$0xff]
    %v550 = vpack.c.bf16 %v547, %v547
    %v551 = vpack.c.bf16 %v548, %v548
    %v552 = vpack.c.bf16 %v549, %v549
    %s553 = scalar_lea.vmem [#allocation5], 400
    %v554 = vld [vmem:[%s553] sm:$0xff]
    %v555 = vld [vmem:[%s553 + $0x8] sm:$0xff]
    %v556 = vld [vmem:[%s553 + $0x10] sm:$0xff]
    %v557 = vld [vmem:[%s553 + $0x18] sm:$0xff]
    %v558 = vld [vmem:[%s553 + $0x20] sm:$0xff]
    %v559 = vld [vmem:[%s553 + $0x28] sm:$0xff]
    %v560 = vld [vmem:[%s553 + $0x30] sm:$0xff]
    %v561 = vld [vmem:[%s553 + $0x38] sm:$0xff]
    %v562 = vld [vmem:[%s553 + $0x40] sm:$0xff]
    %v563 = vld [vmem:[%s553 + $0x48] sm:$0xff]
    %v564 = vld [vmem:[%s553 + $0x50] sm:$0xff]
    %v565 = vld [vmem:[%s553 + $0x58] sm:$0xff]
    %v566 = vld [vmem:[%s553 + $0x60] sm:$0xff]
    %v567 = vld [vmem:[%s553 + $0x68] sm:$0xff]
    %v568 = vld [vmem:[%s553 + $0x70] sm:$0xff]
    %v569 = vld [vmem:[%s553 + $0x78] sm:$0xff]
    %v570 = vld [vmem:[%s553 + $0x80] sm:$0xff]
    %v571 = vld [vmem:[%s553 + $0x88] sm:$0xff]
    %v572 = vld [vmem:[%s553 + $0x90] sm:$0xff]
    %v573 = vld [vmem:[%s553 + $0x98] sm:$0xff]
    %v574 = vld [vmem:[%s553 + $0xa0] sm:$0xff]
    %v575 = vld [vmem:[%s553 + $0xa8] sm:$0xff]
    %v576 = vld [vmem:[%s553 + $0xb0] sm:$0xff]
    %v577 = vld [vmem:[%s553 + $0xb8] sm:$0xff]
    %v578 = vld [vmem:[%s553 + $0xc0] sm:$0xff]
    %v579 = vld [vmem:[%s553 + $0xc8] sm:$0xff]
    %v580 = vld [vmem:[%s553 + $0xd0] sm:$0xff]
    %v581 = vld [vmem:[%s553 + $0xd8] sm:$0xff]
    %v582 = vld [vmem:[%s553 + $0xe0] sm:$0xff]
    %v583 = vld [vmem:[%s553 + $0xe8] sm:$0xff]
    %v584 = vld [vmem:[%s553 + $0xf0] sm:$0xff]
    %v585 = vld [vmem:[%s553 + $0xf8] sm:$0xff]
    %v586 = vld [vmem:[%s553 + $0x100] sm:$0xff]
    %v587 = vld [vmem:[%s553 + $0x108] sm:$0xff]
    %v588 = vld [vmem:[%s553 + $0x110] sm:$0xff]
    %v589 = vld [vmem:[%s553 + $0x118] sm:$0xff]
    %v590 = vld [vmem:[%s553 + $0x120] sm:$0xff]
    %v591 = vld [vmem:[%s553 + $0x128] sm:$0xff]
    %v592 = vld [vmem:[%s553 + $0x130] sm:$0xff]
    %v593 = vld [vmem:[%s553 + $0x138] sm:$0xff]
    %v594 = vld [vmem:[%s553 + $0x140] sm:$0xff]
    %v595 = vld [vmem:[%s553 + $0x148] sm:$0xff]
    %v596 = vld [vmem:[%s553 + $0x150] sm:$0xff]
    %v597 = vld [vmem:[%s553 + $0x158] sm:$0xff]
    %v598 = vld [vmem:[%s553 + $0x160] sm:$0xff]
    %v599 = vld [vmem:[%s553 + $0x168] sm:$0xff]
    %v600 = vld [vmem:[%s553 + $0x170] sm:$0xff]
    %v601 = vld [vmem:[%s553 + $0x178] sm:$0xff]
    %v602 = vld [vmem:[%s553 + $0x180] sm:$0xff]
    %v603 = vld [vmem:[%s553 + $0x188] sm:$0xff]
    %607 = vrot.lane.b32.xlu0 %v550, 16
    %v608 = vpop.permute.xlu0 %607
    %609 = vrot.lane.b32.xlu0 %v551, 16
    %v610 = vpop.permute.xlu0 %609
    %611 = vrot.lane.b32.xlu0 %v552, 16
    %v612 = vpop.permute.xlu0 %611
    %vm613 = vcmask 130048
    %v614 = vsel %vm613, %v608, %v610
    %v615 = vsel %vm613, %v610, %v612
    %v667 = vunpack.c.l.b16 %v554
    %v668 = vunpack.c.h.b16 %v554
    %v669 = vunpack.c.l.b16 %v555
    %v670 = vunpack.c.h.b16 %v555
    %v671 = vunpack.c.l.b16 %v556
    %v672 = vunpack.c.h.b16 %v556
    %v673 = vunpack.c.l.b16 %v557
    %v674 = vunpack.c.h.b16 %v557
    %v675 = vunpack.c.l.b16 %v558
    %v676 = vunpack.c.h.b16 %v558
    %v677 = vunpack.c.l.b16 %v559
    %v678 = vunpack.c.h.b16 %v559
    %v679 = vunpack.c.l.b16 %v560
    %v680 = vunpack.c.h.b16 %v560
    %v681 = vunpack.c.l.b16 %v561
    %v682 = vunpack.c.h.b16 %v561
    %v683 = vunpack.c.l.b16 %v562
    %v684 = vunpack.c.h.b16 %v562
    %v685 = vunpack.c.l.b16 %v563
    %v686 = vunpack.c.h.b16 %v563
    %v687 = vunpack.c.l.b16 %v564
    %v688 = vunpack.c.h.b16 %v564
    %v689 = vunpack.c.l.b16 %v565
    %v690 = vunpack.c.h.b16 %v565
    %v691 = vunpack.c.l.b16 %v566
    %v692 = vunpack.c.h.b16 %v566
    %v693 = vunpack.c.l.b16 %v567
    %v694 = vunpack.c.h.b16 %v567
    %v695 = vunpack.c.l.b16 %v568
    %v696 = vunpack.c.h.b16 %v568
    %v697 = vunpack.c.l.b16 %v569
    %v698 = vunpack.c.h.b16 %v569
    %v699 = vunpack.c.l.b16 %v570
    %v700 = vunpack.c.h.b16 %v570
    %v701 = vunpack.c.l.b16 %v571
    %v702 = vunpack.c.h.b16 %v571
    %v703 = vunpack.c.l.b16 %v572
    %v704 = vunpack.c.h.b16 %v572
    %v705 = vunpack.c.l.b16 %v573
    %v706 = vunpack.c.h.b16 %v573
    %v707 = vunpack.c.l.b16 %v574
    %v708 = vunpack.c.h.b16 %v574
    %v709 = vunpack.c.l.b16 %v575
    %v710 = vunpack.c.h.b16 %v575
    %v711 = vunpack.c.l.b16 %v576
    %v712 = vunpack.c.h.b16 %v576
    %v713 = vunpack.c.l.b16 %v577
    %v714 = vunpack.c.h.b16 %v577
    %v715 = vunpack.c.l.b16 %v578
    %v716 = vunpack.c.h.b16 %v578
    %v717 = vunpack.c.l.b16 %v579
    %v718 = vunpack.c.h.b16 %v579
    %v719 = vunpack.c.l.b16 %v580
    %v720 = vunpack.c.h.b16 %v580
    %v721 = vunpack.c.l.b16 %v581
    %v722 = vunpack.c.h.b16 %v581
    %v723 = vunpack.c.l.b16 %v582
    %v724 = vunpack.c.h.b16 %v582
    %v725 = vunpack.c.l.b16 %v583
    %v726 = vunpack.c.h.b16 %v583
    %v727 = vunpack.c.l.b16 %v584
    %v728 = vunpack.c.h.b16 %v584
    %v729 = vunpack.c.l.b16 %v585
    %v730 = vunpack.c.h.b16 %v585
    %v731 = vunpack.c.l.b16 %v586
    %v732 = vunpack.c.h.b16 %v586
    %v733 = vunpack.c.l.b16 %v587
    %v734 = vunpack.c.h.b16 %v587
    %v735 = vunpack.c.l.b16 %v588
    %v736 = vunpack.c.h.b16 %v588
    %v737 = vunpack.c.l.b16 %v589
    %v738 = vunpack.c.h.b16 %v589
    %v739 = vunpack.c.l.b16 %v590
    %v740 = vunpack.c.h.b16 %v590
    %v741 = vunpack.c.l.b16 %v591
    %v742 = vunpack.c.h.b16 %v591
    %v743 = vunpack.c.l.b16 %v592
    %v744 = vunpack.c.h.b16 %v592
    %v745 = vunpack.c.l.b16 %v593
    %v746 = vunpack.c.h.b16 %v593
    %v747 = vunpack.c.l.b16 %v594
    %v748 = vunpack.c.h.b16 %v594
    %v749 = vunpack.c.l.b16 %v595
    %v750 = vunpack.c.h.b16 %v595
    %v751 = vunpack.c.l.b16 %v596
    %v752 = vunpack.c.h.b16 %v596
    %v753 = vunpack.c.l.b16 %v597
    %v754 = vunpack.c.h.b16 %v597
    %v755 = vunpack.c.l.b16 %v598
    %v756 = vunpack.c.h.b16 %v598
    %v757 = vunpack.c.l.b16 %v599
    %v758 = vunpack.c.h.b16 %v599
    %v759 = vunpack.c.l.b16 %v600
    %v760 = vunpack.c.h.b16 %v600
    %v761 = vunpack.c.l.b16 %v601
    %v762 = vunpack.c.h.b16 %v601
    %v763 = vunpack.c.l.b16 %v602
    %v764 = vunpack.c.h.b16 %v602
    %v765 = vunpack.c.l.b16 %v603
    %v766 = vunpack.c.h.b16 %v603
    %v767 = vpack.c.b16 %v671, %v667
    %v768 = vpack.c.b16 %v672, %v668
    %v769 = vpack.c.b16 %v673, %v669
    %v770 = vpack.c.b16 %v674, %v670
    %v771 = vpack.c.b16 %v679, %v675
    %v772 = vpack.c.b16 %v680, %v676
    %v773 = vpack.c.b16 %v681, %v677
    %v774 = vpack.c.b16 %v682, %v678
    %v775 = vpack.c.b16 %v687, %v683
    %v776 = vpack.c.b16 %v688, %v684
    %v777 = vpack.c.b16 %v689, %v685
    %v778 = vpack.c.b16 %v690, %v686
    %v779 = vpack.c.b16 %v695, %v691
    %v780 = vpack.c.b16 %v696, %v692
    %v781 = vpack.c.b16 %v697, %v693
    %v782 = vpack.c.b16 %v698, %v694
    %v783 = vpack.c.b16 %v703, %v699
    %v784 = vpack.c.b16 %v704, %v700
    %v785 = vpack.c.b16 %v705, %v701
    %v786 = vpack.c.b16 %v706, %v702
    %v787 = vpack.c.b16 %v711, %v707
    %v788 = vpack.c.b16 %v712, %v708
    %v789 = vpack.c.b16 %v713, %v709
    %v790 = vpack.c.b16 %v714, %v710
    %v791 = vpack.c.b16 %v719, %v715
    %v792 = vpack.c.b16 %v720, %v716
    %v793 = vpack.c.b16 %v721, %v717
    %v794 = vpack.c.b16 %v722, %v718
    %v795 = vpack.c.b16 %v727, %v723
    %v796 = vpack.c.b16 %v728, %v724
    %v797 = vpack.c.b16 %v729, %v725
    %v798 = vpack.c.b16 %v730, %v726
    %v799 = vpack.c.b16 %v735, %v731
    %v800 = vpack.c.b16 %v736, %v732
    %v801 = vpack.c.b16 %v737, %v733
    %v802 = vpack.c.b16 %v738, %v734
    %v803 = vpack.c.b16 %v743, %v739
    %v804 = vpack.c.b16 %v744, %v740
    %v805 = vpack.c.b16 %v745, %v741
    %v806 = vpack.c.b16 %v746, %v742
    %v807 = vpack.c.b16 %v751, %v747
    %v808 = vpack.c.b16 %v752, %v748
    %v809 = vpack.c.b16 %v753, %v749
    %v810 = vpack.c.b16 %v754, %v750
    %v811 = vpack.c.b16 %v759, %v755
    %v812 = vpack.c.b16 %v760, %v756
    %v813 = vpack.c.b16 %v761, %v757
    %v814 = vpack.c.b16 %v762, %v758
    %v815 = vpack.c.b16 %v763, %v763
    %v816 = vpack.c.b16 %v764, %v764
    %v817 = vpack.c.b16 %v765, %v765
    %v818 = vpack.c.b16 %v766, %v766
    %v868 = vsel %vm441, %v615, 0
    %v871 = vsel %vm445, %v815, 0
    %v874 = vsel %vm445, %v816, 0
    %v877 = vsel %vm445, %v817, 0
    %v880 = vsel %vm445, %v818, 0
    %882 = vmatprep.subr.bf16.mxu0 %v768
    %883 = vmatpush1.bf16.msra.mxu0 %v767
    %884 = vmatprep.subr.bf16.mxu0 %v772
    %885 = vmatpush1.bf16.msra.mxu0 %v771
    %886 = vmatprep.subr.bf16.mxu0 %v776
    %887 = vmatpush1.bf16.msra.mxu0 %v775
    %888 = vmatprep.subr.bf16.mxu0 %v780
    %889 = vmatpush1.bf16.msra.mxu0 %v779
    %890 = vmatprep.subr.bf16.mxu0 %v784
    %891 = vmatpush1.bf16.msra.mxu0 %v783
    %892 = vmatprep.subr.bf16.mxu0 %v788
    %893 = vmatpush1.bf16.msra.mxu0 %v787
    %894 = vmatprep.subr.bf16.mxu0 %v792
    %895 = vmatpush1.bf16.msra.mxu0 %v791
    %896 = vmatprep.subr.bf16.mxu0 %v796
    %897 = vmatpush1.bf16.msra.mxu0 %v795
    %898 = vmatprep.subr.bf16.mxu0 %v800
    %899 = vmatpush1.bf16.msra.mxu0 %v799
    %900 = vmatprep.subr.bf16.mxu0 %v804
    %901 = vmatpush1.bf16.msra.mxu0 %v803
    %902 = vmatprep.subr.bf16.mxu0 %v808
    %903 = vmatpush1.bf16.msra.mxu0 %v807
    %904 = vmatprep.subr.bf16.mxu0 %v812
    %905 = vmatpush1.bf16.msra.mxu0 %v811
    %906 = vmatprep.subr.bf16.mxu0 %v874
    %907 = vmatpush1.bf16.msra.mxu0 %v871
    %908 = vmatprep.subr.bf16.mxu0 0
    %909 = vmatpush1.bf16.msra.mxu0 0
    %910 = vmatprep.subr.bf16.mxu0 0
    %911 = vmatpush1.bf16.msra.mxu0 0
    %912 = vmatprep.subr.bf16.mxu0 0
    %913 = vmatpush1.bf16.msra.mxu0 0
    %914 = vmatprep.mubr.bf16.mxu0 %v868
    %915 = vmatmul.mubr.bf16.gmra.mrb[0].mxu0 %v614
    %v916 = vpop.f32.mrb[0].mxu0
    %v917 = vadd.f32 %v174, %v916
    %v918 = vpop.f32.mrb[0].mxu0
    %v919 = vadd.f32 %v178, %v918
    %v920 = vpop.f32.mrb[0].mxu0
    %v921 = vpop.f32.mrb[0].mxu0
    %922 = vdwg.mxu0
    %923 = vmatprep.subr.bf16.mxu0 %v770
    %924 = vmatpush1.bf16.msra.mxu0 %v769
    %925 = vmatprep.subr.bf16.mxu0 %v774
    %926 = vmatpush1.bf16.msra.mxu0 %v773
    %927 = vmatprep.subr.bf16.mxu0 %v778
    %928 = vmatpush1.bf16.msra.mxu0 %v777
    %929 = vmatprep.subr.bf16.mxu0 %v782
    %930 = vmatpush1.bf16.msra.mxu0 %v781
    %931 = vmatprep.subr.bf16.mxu0 %v786
    %932 = vmatpush1.bf16.msra.mxu0 %v785
    %933 = vmatprep.subr.bf16.mxu0 %v790
    %934 = vmatpush1.bf16.msra.mxu0 %v789
    %935 = vmatprep.subr.bf16.mxu0 %v794
    %936 = vmatpush1.bf16.msra.mxu0 %v793
    %937 = vmatprep.subr.bf16.mxu0 %v798
    %938 = vmatpush1.bf16.msra.mxu0 %v797
    %939 = vmatprep.subr.bf16.mxu0 %v802
    %940 = vmatpush1.bf16.msra.mxu0 %v801
    %941 = vmatprep.subr.bf16.mxu0 %v806
    %942 = vmatpush1.bf16.msra.mxu0 %v805
    %943 = vmatprep.subr.bf16.mxu0 %v810
    %944 = vmatpush1.bf16.msra.mxu0 %v809
    %945 = vmatprep.subr.bf16.mxu0 %v814
    %946 = vmatpush1.bf16.msra.mxu0 %v813
    %947 = vmatprep.subr.bf16.mxu0 %v880
    %948 = vmatpush1.bf16.msra.mxu0 %v877
    %949 = vmatprep.subr.bf16.mxu0 0
    %950 = vmatpush1.bf16.msra.mxu0 0
    %951 = vmatprep.subr.bf16.mxu0 0
    %952 = vmatpush1.bf16.msra.mxu0 0
    %953 = vmatprep.subr.bf16.mxu0 0
    %954 = vmatpush1.bf16.msra.mxu0 0
    %955 = vmatprep.mubr.bf16.mxu0 %v868
    %956 = vmatmul.mubr.bf16.gmra.mrb[0].mxu0 %v614
    %v957 = vpop.f32.mrb[0].mxu0
    %v958 = vadd.f32 %v182, %v957
    %v959 = vpop.f32.mrb[0].mxu0
    %v960 = vadd.f32 %v186, %v959
    %v961 = vpop.f32.mrb[0].mxu0
    %v962 = vpop.f32.mrb[0].mxu0
    %963 = vdwg.mxu0
    %v964 = vmax.f32 %v917, 0.0
    %v965 = vmax.f32 %v919, 0.0
    %v966 = vmax.f32 %v958, 0.0
    %v967 = vmax.f32 %v960, 0.0
    %v968 = vmax.f32 %v964, %v965
    %v969 = vmax.f32 %v966, %v967
    %v970 = vmax.f32 %v968, %v969
    %v971 = vld [vmem:[#allocation2 + $0x8] sm:$0xff]
    %v972 = vld [vmem:[#allocation2 + $0x10] sm:$0xff]
    %v973 = vld [vmem:[#allocation2 + $0x18] sm:$0xff]
    %v974 = vpack.c.bf16 %v971, %v971
    %v975 = vpack.c.bf16 %v972, %v972
    %v976 = vpack.c.bf16 %v973, %v973
    %s977 = scalar_lea.vmem [#allocation5], 800
    %v978 = vld [vmem:[%s977] sm:$0xff]
    %v979 = vld [vmem:[%s977 + $0x8] sm:$0xff]
    %v980 = vld [vmem:[%s977 + $0x10] sm:$0xff]
    %v981 = vld [vmem:[%s977 + $0x18] sm:$0xff]
    %v982 = vld [vmem:[%s977 + $0x20] sm:$0xff]
    %v983 = vld [vmem:[%s977 + $0x28] sm:$0xff]
    %v984 = vld [vmem:[%s977 + $0x30] sm:$0xff]
    %v985 = vld [vmem:[%s977 + $0x38] sm:$0xff]
    %v986 = vld [vmem:[%s977 + $0x40] sm:$0xff]
    %v987 = vld [vmem:[%s977 + $0x48] sm:$0xff]
    %v988 = vld [vmem:[%s977 + $0x50] sm:$0xff]
    %v989 = vld [vmem:[%s977 + $0x58] sm:$0xff]
    %v990 = vld [vmem:[%s977 + $0x60] sm:$0xff]
    %v991 = vld [vmem:[%s977 + $0x68] sm:$0xff]
    %v992 = vld [vmem:[%s977 + $0x70] sm:$0xff]
    %v993 = vld [vmem:[%s977 + $0x78] sm:$0xff]
    %v994 = vld [vmem:[%s977 + $0x80] sm:$0xff]
    %v995 = vld [vmem:[%s977 + $0x88] sm:$0xff]
    %v996 = vld [vmem:[%s977 + $0x90] sm:$0xff]
    %v997 = vld [vmem:[%s977 + $0x98] sm:$0xff]
    %v998 = vld [vmem:[%s977 + $0xa0] sm:$0xff]
    %v999 = vld [vmem:[%s977 + $0xa8] sm:$0xff]
    %v1000 = vld [vmem:[%s977 + $0xb0] sm:$0xff]
    %v1001 = vld [vmem:[%s977 + $0xb8] sm:$0xff]
    %v1002 = vld [vmem:[%s977 + $0xc0] sm:$0xff]
    %v1003 = vld [vmem:[%s977 + $0xc8] sm:$0xff]
    %v1004 = vld [vmem:[%s977 + $0xd0] sm:$0xff]
    %v1005 = vld [vmem:[%s977 + $0xd8] sm:$0xff]
    %v1006 = vld [vmem:[%s977 + $0xe0] sm:$0xff]
    %v1007 = vld [vmem:[%s977 + $0xe8] sm:$0xff]
    %v1008 = vld [vmem:[%s977 + $0xf0] sm:$0xff]
    %v1009 = vld [vmem:[%s977 + $0xf8] sm:$0xff]
    %v1010 = vld [vmem:[%s977 + $0x100] sm:$0xff]
    %v1011 = vld [vmem:[%s977 + $0x108] sm:$0xff]
    %v1012 = vld [vmem:[%s977 + $0x110] sm:$0xff]
    %v1013 = vld [vmem:[%s977 + $0x118] sm:$0xff]
    %v1014 = vld [vmem:[%s977 + $0x120] sm:$0xff]
    %v1015 = vld [vmem:[%s977 + $0x128] sm:$0xff]
    %v1016 = vld [vmem:[%s977 + $0x130] sm:$0xff]
    %v1017 = vld [vmem:[%s977 + $0x138] sm:$0xff]
    %v1018 = vld [vmem:[%s977 + $0x140] sm:$0xff]
    %v1019 = vld [vmem:[%s977 + $0x148] sm:$0xff]
    %v1020 = vld [vmem:[%s977 + $0x150] sm:$0xff]
    %v1021 = vld [vmem:[%s977 + $0x158] sm:$0xff]
    %v1022 = vld [vmem:[%s977 + $0x160] sm:$0xff]
    %v1023 = vld [vmem:[%s977 + $0x168] sm:$0xff]
    %v1024 = vld [vmem:[%s977 + $0x170] sm:$0xff]
    %v1025 = vld [vmem:[%s977 + $0x178] sm:$0xff]
    %v1026 = vld [vmem:[%s977 + $0x180] sm:$0xff]
    %v1027 = vld [vmem:[%s977 + $0x188] sm:$0xff]
    %1031 = vrot.lane.b32.xlu0 %v974, 32
    %v1032 = vpop.permute.xlu0 %1031
    %1033 = vrot.lane.b32.xlu0 %v975, 32
    %v1034 = vpop.permute.xlu0 %1033
    %1035 = vrot.lane.b32.xlu0 %v976, 32
    %v1036 = vpop.permute.xlu0 %1035
    %vm1037 = vcmask 261120
    %v1038 = vsel %vm1037, %v1032, %v1034
    %v1039 = vsel %vm1037, %v1034, %v1036
    %v1091 = vunpack.c.l.b16 %v978
    %v1092 = vunpack.c.h.b16 %v978
    %v1093 = vunpack.c.l.b16 %v979
    %v1094 = vunpack.c.h.b16 %v979
    %v1095 = vunpack.c.l.b16 %v980
    %v1096 = vunpack.c.h.b16 %v980
    %v1097 = vunpack.c.l.b16 %v981
    %v1098 = vunpack.c.h.b16 %v981
    %v1099 = vunpack.c.l.b16 %v982
    %v1100 = vunpack.c.h.b16 %v982
    %v1101 = vunpack.c.l.b16 %v983
    %v1102 = vunpack.c.h.b16 %v983
    %v1103 = vunpack.c.l.b16 %v984
    %v1104 = vunpack.c.h.b16 %v984
    %v1105 = vunpack.c.l.b16 %v985
    %v1106 = vunpack.c.h.b16 %v985
    %v1107 = vunpack.c.l.b16 %v986
    %v1108 = vunpack.c.h.b16 %v986
    %v1109 = vunpack.c.l.b16 %v987
    %v1110 = vunpack.c.h.b16 %v987
    %v1111 = vunpack.c.l.b16 %v988
    %v1112 = vunpack.c.h.b16 %v988
    %v1113 = vunpack.c.l.b16 %v989
    %v1114 = vunpack.c.h.b16 %v989
    %v1115 = vunpack.c.l.b16 %v990
    %v1116 = vunpack.c.h.b16 %v990
    %v1117 = vunpack.c.l.b16 %v991
    %v1118 = vunpack.c.h.b16 %v991
    %v1119 = vunpack.c.l.b16 %v992
    %v1120 = vunpack.c.h.b16 %v992
    %v1121 = vunpack.c.l.b16 %v993
    %v1122 = vunpack.c.h.b16 %v993
    %v1123 = vunpack.c.l.b16 %v994
    %v1124 = vunpack.c.h.b16 %v994
    %v1125 = vunpack.c.l.b16 %v995
    %v1126 = vunpack.c.h.b16 %v995
    %v1127 = vunpack.c.l.b16 %v996
    %v1128 = vunpack.c.h.b16 %v996
    %v1129 = vunpack.c.l.b16 %v997
    %v1130 = vunpack.c.h.b16 %v997
    %v1131 = vunpack.c.l.b16 %v998
    %v1132 = vunpack.c.h.b16 %v998
    %v1133 = vunpack.c.l.b16 %v999
    %v1134 = vunpack.c.h.b16 %v999
    %v1135 = vunpack.c.l.b16 %v1000
    %v1136 = vunpack.c.h.b16 %v1000
    %v1137 = vunpack.c.l.b16 %v1001
    %v1138 = vunpack.c.h.b16 %v1001
    %v1139 = vunpack.c.l.b16 %v1002
    %v1140 = vunpack.c.h.b16 %v1002
    %v1141 = vunpack.c.l.b16 %v1003
    %v1142 = vunpack.c.h.b16 %v1003
    %v1143 = vunpack.c.l.b16 %v1004
    %v1144 = vunpack.c.h.b16 %v1004
    %v1145 = vunpack.c.l.b16 %v1005
    %v1146 = vunpack.c.h.b16 %v1005
    %v1147 = vunpack.c.l.b16 %v1006
    %v1148 = vunpack.c.h.b16 %v1006
    %v1149 = vunpack.c.l.b16 %v1007
    %v1150 = vunpack.c.h.b16 %v1007
    %v1151 = vunpack.c.l.b16 %v1008
    %v1152 = vunpack.c.h.b16 %v1008
    %v1153 = vunpack.c.l.b16 %v1009
    %v1154 = vunpack.c.h.b16 %v1009
    %v1155 = vunpack.c.l.b16 %v1010
    %v1156 = vunpack.c.h.b16 %v1010
    %v1157 = vunpack.c.l.b16 %v1011
    %v1158 = vunpack.c.h.b16 %v1011
    %v1159 = vunpack.c.l.b16 %v1012
    %v1160 = vunpack.c.h.b16 %v1012
    %v1161 = vunpack.c.l.b16 %v1013
    %v1162 = vunpack.c.h.b16 %v1013
    %v1163 = vunpack.c.l.b16 %v1014
    %v1164 = vunpack.c.h.b16 %v1014
    %v1165 = vunpack.c.l.b16 %v1015
    %v1166 = vunpack.c.h.b16 %v1015
    %v1167 = vunpack.c.l.b16 %v1016
    %v1168 = vunpack.c.h.b16 %v1016
    %v1169 = vunpack.c.l.b16 %v1017
    %v1170 = vunpack.c.h.b16 %v1017
    %v1171 = vunpack.c.l.b16 %v1018
    %v1172 = vunpack.c.h.b16 %v1018
    %v1173 = vunpack.c.l.b16 %v1019
    %v1174 = vunpack.c.h.b16 %v1019
    %v1175 = vunpack.c.l.b16 %v1020
    %v1176 = vunpack.c.h.b16 %v1020
    %v1177 = vunpack.c.l.b16 %v1021
    %v1178 = vunpack.c.h.b16 %v1021
    %v1179 = vunpack.c.l.b16 %v1022
    %v1180 = vunpack.c.h.b16 %v1022
    %v1181 = vunpack.c.l.b16 %v1023
    %v1182 = vunpack.c.h.b16 %v1023
    %v1183 = vunpack.c.l.b16 %v1024
    %v1184 = vunpack.c.h.b16 %v1024
    %v1185 = vunpack.c.l.b16 %v1025
    %v1186 = vunpack.c.h.b16 %v1025
    %v1187 = vunpack.c.l.b16 %v1026
    %v1188 = vunpack.c.h.b16 %v1026
    %v1189 = vunpack.c.l.b16 %v1027
    %v1190 = vunpack.c.h.b16 %v1027
    %v1191 = vpack.c.b16 %v1095, %v1091
    %v1192 = vpack.c.b16 %v1096, %v1092
    %v1193 = vpack.c.b16 %v1097, %v1093
    %v1194 = vpack.c.b16 %v1098, %v1094
    %v1195 = vpack.c.b16 %v1103, %v1099
    %v1196 = vpack.c.b16 %v1104, %v1100
    %v1197 = vpack.c.b16 %v1105, %v1101
    %v1198 = vpack.c.b16 %v1106, %v1102
    %v1199 = vpack.c.b16 %v1111, %v1107
    %v1200 = vpack.c.b16 %v1112, %v1108
    %v1201 = vpack.c.b16 %v1113, %v1109
    %v1202 = vpack.c.b16 %v1114, %v1110
    %v1203 = vpack.c.b16 %v1119, %v1115
    %v1204 = vpack.c.b16 %v1120, %v1116
    %v1205 = vpack.c.b16 %v1121, %v1117
    %v1206 = vpack.c.b16 %v1122, %v1118
    %v1207 = vpack.c.b16 %v1127, %v1123
    %v1208 = vpack.c.b16 %v1128, %v1124
    %v1209 = vpack.c.b16 %v1129, %v1125
    %v1210 = vpack.c.b16 %v1130, %v1126
    %v1211 = vpack.c.b16 %v1135, %v1131
    %v1212 = vpack.c.b16 %v1136, %v1132
    %v1213 = vpack.c.b16 %v1137, %v1133
    %v1214 = vpack.c.b16 %v1138, %v1134
    %v1215 = vpack.c.b16 %v1143, %v1139
    %v1216 = vpack.c.b16 %v1144, %v1140
    %v1217 = vpack.c.b16 %v1145, %v1141
    %v1218 = vpack.c.b16 %v1146, %v1142
    %v1219 = vpack.c.b16 %v1151, %v1147
    %v1220 = vpack.c.b16 %v1152, %v1148
    %v1221 = vpack.c.b16 %v1153, %v1149
    %v1222 = vpack.c.b16 %v1154, %v1150
    %v1223 = vpack.c.b16 %v1159, %v1155
    %v1224 = vpack.c.b16 %v1160, %v1156
    %v1225 = vpack.c.b16 %v1161, %v1157
    %v1226 = vpack.c.b16 %v1162, %v1158
    %v1227 = vpack.c.b16 %v1167, %v1163
    %v1228 = vpack.c.b16 %v1168, %v1164
    %v1229 = vpack.c.b16 %v1169, %v1165
    %v1230 = vpack.c.b16 %v1170, %v1166
    %v1231 = vpack.c.b16 %v1175, %v1171
    %v1232 = vpack.c.b16 %v1176, %v1172
    %v1233 = vpack.c.b16 %v1177, %v1173
    %v1234 = vpack.c.b16 %v1178, %v1174
    %v1235 = vpack.c.b16 %v1183, %v1179
    %v1236 = vpack.c.b16 %v1184, %v1180
    %v1237 = vpack.c.b16 %v1185, %v1181
    %v1238 = vpack.c.b16 %v1186, %v1182
    %v1239 = vpack.c.b16 %v1187, %v1187
    %v1240 = vpack.c.b16 %v1188, %v1188
    %v1241 = vpack.c.b16 %v1189, %v1189
    %v1242 = vpack.c.b16 %v1190, %v1190
    %v1292 = vsel %vm441, %v1039, 0
    %v1295 = vsel %vm445, %v1239, 0
    %v1298 = vsel %vm445, %v1240, 0
    %v1301 = vsel %vm445, %v1241, 0
    %v1304 = vsel %vm445, %v1242, 0
    %1306 = vmatprep.subr.bf16.mxu0 %v1192
    %1307 = vmatpush1.bf16.msra.mxu0 %v1191
    %1308 = vmatprep.subr.bf16.mxu0 %v1196
    %1309 = vmatpush1.bf16.msra.mxu0 %v1195
    %1310 = vmatprep.subr.bf16.mxu0 %v1200
    %1311 = vmatpush1.bf16.msra.mxu0 %v1199
    %1312 = vmatprep.subr.bf16.mxu0 %v1204
    %1313 = vmatpush1.bf16.msra.mxu0 %v1203
    %1314 = vmatprep.subr.bf16.mxu0 %v1208
    %1315 = vmatpush1.bf16.msra.mxu0 %v1207
    %1316 = vmatprep.subr.bf16.mxu0 %v1212
    %1317 = vmatpush1.bf16.msra.mxu0 %v1211
    %1318 = vmatprep.subr.bf16.mxu0 %v1216
    %1319 = vmatpush1.bf16.msra.mxu0 %v1215
    %1320 = vmatprep.subr.bf16.mxu0 %v1220
    %1321 = vmatpush1.bf16.msra.mxu0 %v1219
    %1322 = vmatprep.subr.bf16.mxu0 %v1224
    %1323 = vmatpush1.bf16.msra.mxu0 %v1223
    %1324 = vmatprep.subr.bf16.mxu0 %v1228
    %1325 = vmatpush1.bf16.msra.mxu0 %v1227
    %1326 = vmatprep.subr.bf16.mxu0 %v1232
    %1327 = vmatpush1.bf16.msra.mxu0 %v1231
    %1328 = vmatprep.subr.bf16.mxu0 %v1236
    %1329 = vmatpush1.bf16.msra.mxu0 %v1235
    %1330 = vmatprep.subr.bf16.mxu0 %v1298
    %1331 = vmatpush1.bf16.msra.mxu0 %v1295
    %1332 = vmatprep.subr.bf16.mxu0 0
    %1333 = vmatpush1.bf16.msra.mxu0 0
    %1334 = vmatprep.subr.bf16.mxu0 0
    %1335 = vmatpush1.bf16.msra.mxu0 0
    %1336 = vmatprep.subr.bf16.mxu0 0
    %1337 = vmatpush1.bf16.msra.mxu0 0
    %1338 = vmatprep.mubr.bf16.mxu0 %v1292
    %1339 = vmatmul.mubr.bf16.gmra.mrb[0].mxu0 %v1038
    %v1340 = vpop.f32.mrb[0].mxu0
    %v1341 = vadd.f32 %v174, %v1340
    %v1342 = vpop.f32.mrb[0].mxu0
    %v1343 = vadd.f32 %v178, %v1342
    %v1344 = vpop.f32.mrb[0].mxu0
    %v1345 = vpop.f32.mrb[0].mxu0
    %1346 = vdwg.mxu0
    %1347 = vmatprep.subr.bf16.mxu0 %v1194
    %1348 = vmatpush1.bf16.msra.mxu0 %v1193
    %1349 = vmatprep.subr.bf16.mxu0 %v1198
    %1350 = vmatpush1.bf16.msra.mxu0 %v1197
    %1351 = vmatprep.subr.bf16.mxu0 %v1202
    %1352 = vmatpush1.bf16.msra.mxu0 %v1201
    %1353 = vmatprep.subr.bf16.mxu0 %v1206
    %1354 = vmatpush1.bf16.msra.mxu0 %v1205
    %1355 = vmatprep.subr.bf16.mxu0 %v1210
    %1356 = vmatpush1.bf16.msra.mxu0 %v1209
    %1357 = vmatprep.subr.bf16.mxu0 %v1214
    %1358 = vmatpush1.bf16.msra.mxu0 %v1213
    %1359 = vmatprep.subr.bf16.mxu0 %v1218
    %1360 = vmatpush1.bf16.msra.mxu0 %v1217
    %1361 = vmatprep.subr.bf16.mxu0 %v1222
    %1362 = vmatpush1.bf16.msra.mxu0 %v1221
    %1363 = vmatprep.subr.bf16.mxu0 %v1226
    %1364 = vmatpush1.bf16.msra.mxu0 %v1225
    %1365 = vmatprep.subr.bf16.mxu0 %v1230
    %1366 = vmatpush1.bf16.msra.mxu0 %v1229
    %1367 = vmatprep.subr.bf16.mxu0 %v1234
    %1368 = vmatpush1.bf16.msra.mxu0 %v1233
    %1369 = vmatprep.subr.bf16.mxu0 %v1238
    %1370 = vmatpush1.bf16.msra.mxu0 %v1237
    %1371 = vmatprep.subr.bf16.mxu0 %v1304
    %1372 = vmatpush1.bf16.msra.mxu0 %v1301
    %1373 = vmatprep.subr.bf16.mxu0 0
    %1374 = vmatpush1.bf16.msra.mxu0 0
    %1375 = vmatprep.subr.bf16.mxu0 0
    %1376 = vmatpush1.bf16.msra.mxu0 0
    %1377 = vmatprep.subr.bf16.mxu0 0
    %1378 = vmatpush1.bf16.msra.mxu0 0
    %1379 = vmatprep.mubr.bf16.mxu0 %v1292
    %1380 = vmatmul.mubr.bf16.gmra.mrb[0].mxu0 %v1038
    %v1381 = vpop.f32.mrb[0].mxu0
    %v1382 = vadd.f32 %v182, %v1381
    %v1383 = vpop.f32.mrb[0].mxu0
    %v1384 = vadd.f32 %v186, %v1383
    %v1385 = vpop.f32.mrb[0].mxu0
    %v1386 = vpop.f32.mrb[0].mxu0
    %1387 = vdwg.mxu0
    %v1388 = vmax.f32 %v1341, 0.0
    %v1389 = vmax.f32 %v1343, 0.0
    %v1390 = vmax.f32 %v1382, 0.0
    %v1391 = vmax.f32 %v1384, 0.0
    %v1392 = vmax.f32 %v1388, %v1389
    %v1393 = vmax.f32 %v1390, %v1391
    %v1394 = vmax.f32 %v1392, %v1393
    %v1395 = vld [vmem:[#allocation2 + $0x10] sm:$0xff]
    %v1396 = vld [vmem:[#allocation2 + $0x18] sm:$0xff]
    %v1397 = vld [vmem:[#allocation2 + $0x20] sm:$0xff]
    %v1398 = vpack.c.bf16 %v1395, %v1395
    %v1399 = vpack.c.bf16 %v1396, %v1396
    %v1400 = vpack.c.bf16 %v1397, %v1397
    %s1401 = scalar_lea.vmem [#allocation5], 1200
    %v1402 = vld [vmem:[%s1401] sm:$0xff]
    %v1403 = vld [vmem:[%s1401 + $0x8] sm:$0xff]
    %v1404 = vld [vmem:[%s1401 + $0x10] sm:$0xff]
    %v1405 = vld [vmem:[%s1401 + $0x18] sm:$0xff]
    %v1406 = vld [vmem:[%s1401 + $0x20] sm:$0xff]
    %v1407 = vld [vmem:[%s1401 + $0x28] sm:$0xff]
    %v1408 = vld [vmem:[%s1401 + $0x30] sm:$0xff]
    %v1409 = vld [vmem:[%s1401 + $0x38] sm:$0xff]
    %v1410 = vld [vmem:[%s1401 + $0x40] sm:$0xff]
    %v1411 = vld [vmem:[%s1401 + $0x48] sm:$0xff]
    %v1412 = vld [vmem:[%s1401 + $0x50] sm:$0xff]
    %v1413 = vld [vmem:[%s1401 + $0x58] sm:$0xff]
    %v1414 = vld [vmem:[%s1401 + $0x60] sm:$0xff]
    %v1415 = vld [vmem:[%s1401 + $0x68] sm:$0xff]
    %v1416 = vld [vmem:[%s1401 + $0x70] sm:$0xff]
    %v1417 = vld [vmem:[%s1401 + $0x78] sm:$0xff]
    %v1418 = vld [vmem:[%s1401 + $0x80] sm:$0xff]
    %v1419 = vld [vmem:[%s1401 + $0x88] sm:$0xff]
    %v1420 = vld [vmem:[%s1401 + $0x90] sm:$0xff]
    %v1421 = vld [vmem:[%s1401 + $0x98] sm:$0xff]
    %v1422 = vld [vmem:[%s1401 + $0xa0] sm:$0xff]
    %v1423 = vld [vmem:[%s1401 + $0xa8] sm:$0xff]
    %v1424 = vld [vmem:[%s1401 + $0xb0] sm:$0xff]
    %v1425 = vld [vmem:[%s1401 + $0xb8] sm:$0xff]
    %v1426 = vld [vmem:[%s1401 + $0xc0] sm:$0xff]
    %v1427 = vld [vmem:[%s1401 + $0xc8] sm:$0xff]
    %v1428 = vld [vmem:[%s1401 + $0xd0] sm:$0xff]
    %v1429 = vld [vmem:[%s1401 + $0xd8] sm:$0xff]
    %v1430 = vld [vmem:[%s1401 + $0xe0] sm:$0xff]
    %v1431 = vld [vmem:[%s1401 + $0xe8] sm:$0xff]
    %v1432 = vld [vmem:[%s1401 + $0xf0] sm:$0xff]
    %v1433 = vld [vmem:[%s1401 + $0xf8] sm:$0xff]
    %v1434 = vld [vmem:[%s1401 + $0x100] sm:$0xff]
    %v1435 = vld [vmem:[%s1401 + $0x108] sm:$0xff]
    %v1436 = vld [vmem:[%s1401 + $0x110] sm:$0xff]
    %v1437 = vld [vmem:[%s1401 + $0x118] sm:$0xff]
    %v1438 = vld [vmem:[%s1401 + $0x120] sm:$0xff]
    %v1439 = vld [vmem:[%s1401 + $0x128] sm:$0xff]
    %v1440 = vld [vmem:[%s1401 + $0x130] sm:$0xff]
    %v1441 = vld [vmem:[%s1401 + $0x138] sm:$0xff]
    %v1442 = vld [vmem:[%s1401 + $0x140] sm:$0xff]
    %v1443 = vld [vmem:[%s1401 + $0x148] sm:$0xff]
    %v1444 = vld [vmem:[%s1401 + $0x150] sm:$0xff]
    %v1445 = vld [vmem:[%s1401 + $0x158] sm:$0xff]
    %v1446 = vld [vmem:[%s1401 + $0x160] sm:$0xff]
    %v1447 = vld [vmem:[%s1401 + $0x168] sm:$0xff]
    %v1448 = vld [vmem:[%s1401 + $0x170] sm:$0xff]
    %v1449 = vld [vmem:[%s1401 + $0x178] sm:$0xff]
    %v1450 = vld [vmem:[%s1401 + $0x180] sm:$0xff]
    %v1451 = vld [vmem:[%s1401 + $0x188] sm:$0xff]
    %1455 = vrot.lane.b32.xlu0 %v1398, 48
    %v1456 = vpop.permute.xlu0 %1455
    %1457 = vrot.lane.b32.xlu0 %v1399, 48
    %v1458 = vpop.permute.xlu0 %1457
    %1459 = vrot.lane.b32.xlu0 %v1400, 48
    %v1460 = vpop.permute.xlu0 %1459
    %vm1461 = vcmask 392192
    %v1462 = vsel %vm1461, %v1456, %v1458
    %v1463 = vsel %vm1461, %v1458, %v1460
    %v1515 = vunpack.c.l.b16 %v1402
    %v1516 = vunpack.c.h.b16 %v1402
    %v1517 = vunpack.c.l.b16 %v1403
    %v1518 = vunpack.c.h.b16 %v1403
    %v1519 = vunpack.c.l.b16 %v1404
    %v1520 = vunpack.c.h.b16 %v1404
    %v1521 = vunpack.c.l.b16 %v1405
    %v1522 = vunpack.c.h.b16 %v1405
    %v1523 = vunpack.c.l.b16 %v1406
    %v1524 = vunpack.c.h.b16 %v1406
    %v1525 = vunpack.c.l.b16 %v1407
    %v1526 = vunpack.c.h.b16 %v1407
    %v1527 = vunpack.c.l.b16 %v1408
    %v1528 = vunpack.c.h.b16 %v1408
    %v1529 = vunpack.c.l.b16 %v1409
    %v1530 = vunpack.c.h.b16 %v1409
    %v1531 = vunpack.c.l.b16 %v1410
    %v1532 = vunpack.c.h.b16 %v1410
    %v1533 = vunpack.c.l.b16 %v1411
    %v1534 = vunpack.c.h.b16 %v1411
    %v1535 = vunpack.c.l.b16 %v1412
    %v1536 = vunpack.c.h.b16 %v1412
    %v1537 = vunpack.c.l.b16 %v1413
    %v1538 = vunpack.c.h.b16 %v1413
    %v1539 = vunpack.c.l.b16 %v1414
    %v1540 = vunpack.c.h.b16 %v1414
    %v1541 = vunpack.c.l.b16 %v1415
    %v1542 = vunpack.c.h.b16 %v1415
    %v1543 = vunpack.c.l.b16 %v1416
    %v1544 = vunpack.c.h.b16 %v1416
    %v1545 = vunpack.c.l.b16 %v1417
    %v1546 = vunpack.c.h.b16 %v1417
    %v1547 = vunpack.c.l.b16 %v1418
    %v1548 = vunpack.c.h.b16 %v1418
    %v1549 = vunpack.c.l.b16 %v1419
    %v1550 = vunpack.c.h.b16 %v1419
    %v1551 = vunpack.c.l.b16 %v1420
    %v1552 = vunpack.c.h.b16 %v1420
    %v1553 = vunpack.c.l.b16 %v1421
    %v1554 = vunpack.c.h.b16 %v1421
    %v1555 = vunpack.c.l.b16 %v1422
    %v1556 = vunpack.c.h.b16 %v1422
    %v1557 = vunpack.c.l.b16 %v1423
    %v1558 = vunpack.c.h.b16 %v1423
    %v1559 = vunpack.c.l.b16 %v1424
    %v1560 = vunpack.c.h.b16 %v1424
    %v1561 = vunpack.c.l.b16 %v1425
    %v1562 = vunpack.c.h.b16 %v1425
    %v1563 = vunpack.c.l.b16 %v1426
    %v1564 = vunpack.c.h.b16 %v1426
    %v1565 = vunpack.c.l.b16 %v1427
    %v1566 = vunpack.c.h.b16 %v1427
    %v1567 = vunpack.c.l.b16 %v1428
    %v1568 = vunpack.c.h.b16 %v1428
    %v1569 = vunpack.c.l.b16 %v1429
    %v1570 = vunpack.c.h.b16 %v1429
    %v1571 = vunpack.c.l.b16 %v1430
    %v1572 = vunpack.c.h.b16 %v1430
    %v1573 = vunpack.c.l.b16 %v1431
    %v1574 = vunpack.c.h.b16 %v1431
    %v1575 = vunpack.c.l.b16 %v1432
    %v1576 = vunpack.c.h.b16 %v1432
    %v1577 = vunpack.c.l.b16 %v1433
    %v1578 = vunpack.c.h.b16 %v1433
    %v1579 = vunpack.c.l.b16 %v1434
    %v1580 = vunpack.c.h.b16 %v1434
    %v1581 = vunpack.c.l.b16 %v1435
    %v1582 = vunpack.c.h.b16 %v1435
    %v1583 = vunpack.c.l.b16 %v1436
    %v1584 = vunpack.c.h.b16 %v1436
    %v1585 = vunpack.c.l.b16 %v1437
    %v1586 = vunpack.c.h.b16 %v1437
    %v1587 = vunpack.c.l.b16 %v1438
    %v1588 = vunpack.c.h.b16 %v1438
    %v1589 = vunpack.c.l.b16 %v1439
    %v1590 = vunpack.c.h.b16 %v1439
    %v1591 = vunpack.c.l.b16 %v1440
    %v1592 = vunpack.c.h.b16 %v1440
    %v1593 = vunpack.c.l.b16 %v1441
    %v1594 = vunpack.c.h.b16 %v1441
    %v1595 = vunpack.c.l.b16 %v1442
    %v1596 = vunpack.c.h.b16 %v1442
    %v1597 = vunpack.c.l.b16 %v1443
    %v1598 = vunpack.c.h.b16 %v1443
    %v1599 = vunpack.c.l.b16 %v1444
    %v1600 = vunpack.c.h.b16 %v1444
    %v1601 = vunpack.c.l.b16 %v1445
    %v1602 = vunpack.c.h.b16 %v1445
    %v1603 = vunpack.c.l.b16 %v1446
    %v1604 = vunpack.c.h.b16 %v1446
    %v1605 = vunpack.c.l.b16 %v1447
    %v1606 = vunpack.c.h.b16 %v1447
    %v1607 = vunpack.c.l.b16 %v1448
    %v1608 = vunpack.c.h.b16 %v1448
    %v1609 = vunpack.c.l.b16 %v1449
    %v1610 = vunpack.c.h.b16 %v1449
    %v1611 = vunpack.c.l.b16 %v1450
    %v1612 = vunpack.c.h.b16 %v1450
    %v1613 = vunpack.c.l.b16 %v1451
    %v1614 = vunpack.c.h.b16 %v1451
    %v1615 = vpack.c.b16 %v1519, %v1515
    %v1616 = vpack.c.b16 %v1520, %v1516
    %v1617 = vpack.c.b16 %v1521, %v1517
    %v1618 = vpack.c.b16 %v1522, %v1518
    %v1619 = vpack.c.b16 %v1527, %v1523
    %v1620 = vpack.c.b16 %v1528, %v1524
    %v1621 = vpack.c.b16 %v1529, %v1525
    %v1622 = vpack.c.b16 %v1530, %v1526
    %v1623 = vpack.c.b16 %v1535, %v1531
    %v1624 = vpack.c.b16 %v1536, %v1532
    %v1625 = vpack.c.b16 %v1537, %v1533
    %v1626 = vpack.c.b16 %v1538, %v1534
    %v1627 = vpack.c.b16 %v1543, %v1539
    %v1628 = vpack.c.b16 %v1544, %v1540
    %v1629 = vpack.c.b16 %v1545, %v1541
    %v1630 = vpack.c.b16 %v1546, %v1542
    %v1631 = vpack.c.b16 %v1551, %v1547
    %v1632 = vpack.c.b16 %v1552, %v1548
    %v1633 = vpack.c.b16 %v1553, %v1549
    %v1634 = vpack.c.b16 %v1554, %v1550
    %v1635 = vpack.c.b16 %v1559, %v1555
    %v1636 = vpack.c.b16 %v1560, %v1556
    %v1637 = vpack.c.b16 %v1561, %v1557
    %v1638 = vpack.c.b16 %v1562, %v1558
    %v1639 = vpack.c.b16 %v1567, %v1563
    %v1640 = vpack.c.b16 %v1568, %v1564
    %v1641 = vpack.c.b16 %v1569, %v1565
    %v1642 = vpack.c.b16 %v1570, %v1566
    %v1643 = vpack.c.b16 %v1575, %v1571
    %v1644 = vpack.c.b16 %v1576, %v1572
    %v1645 = vpack.c.b16 %v1577, %v1573
    %v1646 = vpack.c.b16 %v1578, %v1574
    %v1647 = vpack.c.b16 %v1583, %v1579
    %v1648 = vpack.c.b16 %v1584, %v1580
    %v1649 = vpack.c.b16 %v1585, %v1581
    %v1650 = vpack.c.b16 %v1586, %v1582
    %v1651 = vpack.c.b16 %v1591, %v1587
    %v1652 = vpack.c.b16 %v1592, %v1588
    %v1653 = vpack.c.b16 %v1593, %v1589
    %v1654 = vpack.c.b16 %v1594, %v1590
    %v1655 = vpack.c.b16 %v1599, %v1595
    %v1656 = vpack.c.b16 %v1600, %v1596
    %v1657 = vpack.c.b16 %v1601, %v1597
    %v1658 = vpack.c.b16 %v1602, %v1598
    %v1659 = vpack.c.b16 %v1607, %v1603
    %v1660 = vpack.c.b16 %v1608, %v1604
    %v1661 = vpack.c.b16 %v1609, %v1605
    %v1662 = vpack.c.b16 %v1610, %v1606
    %v1663 = vpack.c.b16 %v1611, %v1611
    %v1664 = vpack.c.b16 %v1612, %v1612
    %v1665 = vpack.c.b16 %v1613, %v1613
    %v1666 = vpack.c.b16 %v1614, %v1614
    %v1716 = vsel %vm441, %v1463, 0
    %v1719 = vsel %vm445, %v1663, 0
    %v1722 = vsel %vm445, %v1664, 0
    %v1725 = vsel %vm445, %v1665, 0
    %v1728 = vsel %vm445, %v1666, 0
    %1730 = vmatprep.subr.bf16.mxu0 %v1616
    %1731 = vmatpush1.bf16.msra.mxu0 %v1615
    %1732 = vmatprep.subr.bf16.mxu0 %v1620
    %1733 = vmatpush1.bf16.msra.mxu0 %v1619
    %1734 = vmatprep.subr.bf16.mxu0 %v1624
    %1735 = vmatpush1.bf16.msra.mxu0 %v1623
    %1736 = vmatprep.subr.bf16.mxu0 %v1628
    %1737 = vmatpush1.bf16.msra.mxu0 %v1627
    %1738 = vmatprep.subr.bf16.mxu0 %v1632
    %1739 = vmatpush1.bf16.msra.mxu0 %v1631
    %1740 = vmatprep.subr.bf16.mxu0 %v1636
    %1741 = vmatpush1.bf16.msra.mxu0 %v1635
    %1742 = vmatprep.subr.bf16.mxu0 %v1640
    %1743 = vmatpush1.bf16.msra.mxu0 %v1639
    %1744 = vmatprep.subr.bf16.mxu0 %v1644
    %1745 = vmatpush1.bf16.msra.mxu0 %v1643
    %1746 = vmatprep.subr.bf16.mxu0 %v1648
    %1747 = vmatpush1.bf16.msra.mxu0 %v1647
    %1748 = vmatprep.subr.bf16.mxu0 %v1652
    %1749 = vmatpush1.bf16.msra.mxu0 %v1651
    %1750 = vmatprep.subr.bf16.mxu0 %v1656
    %1751 = vmatpush1.bf16.msra.mxu0 %v1655
    %1752 = vmatprep.subr.bf16.mxu0 %v1660
    %1753 = vmatpush1.bf16.msra.mxu0 %v1659
    %1754 = vmatprep.subr.bf16.mxu0 %v1722
    %1755 = vmatpush1.bf16.msra.mxu0 %v1719
    %1756 = vmatprep.subr.bf16.mxu0 0
    %1757 = vmatpush1.bf16.msra.mxu0 0
    %1758 = vmatprep.subr.bf16.mxu0 0
    %1759 = vmatpush1.bf16.msra.mxu0 0
    %1760 = vmatprep.subr.bf16.mxu0 0
    %1761 = vmatpush1.bf16.msra.mxu0 0
    %1762 = vmatprep.mubr.bf16.mxu0 %v1716
    %1763 = vmatmul.mubr.bf16.gmra.mrb[0].mxu0 %v1462
    %v1764 = vpop.f32.mrb[0].mxu0
    %v1765 = vadd.f32 %v174, %v1764
    %v1766 = vpop.f32.mrb[0].mxu0
    %v1767 = vadd.f32 %v178, %v1766
    %v1768 = vpop.f32.mrb[0].mxu0
    %v1769 = vpop.f32.mrb[0].mxu0
    %1770 = vdwg.mxu0
    %1771 = vmatprep.subr.bf16.mxu0 %v1618
    %1772 = vmatpush1.bf16.msra.mxu0 %v1617
    %1773 = vmatprep.subr.bf16.mxu0 %v1622
    %1774 = vmatpush1.bf16.msra.mxu0 %v1621
    %1775 = vmatprep.subr.bf16.mxu0 %v1626
    %1776 = vmatpush1.bf16.msra.mxu0 %v1625
    %1777 = vmatprep.subr.bf16.mxu0 %v1630
    %1778 = vmatpush1.bf16.msra.mxu0 %v1629
    %1779 = vmatprep.subr.bf16.mxu0 %v1634
    %1780 = vmatpush1.bf16.msra.mxu0 %v1633
    %1781 = vmatprep.subr.bf16.mxu0 %v1638
    %1782 = vmatpush1.bf16.msra.mxu0 %v1637
    %1783 = vmatprep.subr.bf16.mxu0 %v1642
    %1784 = vmatpush1.bf16.msra.mxu0 %v1641
    %1785 = vmatprep.subr.bf16.mxu0 %v1646
    %1786 = vmatpush1.bf16.msra.mxu0 %v1645
    %1787 = vmatprep.subr.bf16.mxu0 %v1650
    %1788 = vmatpush1.bf16.msra.mxu0 %v1649
    %1789 = vmatprep.subr.bf16.mxu0 %v1654
    %1790 = vmatpush1.bf16.msra.mxu0 %v1653
    %1791 = vmatprep.subr.bf16.mxu0 %v1658
    %1792 = vmatpush1.bf16.msra.mxu0 %v1657
    %1793 = vmatprep.subr.bf16.mxu0 %v1662
    %1794 = vmatpush1.bf16.msra.mxu0 %v1661
    %1795 = vmatprep.subr.bf16.mxu0 %v1728
    %1796 = vmatpush1.bf16.msra.mxu0 %v1725
    %1797 = vmatprep.subr.bf16.mxu0 0
    %1798 = vmatpush1.bf16.msra.mxu0 0
    %1799 = vmatprep.subr.bf16.mxu0 0
    %1800 = vmatpush1.bf16.msra.mxu0 0
    %1801 = vmatprep.subr.bf16.mxu0 0
    %1802 = vmatpush1.bf16.msra.mxu0 0
    %1803 = vmatprep.mubr.bf16.mxu0 %v1716
    %1804 = vmatmul.mubr.bf16.gmra.mrb[0].mxu0 %v1462
    %v1805 = vpop.f32.mrb[0].mxu0
    %v1806 = vadd.f32 %v182, %v1805
    %v1807 = vpop.f32.mrb[0].mxu0
    %v1808 = vadd.f32 %v186, %v1807
    %v1809 = vpop.f32.mrb[0].mxu0
    %v1810 = vpop.f32.mrb[0].mxu0
    %1811 = vdwg.mxu0
    %v1812 = vmax.f32 %v1765, 0.0
    %v1813 = vmax.f32 %v1767, 0.0
    %v1814 = vmax.f32 %v1806, 0.0
    %v1815 = vmax.f32 %v1808, 0.0
    %v1816 = vmax.f32 %v1812, %v1813
    %v1817 = vmax.f32 %v1814, %v1815
    %v1818 = vmax.f32 %v1816, %v1817
    %v1819 = vld [vmem:[#allocation2 + $0x18] sm:$0xff]
    %v1820 = vld [vmem:[#allocation2 + $0x20] sm:$0xff]
    %v1821 = vld [vmem:[#allocation2 + $0x28] sm:$0xff]
    %v1822 = vpack.c.bf16 %v1819, %v1819
    %v1823 = vpack.c.bf16 %v1820, %v1820
    %v1824 = vpack.c.bf16 %v1821, %v1821
    %s1825 = scalar_lea.vmem [#allocation5], 1600
    %v1826 = vld [vmem:[%s1825] sm:$0xff]
    %v1827 = vld [vmem:[%s1825 + $0x8] sm:$0xff]
    %v1828 = vld [vmem:[%s1825 + $0x10] sm:$0xff]
    %v1829 = vld [vmem:[%s1825 + $0x18] sm:$0xff]
    %v1830 = vld [vmem:[%s1825 + $0x20] sm:$0xff]
    %v1831 = vld [vmem:[%s1825 + $0x28] sm:$0xff]
    %v1832 = vld [vmem:[%s1825 + $0x30] sm:$0xff]
    %v1833 = vld [vmem:[%s1825 + $0x38] sm:$0xff]
    %v1834 = vld [vmem:[%s1825 + $0x40] sm:$0xff]
    %v1835 = vld [vmem:[%s1825 + $0x48] sm:$0xff]
    %v1836 = vld [vmem:[%s1825 + $0x50] sm:$0xff]
    %v1837 = vld [vmem:[%s1825 + $0x58] sm:$0xff]
    %v1838 = vld [vmem:[%s1825 + $0x60] sm:$0xff]
    %v1839 = vld [vmem:[%s1825 + $0x68] sm:$0xff]
    %v1840 = vld [vmem:[%s1825 + $0x70] sm:$0xff]
    %v1841 = vld [vmem:[%s1825 + $0x78] sm:$0xff]
    %v1842 = vld [vmem:[%s1825 + $0x80] sm:$0xff]
    %v1843 = vld [vmem:[%s1825 + $0x88] sm:$0xff]
    %v1844 = vld [vmem:[%s1825 + $0x90] sm:$0xff]
    %v1845 = vld [vmem:[%s1825 + $0x98] sm:$0xff]
    %v1846 = vld [vmem:[%s1825 + $0xa0] sm:$0xff]
    %v1847 = vld [vmem:[%s1825 + $0xa8] sm:$0xff]
    %v1848 = vld [vmem:[%s1825 + $0xb0] sm:$0xff]
    %v1849 = vld [vmem:[%s1825 + $0xb8] sm:$0xff]
    %v1850 = vld [vmem:[%s1825 + $0xc0] sm:$0xff]
    %v1851 = vld [vmem:[%s1825 + $0xc8] sm:$0xff]
    %v1852 = vld [vmem:[%s1825 + $0xd0] sm:$0xff]
    %v1853 = vld [vmem:[%s1825 + $0xd8] sm:$0xff]
    %v1854 = vld [vmem:[%s1825 + $0xe0] sm:$0xff]
    %v1855 = vld [vmem:[%s1825 + $0xe8] sm:$0xff]
    %v1856 = vld [vmem:[%s1825 + $0xf0] sm:$0xff]
    %v1857 = vld [vmem:[%s1825 + $0xf8] sm:$0xff]
    %v1858 = vld [vmem:[%s1825 + $0x100] sm:$0xff]
    %v1859 = vld [vmem:[%s1825 + $0x108] sm:$0xff]
    %v1860 = vld [vmem:[%s1825 + $0x110] sm:$0xff]
    %v1861 = vld [vmem:[%s1825 + $0x118] sm:$0xff]
    %v1862 = vld [vmem:[%s1825 + $0x120] sm:$0xff]
    %v1863 = vld [vmem:[%s1825 + $0x128] sm:$0xff]
    %v1864 = vld [vmem:[%s1825 + $0x130] sm:$0xff]
    %v1865 = vld [vmem:[%s1825 + $0x138] sm:$0xff]
    %v1866 = vld [vmem:[%s1825 + $0x140] sm:$0xff]
    %v1867 = vld [vmem:[%s1825 + $0x148] sm:$0xff]
    %v1868 = vld [vmem:[%s1825 + $0x150] sm:$0xff]
    %v1869 = vld [vmem:[%s1825 + $0x158] sm:$0xff]
    %v1870 = vld [vmem:[%s1825 + $0x160] sm:$0xff]
    %v1871 = vld [vmem:[%s1825 + $0x168] sm:$0xff]
    %v1872 = vld [vmem:[%s1825 + $0x170] sm:$0xff]
    %v1873 = vld [vmem:[%s1825 + $0x178] sm:$0xff]
    %v1874 = vld [vmem:[%s1825 + $0x180] sm:$0xff]
    %v1875 = vld [vmem:[%s1825 + $0x188] sm:$0xff]
    %1879 = vrot.lane.b32.xlu0 %v1822, 64
    %v1880 = vpop.permute.xlu0 %1879
    %1881 = vrot.lane.b32.xlu0 %v1823, 64
    %v1882 = vpop.permute.xlu0 %1881
    %1883 = vrot.lane.b32.xlu0 %v1824, 64
    %v1884 = vpop.permute.xlu0 %1883
    %vm1885 = vcmask 523264
    %v1886 = vsel %vm1885, %v1880, %v1882
    %v1887 = vsel %vm1885, %v1882, %v1884
    %v1939 = vunpack.c.l.b16 %v1826
    %v1940 = vunpack.c.h.b16 %v1826
    %v1941 = vunpack.c.l.b16 %v1827
    %v1942 = vunpack.c.h.b16 %v1827
    %v1943 = vunpack.c.l.b16 %v1828
    %v1944 = vunpack.c.h.b16 %v1828
    %v1945 = vunpack.c.l.b16 %v1829
    %v1946 = vunpack.c.h.b16 %v1829
    %v1947 = vunpack.c.l.b16 %v1830
    %v1948 = vunpack.c.h.b16 %v1830
    %v1949 = vunpack.c.l.b16 %v1831
    %v1950 = vunpack.c.h.b16 %v1831
    %v1951 = vunpack.c.l.b16 %v1832
    %v1952 = vunpack.c.h.b16 %v1832
    %v1953 = vunpack.c.l.b16 %v1833
    %v1954 = vunpack.c.h.b16 %v1833
    %v1955 = vunpack.c.l.b16 %v1834
    %v1956 = vunpack.c.h.b16 %v1834
    %v1957 = vunpack.c.l.b16 %v1835
    %v1958 = vunpack.c.h.b16 %v1835
    %v1959 = vunpack.c.l.b16 %v1836
    %v1960 = vunpack.c.h.b16 %v1836
    %v1961 = vunpack.c.l.b16 %v1837
    %v1962 = vunpack.c.h.b16 %v1837
    %v1963 = vunpack.c.l.b16 %v1838
    %v1964 = vunpack.c.h.b16 %v1838
    %v1965 = vunpack.c.l.b16 %v1839
    %v1966 = vunpack.c.h.b16 %v1839
    %v1967 = vunpack.c.l.b16 %v1840
    %v1968 = vunpack.c.h.b16 %v1840
    %v1969 = vunpack.c.l.b16 %v1841
    %v1970 = vunpack.c.h.b16 %v1841
    %v1971 = vunpack.c.l.b16 %v1842
    %v1972 = vunpack.c.h.b16 %v1842
    %v1973 = vunpack.c.l.b16 %v1843
    %v1974 = vunpack.c.h.b16 %v1843
    %v1975 = vunpack.c.l.b16 %v1844
    %v1976 = vunpack.c.h.b16 %v1844
    %v1977 = vunpack.c.l.b16 %v1845
    %v1978 = vunpack.c.h.b16 %v1845
    %v1979 = vunpack.c.l.b16 %v1846
    %v1980 = vunpack.c.h.b16 %v1846
    %v1981 = vunpack.c.l.b16 %v1847
    %v1982 = vunpack.c.h.b16 %v1847
    %v1983 = vunpack.c.l.b16 %v1848
    %v1984 = vunpack.c.h.b16 %v1848
    %v1985 = vunpack.c.l.b16 %v1849
    %v1986 = vunpack.c.h.b16 %v1849
    %v1987 = vunpack.c.l.b16 %v1850
    %v1988 = vunpack.c.h.b16 %v1850
    %v1989 = vunpack.c.l.b16 %v1851
    %v1990 = vunpack.c.h.b16 %v1851
    %v1991 = vunpack.c.l.b16 %v1852
    %v1992 = vunpack.c.h.b16 %v1852
    %v1993 = vunpack.c.l.b16 %v1853
    %v1994 = vunpack.c.h.b16 %v1853
    %v1995 = vunpack.c.l.b16 %v1854
    %v1996 = vunpack.c.h.b16 %v1854
    %v1997 = vunpack.c.l.b16 %v1855
    %v1998 = vunpack.c.h.b16 %v1855
    %v1999 = vunpack.c.l.b16 %v1856
    %v2000 = vunpack.c.h.b16 %v1856
    %v2001 = vunpack.c.l.b16 %v1857
    %v2002 = vunpack.c.h.b16 %v1857
    %v2003 = vunpack.c.l.b16 %v1858
    %v2004 = vunpack.c.h.b16 %v1858
    %v2005 = vunpack.c.l.b16 %v1859
    %v2006 = vunpack.c.h.b16 %v1859
    %v2007 = vunpack.c.l.b16 %v1860
    %v2008 = vunpack.c.h.b16 %v1860
    %v2009 = vunpack.c.l.b16 %v1861
    %v2010 = vunpack.c.h.b16 %v1861
    %v2011 = vunpack.c.l.b16 %v1862
    %v2012 = vunpack.c.h.b16 %v1862
    %v2013 = vunpack.c.l.b16 %v1863
    %v2014 = vunpack.c.h.b16 %v1863
    %v2015 = vunpack.c.l.b16 %v1864
    %v2016 = vunpack.c.h.b16 %v1864
    %v2017 = vunpack.c.l.b16 %v1865
    %v2018 = vunpack.c.h.b16 %v1865
    %v2019 = vunpack.c.l.b16 %v1866
    %v2020 = vunpack.c.h.b16 %v1866
    %v2021 = vunpack.c.l.b16 %v1867
    %v2022 = vunpack.c.h.b16 %v1867
    %v2023 = vunpack.c.l.b16 %v1868
    %v2024 = vunpack.c.h.b16 %v1868
    %v2025 = vunpack.c.l.b16 %v1869
    %v2026 = vunpack.c.h.b16 %v1869
    %v2027 = vunpack.c.l.b16 %v1870
    %v2028 = vunpack.c.h.b16 %v1870
    %v2029 = vunpack.c.l.b16 %v1871
    %v2030 = vunpack.c.h.b16 %v1871
    %v2031 = vunpack.c.l.b16 %v1872
    %v2032 = vunpack.c.h.b16 %v1872
    %v2033 = vunpack.c.l.b16 %v1873
    %v2034 = vunpack.c.h.b16 %v1873
    %v2035 = vunpack.c.l.b16 %v1874
    %v2036 = vunpack.c.h.b16 %v1874
    %v2037 = vunpack.c.l.b16 %v1875
    %v2038 = vunpack.c.h.b16 %v1875
    %v2039 = vpack.c.b16 %v1943, %v1939
    %v2040 = vpack.c.b16 %v1944, %v1940
    %v2041 = vpack.c.b16 %v1945, %v1941
    %v2042 = vpack.c.b16 %v1946, %v1942
    %v2043 = vpack.c.b16 %v1951, %v1947
    %v2044 = vpack.c.b16 %v1952, %v1948
    %v2045 = vpack.c.b16 %v1953, %v1949
    %v2046 = vpack.c.b16 %v1954, %v1950
    %v2047 = vpack.c.b16 %v1959, %v1955
    %v2048 = vpack.c.b16 %v1960, %v1956
    %v2049 = vpack.c.b16 %v1961, %v1957
    %v2050 = vpack.c.b16 %v1962, %v1958
    %v2051 = vpack.c.b16 %v1967, %v1963
    %v2052 = vpack.c.b16 %v1968, %v1964
    %v2053 = vpack.c.b16 %v1969, %v1965
    %v2054 = vpack.c.b16 %v1970, %v1966
    %v2055 = vpack.c.b16 %v1975, %v1971
    %v2056 = vpack.c.b16 %v1976, %v1972
    %v2057 = vpack.c.b16 %v1977, %v1973
    %v2058 = vpack.c.b16 %v1978, %v1974
    %v2059 = vpack.c.b16 %v1983, %v1979
    %v2060 = vpack.c.b16 %v1984, %v1980
    %v2061 = vpack.c.b16 %v1985, %v1981
    %v2062 = vpack.c.b16 %v1986, %v1982
    %v2063 = vpack.c.b16 %v1991, %v1987
    %v2064 = vpack.c.b16 %v1992, %v1988
    %v2065 = vpack.c.b16 %v1993, %v1989
    %v2066 = vpack.c.b16 %v1994, %v1990
    %v2067 = vpack.c.b16 %v1999, %v1995
    %v2068 = vpack.c.b16 %v2000, %v1996
    %v2069 = vpack.c.b16 %v2001, %v1997
    %v2070 = vpack.c.b16 %v2002, %v1998
    %v2071 = vpack.c.b16 %v2007, %v2003
    %v2072 = vpack.c.b16 %v2008, %v2004
    %v2073 = vpack.c.b16 %v2009, %v2005
    %v2074 = vpack.c.b16 %v2010, %v2006
    %v2075 = vpack.c.b16 %v2015, %v2011
    %v2076 = vpack.c.b16 %v2016, %v2012
    %v2077 = vpack.c.b16 %v2017, %v2013
    %v2078 = vpack.c.b16 %v2018, %v2014
    %v2079 = vpack.c.b16 %v2023, %v2019
    %v2080 = vpack.c.b16 %v2024, %v2020
    %v2081 = vpack.c.b16 %v2025, %v2021
    %v2082 = vpack.c.b16 %v2026, %v2022
    %v2083 = vpack.c.b16 %v2031, %v2027
    %v2084 = vpack.c.b16 %v2032, %v2028
    %v2085 = vpack.c.b16 %v2033, %v2029
    %v2086 = vpack.c.b16 %v2034, %v2030
    %v2087 = vpack.c.b16 %v2035, %v2035
    %v2088 = vpack.c.b16 %v2036, %v2036
    %v2089 = vpack.c.b16 %v2037, %v2037
    %v2090 = vpack.c.b16 %v2038, %v2038
    %v2140 = vsel %vm441, %v1887, 0
    %v2143 = vsel %vm445, %v2087, 0
    %v2146 = vsel %vm445, %v2088, 0
    %v2149 = vsel %vm445, %v2089, 0
    %v2152 = vsel %vm445, %v2090, 0
    %2154 = vmatprep.subr.bf16.mxu0 %v2040
    %2155 = vmatpush1.bf16.msra.mxu0 %v2039
    %2156 = vmatprep.subr.bf16.mxu0 %v2044
    %2157 = vmatpush1.bf16.msra.mxu0 %v2043
    %2158 = vmatprep.subr.bf16.mxu0 %v2048
    %2159 = vmatpush1.bf16.msra.mxu0 %v2047
    %2160 = vmatprep.subr.bf16.mxu0 %v2052
    %2161 = vmatpush1.bf16.msra.mxu0 %v2051
    %2162 = vmatprep.subr.bf16.mxu0 %v2056
    %2163 = vmatpush1.bf16.msra.mxu0 %v2055
    %2164 = vmatprep.subr.bf16.mxu0 %v2060
    %2165 = vmatpush1.bf16.msra.mxu0 %v2059
    %2166 = vmatprep.subr.bf16.mxu0 %v2064
    %2167 = vmatpush1.bf16.msra.mxu0 %v2063
    %2168 = vmatprep.subr.bf16.mxu0 %v2068
    %2169 = vmatpush1.bf16.msra.mxu0 %v2067
    %2170 = vmatprep.subr.bf16.mxu0 %v2072
    %2171 = vmatpush1.bf16.msra.mxu0 %v2071
    %2172 = vmatprep.subr.bf16.mxu0 %v2076
    %2173 = vmatpush1.bf16.msra.mxu0 %v2075
    %2174 = vmatprep.subr.bf16.mxu0 %v2080
    %2175 = vmatpush1.bf16.msra.mxu0 %v2079
    %2176 = vmatprep.subr.bf16.mxu0 %v2084
    %2177 = vmatpush1.bf16.msra.mxu0 %v2083
    %2178 = vmatprep.subr.bf16.mxu0 %v2146
    %2179 = vmatpush1.bf16.msra.mxu0 %v2143
    %2180 = vmatprep.subr.bf16.mxu0 0
    %2181 = vmatpush1.bf16.msra.mxu0 0
    %2182 = vmatprep.subr.bf16.mxu0 0
    %2183 = vmatpush1.bf16.msra.mxu0 0
    %2184 = vmatprep.subr.bf16.mxu0 0
    %2185 = vmatpush1.bf16.msra.mxu0 0
    %2186 = vmatprep.mubr.bf16.mxu0 %v2140
    %2187 = vmatmul.mubr.bf16.gmra.mrb[0].mxu0 %v1886
    %v2188 = vpop.f32.mrb[0].mxu0
    %v2189 = vadd.f32 %v174, %v2188
    %v2190 = vpop.f32.mrb[0].mxu0
    %v2191 = vadd.f32 %v178, %v2190
    %v2192 = vpop.f32.mrb[0].mxu0
    %v2193 = vpop.f32.mrb[0].mxu0
    %2194 = vdwg.mxu0
    %2195 = vmatprep.subr.bf16.mxu0 %v2042
    %2196 = vmatpush1.bf16.msra.mxu0 %v2041
    %2197 = vmatprep.subr.bf16.mxu0 %v2046
    %2198 = vmatpush1.bf16.msra.mxu0 %v2045
    %2199 = vmatprep.subr.bf16.mxu0 %v2050
    %2200 = vmatpush1.bf16.msra.mxu0 %v2049
    %2201 = vmatprep.subr.bf16.mxu0 %v2054
    %2202 = vmatpush1.bf16.msra.mxu0 %v2053
    %2203 = vmatprep.subr.bf16.mxu0 %v2058
    %2204 = vmatpush1.bf16.msra.mxu0 %v2057
    %2205 = vmatprep.subr.bf16.mxu0 %v2062
    %2206 = vmatpush1.bf16.msra.mxu0 %v2061
    %2207 = vmatprep.subr.bf16.mxu0 %v2066
    %2208 = vmatpush1.bf16.msra.mxu0 %v2065
    %2209 = vmatprep.subr.bf16.mxu0 %v2070
    %2210 = vmatpush1.bf16.msra.mxu0 %v2069
    %2211 = vmatprep.subr.bf16.mxu0 %v2074
    %2212 = vmatpush1.bf16.msra.mxu0 %v2073
    %2213 = vmatprep.subr.bf16.mxu0 %v2078
    %2214 = vmatpush1.bf16.msra.mxu0 %v2077
    %2215 = vmatprep.subr.bf16.mxu0 %v2082
    %2216 = vmatpush1.bf16.msra.mxu0 %v2081
    %2217 = vmatprep.subr.bf16.mxu0 %v2086
    %2218 = vmatpush1.bf16.msra.mxu0 %v2085
    %2219 = vmatprep.subr.bf16.mxu0 %v2152
    %2220 = vmatpush1.bf16.msra.mxu0 %v2149
    %2221 = vmatprep.subr.bf16.mxu0 0
    %2222 = vmatpush1.bf16.msra.mxu0 0
    %2223 = vmatprep.subr.bf16.mxu0 0
    %2224 = vmatpush1.bf16.msra.mxu0 0
    %2225 = vmatprep.subr.bf16.mxu0 0
    %2226 = vmatpush1.bf16.msra.mxu0 0
    %2227 = vmatprep.mubr.bf16.mxu0 %v2140
    %2228 = vmatmul.mubr.bf16.gmra.mrb[0].mxu0 %v1886
    %v2229 = vpop.f32.mrb[0].mxu0
    %v2230 = vadd.f32 %v182, %v2229
    %v2231 = vpop.f32.mrb[0].mxu0
    %v2232 = vadd.f32 %v186, %v2231
    %v2233 = vpop.f32.mrb[0].mxu0
    %v2234 = vpop.f32.mrb[0].mxu0
    %2235 = vdwg.mxu0
    %v2236 = vmax.f32 %v2189, 0.0
    %v2237 = vmax.f32 %v2191, 0.0
    %v2238 = vmax.f32 %v2230, 0.0
    %v2239 = vmax.f32 %v2232, 0.0
    %v2240 = vmax.f32 %v2236, %v2237
    %v2241 = vmax.f32 %v2238, %v2239
    %v2242 = vmax.f32 %v2240, %v2241
    %s2243 = scalar_lea.vmem [#allocation5], 2000
    %v2244 = vld [vmem:[%s2243] sm:$0xff]
    %v2245 = vld [vmem:[%s2243 + $0x8] sm:$0xff]
    %v2246 = vld [vmem:[%s2243 + $0x10] sm:$0xff]
    %v2247 = vld [vmem:[%s2243 + $0x18] sm:$0xff]
    %v2248 = vld [vmem:[%s2243 + $0x20] sm:$0xff]
    %v2249 = vld [vmem:[%s2243 + $0x28] sm:$0xff]
    %v2250 = vld [vmem:[%s2243 + $0x30] sm:$0xff]
    %v2251 = vld [vmem:[%s2243 + $0x38] sm:$0xff]
    %v2252 = vld [vmem:[%s2243 + $0x40] sm:$0xff]
    %v2253 = vld [vmem:[%s2243 + $0x48] sm:$0xff]
    %v2254 = vld [vmem:[%s2243 + $0x50] sm:$0xff]
    %v2255 = vld [vmem:[%s2243 + $0x58] sm:$0xff]
    %v2256 = vld [vmem:[%s2243 + $0x60] sm:$0xff]
    %v2257 = vld [vmem:[%s2243 + $0x68] sm:$0xff]
    %v2258 = vld [vmem:[%s2243 + $0x70] sm:$0xff]
    %v2259 = vld [vmem:[%s2243 + $0x78] sm:$0xff]
    %v2260 = vld [vmem:[%s2243 + $0x80] sm:$0xff]
    %v2261 = vld [vmem:[%s2243 + $0x88] sm:$0xff]
    %v2262 = vld [vmem:[%s2243 + $0x90] sm:$0xff]
    %v2263 = vld [vmem:[%s2243 + $0x98] sm:$0xff]
    %v2264 = vld [vmem:[%s2243 + $0xa0] sm:$0xff]
    %v2265 = vld [vmem:[%s2243 + $0xa8] sm:$0xff]
    %v2266 = vld [vmem:[%s2243 + $0xb0] sm:$0xff]
    %v2267 = vld [vmem:[%s2243 + $0xb8] sm:$0xff]
    %v2268 = vld [vmem:[%s2243 + $0xc0] sm:$0xff]
    %v2269 = vld [vmem:[%s2243 + $0xc8] sm:$0xff]
    %v2270 = vld [vmem:[%s2243 + $0xd0] sm:$0xff]
    %v2271 = vld [vmem:[%s2243 + $0xd8] sm:$0xff]
    %v2272 = vld [vmem:[%s2243 + $0xe0] sm:$0xff]
    %v2273 = vld [vmem:[%s2243 + $0xe8] sm:$0xff]
    %v2274 = vld [vmem:[%s2243 + $0xf0] sm:$0xff]
    %v2275 = vld [vmem:[%s2243 + $0xf8] sm:$0xff]
    %v2276 = vld [vmem:[%s2243 + $0x100] sm:$0xff]
    %v2277 = vld [vmem:[%s2243 + $0x108] sm:$0xff]
    %v2278 = vld [vmem:[%s2243 + $0x110] sm:$0xff]
    %v2279 = vld [vmem:[%s2243 + $0x118] sm:$0xff]
    %v2280 = vld [vmem:[%s2243 + $0x120] sm:$0xff]
    %v2281 = vld [vmem:[%s2243 + $0x128] sm:$0xff]
    %v2282 = vld [vmem:[%s2243 + $0x130] sm:$0xff]
    %v2283 = vld [vmem:[%s2243 + $0x138] sm:$0xff]
    %v2284 = vld [vmem:[%s2243 + $0x140] sm:$0xff]
    %v2285 = vld [vmem:[%s2243 + $0x148] sm:$0xff]
    %v2286 = vld [vmem:[%s2243 + $0x150] sm:$0xff]
    %v2287 = vld [vmem:[%s2243 + $0x158] sm:$0xff]
    %v2288 = vld [vmem:[%s2243 + $0x160] sm:$0xff]
    %v2289 = vld [vmem:[%s2243 + $0x168] sm:$0xff]
    %v2290 = vld [vmem:[%s2243 + $0x170] sm:$0xff]
    %v2291 = vld [vmem:[%s2243 + $0x178] sm:$0xff]
    %v2292 = vld [vmem:[%s2243 + $0x180] sm:$0xff]
    %v2293 = vld [vmem:[%s2243 + $0x188] sm:$0xff]
    %2294 = vrot.lane.b32.xlu0 %v1823, 80
    %v2295 = vpop.permute.xlu0 %2294
    %2296 = vrot.lane.b32.xlu0 %v1824, 80
    %v2297 = vpop.permute.xlu0 %2296
    %vm2298 = vcmask 654336
    %v2299 = vsel %vm2298, %v2295, %v2297
    %v2351 = vunpack.c.l.b16 %v2244
    %v2352 = vunpack.c.h.b16 %v2244
    %v2353 = vunpack.c.l.b16 %v2245
    %v2354 = vunpack.c.h.b16 %v2245
    %v2355 = vunpack.c.l.b16 %v2246
    %v2356 = vunpack.c.h.b16 %v2246
    %v2357 = vunpack.c.l.b16 %v2247
    %v2358 = vunpack.c.h.b16 %v2247
    %v2359 = vunpack.c.l.b16 %v2248
    %v2360 = vunpack.c.h.b16 %v2248
    %v2361 = vunpack.c.l.b16 %v2249
    %v2362 = vunpack.c.h.b16 %v2249
    %v2363 = vunpack.c.l.b16 %v2250
    %v2364 = vunpack.c.h.b16 %v2250
    %v2365 = vunpack.c.l.b16 %v2251
    %v2366 = vunpack.c.h.b16 %v2251
    %v2367 = vunpack.c.l.b16 %v2252
    %v2368 = vunpack.c.h.b16 %v2252
    %v2369 = vunpack.c.l.b16 %v2253
    %v2370 = vunpack.c.h.b16 %v2253
    %v2371 = vunpack.c.l.b16 %v2254
    %v2372 = vunpack.c.h.b16 %v2254
    %v2373 = vunpack.c.l.b16 %v2255
    %v2374 = vunpack.c.h.b16 %v2255
    %v2375 = vunpack.c.l.b16 %v2256
    %v2376 = vunpack.c.h.b16 %v2256
    %v2377 = vunpack.c.l.b16 %v2257
    %v2378 = vunpack.c.h.b16 %v2257
    %v2379 = vunpack.c.l.b16 %v2258
    %v2380 = vunpack.c.h.b16 %v2258
    %v2381 = vunpack.c.l.b16 %v2259
    %v2382 = vunpack.c.h.b16 %v2259
    %v2383 = vunpack.c.l.b16 %v2260
    %v2384 = vunpack.c.h.b16 %v2260
    %v2385 = vunpack.c.l.b16 %v2261
    %v2386 = vunpack.c.h.b16 %v2261
    %v2387 = vunpack.c.l.b16 %v2262
    %v2388 = vunpack.c.h.b16 %v2262
    %v2389 = vunpack.c.l.b16 %v2263
    %v2390 = vunpack.c.h.b16 %v2263
    %v2391 = vunpack.c.l.b16 %v2264
    %v2392 = vunpack.c.h.b16 %v2264
    %v2393 = vunpack.c.l.b16 %v2265
    %v2394 = vunpack.c.h.b16 %v2265
    %v2395 = vunpack.c.l.b16 %v2266
    %v2396 = vunpack.c.h.b16 %v2266
    %v2397 = vunpack.c.l.b16 %v2267
    %v2398 = vunpack.c.h.b16 %v2267
    %v2399 = vunpack.c.l.b16 %v2268
    %v2400 = vunpack.c.h.b16 %v2268
    %v2401 = vunpack.c.l.b16 %v2269
    %v2402 = vunpack.c.h.b16 %v2269
    %v2403 = vunpack.c.l.b16 %v2270
    %v2404 = vunpack.c.h.b16 %v2270
    %v2405 = vunpack.c.l.b16 %v2271
    %v2406 = vunpack.c.h.b16 %v2271
    %v2407 = vunpack.c.l.b16 %v2272
    %v2408 = vunpack.c.h.b16 %v2272
    %v2409 = vunpack.c.l.b16 %v2273
    %v2410 = vunpack.c.h.b16 %v2273
    %v2411 = vunpack.c.l.b16 %v2274
    %v2412 = vunpack.c.h.b16 %v2274
    %v2413 = vunpack.c.l.b16 %v2275
    %v2414 = vunpack.c.h.b16 %v2275
    %v2415 = vunpack.c.l.b16 %v2276
    %v2416 = vunpack.c.h.b16 %v2276
    %v2417 = vunpack.c.l.b16 %v2277
    %v2418 = vunpack.c.h.b16 %v2277
    %v2419 = vunpack.c.l.b16 %v2278
    %v2420 = vunpack.c.h.b16 %v2278
    %v2421 = vunpack.c.l.b16 %v2279
    %v2422 = vunpack.c.h.b16 %v2279
    %v2423 = vunpack.c.l.b16 %v2280
    %v2424 = vunpack.c.h.b16 %v2280
    %v2425 = vunpack.c.l.b16 %v2281
    %v2426 = vunpack.c.h.b16 %v2281
    %v2427 = vunpack.c.l.b16 %v2282
    %v2428 = vunpack.c.h.b16 %v2282
    %v2429 = vunpack.c.l.b16 %v2283
    %v2430 = vunpack.c.h.b16 %v2283
    %v2431 = vunpack.c.l.b16 %v2284
    %v2432 = vunpack.c.h.b16 %v2284
    %v2433 = vunpack.c.l.b16 %v2285
    %v2434 = vunpack.c.h.b16 %v2285
    %v2435 = vunpack.c.l.b16 %v2286
    %v2436 = vunpack.c.h.b16 %v2286
    %v2437 = vunpack.c.l.b16 %v2287
    %v2438 = vunpack.c.h.b16 %v2287
    %v2439 = vunpack.c.l.b16 %v2288
    %v2440 = vunpack.c.h.b16 %v2288
    %v2441 = vunpack.c.l.b16 %v2289
    %v2442 = vunpack.c.h.b16 %v2289
    %v2443 = vunpack.c.l.b16 %v2290
    %v2444 = vunpack.c.h.b16 %v2290
    %v2445 = vunpack.c.l.b16 %v2291
    %v2446 = vunpack.c.h.b16 %v2291
    %v2447 = vunpack.c.l.b16 %v2292
    %v2448 = vunpack.c.h.b16 %v2292
    %v2449 = vunpack.c.l.b16 %v2293
    %v2450 = vunpack.c.h.b16 %v2293
    %v2451 = vpack.c.b16 %v2355, %v2351
    %v2452 = vpack.c.b16 %v2356, %v2352
    %v2453 = vpack.c.b16 %v2357, %v2353
    %v2454 = vpack.c.b16 %v2358, %v2354
    %v2455 = vpack.c.b16 %v2363, %v2359
    %v2456 = vpack.c.b16 %v2364, %v2360
    %v2457 = vpack.c.b16 %v2365, %v2361
    %v2458 = vpack.c.b16 %v2366, %v2362
    %v2459 = vpack.c.b16 %v2371, %v2367
    %v2460 = vpack.c.b16 %v2372, %v2368
    %v2461 = vpack.c.b16 %v2373, %v2369
    %v2462 = vpack.c.b16 %v2374, %v2370
    %v2463 = vpack.c.b16 %v2379, %v2375
    %v2464 = vpack.c.b16 %v2380, %v2376
    %v2465 = vpack.c.b16 %v2381, %v2377
    %v2466 = vpack.c.b16 %v2382, %v2378
    %v2467 = vpack.c.b16 %v2387, %v2383
    %v2468 = vpack.c.b16 %v2388, %v2384
    %v2469 = vpack.c.b16 %v2389, %v2385
    %v2470 = vpack.c.b16 %v2390, %v2386
    %v2471 = vpack.c.b16 %v2395, %v2391
    %v2472 = vpack.c.b16 %v2396, %v2392
    %v2473 = vpack.c.b16 %v2397, %v2393
    %v2474 = vpack.c.b16 %v2398, %v2394
    %v2475 = vpack.c.b16 %v2403, %v2399
    %v2476 = vpack.c.b16 %v2404, %v2400
    %v2477 = vpack.c.b16 %v2405, %v2401
    %v2478 = vpack.c.b16 %v2406, %v2402
    %v2479 = vpack.c.b16 %v2411, %v2407
    %v2480 = vpack.c.b16 %v2412, %v2408
    %v2481 = vpack.c.b16 %v2413, %v2409
    %v2482 = vpack.c.b16 %v2414, %v2410
    %v2483 = vpack.c.b16 %v2419, %v2415
    %v2484 = vpack.c.b16 %v2420, %v2416
    %v2485 = vpack.c.b16 %v2421, %v2417
    %v2486 = vpack.c.b16 %v2422, %v2418
    %v2487 = vpack.c.b16 %v2427, %v2423
    %v2488 = vpack.c.b16 %v2428, %v2424
    %v2489 = vpack.c.b16 %v2429, %v2425
    %v2490 = vpack.c.b16 %v2430, %v2426
    %v2491 = vpack.c.b16 %v2435, %v2431
    %v2492 = vpack.c.b16 %v2436, %v2432
    %v2493 = vpack.c.b16 %v2437, %v2433
    %v2494 = vpack.c.b16 %v2438, %v2434
    %v2495 = vpack.c.b16 %v2443, %v2439
    %v2496 = vpack.c.b16 %v2444, %v2440
    %v2497 = vpack.c.b16 %v2445, %v2441
    %v2498 = vpack.c.b16 %v2446, %v2442
    %v2499 = vpack.c.b16 %v2447, %v2447
    %v2500 = vpack.c.b16 %v2448, %v2448
    %v2501 = vpack.c.b16 %v2449, %v2449
    %v2502 = vpack.c.b16 %v2450, %v2450
    %v2552 = vsel %vm441, %v2297, 0
    %v2555 = vsel %vm445, %v2499, 0
    %v2558 = vsel %vm445, %v2500, 0
    %v2561 = vsel %vm445, %v2501, 0
    %v2564 = vsel %vm445, %v2502, 0
    %2566 = vmatprep.subr.bf16.mxu0 %v2452
    %2567 = vmatpush1.bf16.msra.mxu0 %v2451
    %2568 = vmatprep.subr.bf16.mxu0 %v2456
    %2569 = vmatpush1.bf16.msra.mxu0 %v2455
    %2570 = vmatprep.subr.bf16.mxu0 %v2460
    %2571 = vmatpush1.bf16.msra.mxu0 %v2459
    %2572 = vmatprep.subr.bf16.mxu0 %v2464
    %2573 = vmatpush1.bf16.msra.mxu0 %v2463
    %2574 = vmatprep.subr.bf16.mxu0 %v2468
    %2575 = vmatpush1.bf16.msra.mxu0 %v2467
    %2576 = vmatprep.subr.bf16.mxu0 %v2472
    %2577 = vmatpush1.bf16.msra.mxu0 %v2471
    %2578 = vmatprep.subr.bf16.mxu0 %v2476
    %2579 = vmatpush1.bf16.msra.mxu0 %v2475
    %2580 = vmatprep.subr.bf16.mxu0 %v2480
    %2581 = vmatpush1.bf16.msra.mxu0 %v2479
    %2582 = vmatprep.subr.bf16.mxu0 %v2484
    %2583 = vmatpush1.bf16.msra.mxu0 %v2483
    %2584 = vmatprep.subr.bf16.mxu0 %v2488
    %2585 = vmatpush1.bf16.msra.mxu0 %v2487
    %2586 = vmatprep.subr.bf16.mxu0 %v2492
    %2587 = vmatpush1.bf16.msra.mxu0 %v2491
    %2588 = vmatprep.subr.bf16.mxu0 %v2496
    %2589 = vmatpush1.bf16.msra.mxu0 %v2495
    %2590 = vmatprep.subr.bf16.mxu0 %v2558
    %2591 = vmatpush1.bf16.msra.mxu0 %v2555
    %2592 = vmatprep.subr.bf16.mxu0 0
    %2593 = vmatpush1.bf16.msra.mxu0 0
    %2594 = vmatprep.subr.bf16.mxu0 0
    %2595 = vmatpush1.bf16.msra.mxu0 0
    %2596 = vmatprep.subr.bf16.mxu0 0
    %2597 = vmatpush1.bf16.msra.mxu0 0
    %2598 = vmatprep.mubr.bf16.mxu0 %v2552
    %2599 = vmatmul.mubr.bf16.gmra.mrb[0].mxu0 %v2299
    %v2600 = vpop.f32.mrb[0].mxu0
    %v2601 = vadd.f32 %v174, %v2600
    %v2602 = vpop.f32.mrb[0].mxu0
    %v2603 = vadd.f32 %v178, %v2602
    %v2604 = vpop.f32.mrb[0].mxu0
    %v2605 = vpop.f32.mrb[0].mxu0
    %2606 = vdwg.mxu0
    %2607 = vmatprep.subr.bf16.mxu0 %v2454
    %2608 = vmatpush1.bf16.msra.mxu0 %v2453
    %2609 = vmatprep.subr.bf16.mxu0 %v2458
    %2610 = vmatpush1.bf16.msra.mxu0 %v2457
    %2611 = vmatprep.subr.bf16.mxu0 %v2462
    %2612 = vmatpush1.bf16.msra.mxu0 %v2461
    %2613 = vmatprep.subr.bf16.mxu0 %v2466
    %2614 = vmatpush1.bf16.msra.mxu0 %v2465
    %2615 = vmatprep.subr.bf16.mxu0 %v2470
    %2616 = vmatpush1.bf16.msra.mxu0 %v2469
    %2617 = vmatprep.subr.bf16.mxu0 %v2474
    %2618 = vmatpush1.bf16.msra.mxu0 %v2473
    %2619 = vmatprep.subr.bf16.mxu0 %v2478
    %2620 = vmatpush1.bf16.msra.mxu0 %v2477
    %2621 = vmatprep.subr.bf16.mxu0 %v2482
    %2622 = vmatpush1.bf16.msra.mxu0 %v2481
    %2623 = vmatprep.subr.bf16.mxu0 %v2486
    %2624 = vmatpush1.bf16.msra.mxu0 %v2485
    %2625 = vmatprep.subr.bf16.mxu0 %v2490
    %2626 = vmatpush1.bf16.msra.mxu0 %v2489
    %2627 = vmatprep.subr.bf16.mxu0 %v2494
    %2628 = vmatpush1.bf16.msra.mxu0 %v2493
    %2629 = vmatprep.subr.bf16.mxu0 %v2498
    %2630 = vmatpush1.bf16.msra.mxu0 %v2497
    %2631 = vmatprep.subr.bf16.mxu0 %v2564
    %2632 = vmatpush1.bf16.msra.mxu0 %v2561
    %2633 = vmatprep.subr.bf16.mxu0 0
    %2634 = vmatpush1.bf16.msra.mxu0 0
    %2635 = vmatprep.subr.bf16.mxu0 0
    %2636 = vmatpush1.bf16.msra.mxu0 0
    %2637 = vmatprep.subr.bf16.mxu0 0
    %2638 = vmatpush1.bf16.msra.mxu0 0
    %2639 = vmatprep.mubr.bf16.mxu0 %v2552
    %2640 = vmatmul.mubr.bf16.gmra.mrb[0].mxu0 %v2299
    %v2641 = vpop.f32.mrb[0].mxu0
    %v2642 = vadd.f32 %v182, %v2641
    %v2643 = vpop.f32.mrb[0].mxu0
    %v2644 = vadd.f32 %v186, %v2643
    %v2645 = vpop.f32.mrb[0].mxu0
    %v2646 = vpop.f32.mrb[0].mxu0
    %2647 = vdwg.mxu0
    %v2648 = vmax.f32 %v2601, 0.0
    %v2649 = vmax.f32 %v2603, 0.0
    %v2650 = vmax.f32 %v2642, 0.0
    %v2651 = vmax.f32 %v2644, 0.0
    %v2652 = vmax.f32 %v2648, %v2649
    %v2653 = vmax.f32 %v2650, %v2651
    %v2654 = vmax.f32 %v2652, %v2653
    %v2655 = vpack.c.bf16 %v546, %v546
    %v2656 = vpack.c.bf16 %v970, %v970
    %v2657 = vpack.c.bf16 %v1394, %v1394
    %v2658 = vpack.c.bf16 %v1818, %v1818
    %v2659 = vpack.c.bf16 %v2242, %v2242
    %v2660 = vpack.c.bf16 %v2654, %v2654
    %v2661 = vld [vmem:[#allocation8] sm:$0xff]
    %v2662 = vld [vmem:[#allocation8 + $0x8] sm:$0xff]
    %v2663 = vld [vmem:[#allocation8 + $0x10] sm:$0xff]
    %v2664 = vld [vmem:[#allocation8 + $0x18] sm:$0xff]
    %v2665 = vld [vmem:[#allocation8 + $0x20] sm:$0xff]
    %v2666 = vld [vmem:[#allocation8 + $0x28] sm:$0xff]
    %v2667 = vld [vmem:[#allocation8 + $0x30] sm:$0xff]
    %v2668 = vld [vmem:[#allocation8 + $0x38] sm:$0xff]
    %v2669 = vld [vmem:[#allocation8 + $0x40] sm:$0xff]
    %v2670 = vld [vmem:[#allocation8 + $0x48] sm:$0xff]
    %v2671 = vld [vmem:[#allocation8 + $0x50] sm:$0xff]
    %v2672 = vld [vmem:[#allocation8 + $0x58] sm:$0xff]
    %v2673 = vld [vmem:[#allocation8 + $0x60] sm:$0xff]
    %v2674 = vld [vmem:[#allocation8 + $0x68] sm:$0xff]
    %v2675 = vld [vmem:[#allocation8 + $0x70] sm:$0xff]
    %v2676 = vld [vmem:[#allocation8 + $0x78] sm:$0xff]
    %v2677 = vld [vmem:[#allocation8 + $0x80] sm:$0xff]
    %v2678 = vld [vmem:[#allocation8 + $0x88] sm:$0xff]
    %v2679 = vld [vmem:[#allocation8 + $0x90] sm:$0xff]
    %v2680 = vld [vmem:[#allocation8 + $0x98] sm:$0xff]
    %v2681 = vld [vmem:[#allocation8 + $0xa0] sm:$0xff]
    %v2682 = vld [vmem:[#allocation8 + $0xa8] sm:$0xff]
    %v2683 = vld [vmem:[#allocation8 + $0xb0] sm:$0xff]
    %v2684 = vld [vmem:[#allocation8 + $0xb8] sm:$0xff]
    %v2685 = vld [vmem:[#allocation8 + $0xc0] sm:$0xff]
    %v2686 = vld [vmem:[#allocation8 + $0xc8] sm:$0xff]
    %v2687 = vld [vmem:[#allocation8 + $0xd0] sm:$0xff]
    %v2688 = vld [vmem:[#allocation8 + $0xd8] sm:$0xff]
    %v2689 = vld [vmem:[#allocation8 + $0xe0] sm:$0xff]
    %v2690 = vld [vmem:[#allocation8 + $0xe8] sm:$0xff]
    %v2691 = vld [vmem:[#allocation8 + $0xf0] sm:$0xff]
    %v2692 = vld [vmem:[#allocation8 + $0xf8] sm:$0xff]
    %v2693 = vld [vmem:[#allocation8 + $0x100] sm:$0xff]
    %v2694 = vld [vmem:[#allocation8 + $0x108] sm:$0xff]
    %v2695 = vld [vmem:[#allocation8 + $0x110] sm:$0xff]
    %v2696 = vld [vmem:[#allocation8 + $0x118] sm:$0xff]
    %v2697 = vld [vmem:[#allocation8 + $0x120] sm:$0xff]
    %v2698 = vld [vmem:[#allocation8 + $0x128] sm:$0xff]
    %v2699 = vld [vmem:[#allocation8 + $0x130] sm:$0xff]
    %v2700 = vld [vmem:[#allocation8 + $0x138] sm:$0xff]
    %v2701 = vld [vmem:[#allocation8 + $0x140] sm:$0xff]
    %v2702 = vld [vmem:[#allocation8 + $0x148] sm:$0xff]
    %v2703 = vld [vmem:[#allocation8 + $0x150] sm:$0xff]
    %v2704 = vld [vmem:[#allocation8 + $0x158] sm:$0xff]
    %v2705 = vld [vmem:[#allocation8 + $0x160] sm:$0xff]
    %v2706 = vld [vmem:[#allocation8 + $0x168] sm:$0xff]
    %v2707 = vld [vmem:[#allocation8 + $0x170] sm:$0xff]
    %v2708 = vld [vmem:[#allocation8 + $0x178] sm:$0xff]
    %v2709 = vld [vmem:[#allocation8 + $0x180] sm:$0xff]
    %v2710 = vld [vmem:[#allocation8 + $0x188] sm:$0xff]
    %v2711 = vld [vmem:[#allocation8 + $0x190] sm:$0xff]
    %v2712 = vld [vmem:[#allocation8 + $0x198] sm:$0xff]
    %v2713 = vld [vmem:[#allocation8 + $0x1a0] sm:$0xff]
    %v2714 = vld [vmem:[#allocation8 + $0x1a8] sm:$0xff]
    %v2715 = vld [vmem:[#allocation8 + $0x1b0] sm:$0xff]
    %v2716 = vld [vmem:[#allocation8 + $0x1b8] sm:$0xff]
    %v2717 = vld [vmem:[#allocation8 + $0x1c0] sm:$0xff]
    %v2718 = vld [vmem:[#allocation8 + $0x1c8] sm:$0xff]
    %v2719 = vld [vmem:[#allocation8 + $0x1d0] sm:$0xff]
    %v2720 = vld [vmem:[#allocation8 + $0x1d8] sm:$0xff]
    %v2721 = vld [vmem:[#allocation8 + $0x1e0] sm:$0xff]
    %v2722 = vld [vmem:[#allocation8 + $0x1e8] sm:$0xff]
    %v2723 = vld [vmem:[#allocation8 + $0x1f0] sm:$0xff]
    %v2724 = vld [vmem:[#allocation8 + $0x1f8] sm:$0xff]
    %v2725 = vld [vmem:[#allocation8 + $0x200] sm:$0xff]
    %v2726 = vld [vmem:[#allocation8 + $0x208] sm:$0xff]
    %v2727 = vld [vmem:[#allocation8 + $0x210] sm:$0xff]
    %v2728 = vld [vmem:[#allocation8 + $0x218] sm:$0xff]
    %v2729 = vld [vmem:[#allocation8 + $0x220] sm:$0xff]
    %v2730 = vld [vmem:[#allocation8 + $0x228] sm:$0xff]
    %v2731 = vld [vmem:[#allocation8 + $0x230] sm:$0xff]
    %v2732 = vld [vmem:[#allocation8 + $0x238] sm:$0xff]
    %v2733 = vld [vmem:[#allocation8 + $0x240] sm:$0xff]
    %v2734 = vld [vmem:[#allocation8 + $0x248] sm:$0xff]
    %v2735 = vld [vmem:[#allocation8 + $0x250] sm:$0xff]
    %v2736 = vld [vmem:[#allocation8 + $0x258] sm:$0xff]
    %v2737 = vld [vmem:[#allocation8 + $0x260] sm:$0xff]
    %v2738 = vld [vmem:[#allocation8 + $0x268] sm:$0xff]
    %v2739 = vld [vmem:[#allocation8 + $0x270] sm:$0xff]
    %v2740 = vld [vmem:[#allocation8 + $0x278] sm:$0xff]
    %v2741 = vld [vmem:[#allocation8 + $0x280] sm:$0xff]
    %v2742 = vld [vmem:[#allocation8 + $0x288] sm:$0xff]
    %v2743 = vld [vmem:[#allocation8 + $0x290] sm:$0xff]
    %v2744 = vld [vmem:[#allocation8 + $0x298] sm:$0xff]
    %v2745 = vld [vmem:[#allocation8 + $0x2a0] sm:$0xff]
    %v2746 = vld [vmem:[#allocation8 + $0x2a8] sm:$0xff]
    %v2747 = vld [vmem:[#allocation8 + $0x2b0] sm:$0xff]
    %v2748 = vld [vmem:[#allocation8 + $0x2b8] sm:$0xff]
    %v2749 = vld [vmem:[#allocation8 + $0x2c0] sm:$0xff]
    %v2750 = vld [vmem:[#allocation8 + $0x2c8] sm:$0xff]
    %v2751 = vld [vmem:[#allocation8 + $0x2d0] sm:$0xff]
    %v2752 = vld [vmem:[#allocation8 + $0x2d8] sm:$0xff]
    %v2753 = vld [vmem:[#allocation8 + $0x2e0] sm:$0xff]
    %v2754 = vld [vmem:[#allocation8 + $0x2e8] sm:$0xff]
    %v2755 = vld [vmem:[#allocation8 + $0x2f0] sm:$0xff]
    %v2756 = vld [vmem:[#allocation8 + $0x2f8] sm:$0xff]
    %v2757 = vld [vmem:[#allocation8 + $0x300] sm:$0xff]
    %v2758 = vld [vmem:[#allocation8 + $0x308] sm:$0xff]
    %v2759 = vld [vmem:[#allocation8 + $0x310] sm:$0xff]
    %v2760 = vld [vmem:[#allocation8 + $0x318] sm:$0xff]
    %v2761 = vld [vmem:[#allocation8 + $0x320] sm:$0xff]
    %v2762 = vld [vmem:[#allocation8 + $0x328] sm:$0xff]
    %v2763 = vld [vmem:[#allocation8 + $0x330] sm:$0xff]
    %v2764 = vld [vmem:[#allocation8 + $0x338] sm:$0xff]
    %v2765 = vld [vmem:[#allocation8 + $0x340] sm:$0xff]
    %v2766 = vld [vmem:[#allocation8 + $0x348] sm:$0xff]
    %v2767 = vld [vmem:[#allocation8 + $0x350] sm:$0xff]
    %v2768 = vld [vmem:[#allocation8 + $0x358] sm:$0xff]
    %v2769 = vld [vmem:[#allocation8 + $0x360] sm:$0xff]
    %v2770 = vld [vmem:[#allocation8 + $0x368] sm:$0xff]
    %v2771 = vld [vmem:[#allocation8 + $0x370] sm:$0xff]
    %v2772 = vld [vmem:[#allocation8 + $0x378] sm:$0xff]
    %v2773 = vld [vmem:[#allocation8 + $0x380] sm:$0xff]
    %v2774 = vld [vmem:[#allocation8 + $0x388] sm:$0xff]
    %v2775 = vld [vmem:[#allocation8 + $0x390] sm:$0xff]
    %v2776 = vld [vmem:[#allocation8 + $0x398] sm:$0xff]
    %v2777 = vld [vmem:[#allocation8 + $0x3a0] sm:$0xff]
    %v2778 = vld [vmem:[#allocation8 + $0x3a8] sm:$0xff]
    %v2779 = vld [vmem:[#allocation8 + $0x3b0] sm:$0xff]
    %v2780 = vld [vmem:[#allocation8 + $0x3b8] sm:$0xff]
    %v2781 = vld [vmem:[#allocation8 + $0x3c0] sm:$0xff]
    %v2782 = vld [vmem:[#allocation8 + $0x3c8] sm:$0xff]
    %v2783 = vld [vmem:[#allocation8 + $0x3d0] sm:$0xff]
    %v2784 = vld [vmem:[#allocation8 + $0x3d8] sm:$0xff]
    %v2785 = vld [vmem:[#allocation8 + $0x3e0] sm:$0xff]
    %v2786 = vld [vmem:[#allocation8 + $0x3e8] sm:$0xff]
    %v2787 = vld [vmem:[#allocation8 + $0x3f0] sm:$0xff]
    %v2788 = vld [vmem:[#allocation8 + $0x3f8] sm:$0xff]
    %v2789 = vld [vmem:[#allocation8 + $0x400] sm:$0xff]
    %v2790 = vld [vmem:[#allocation8 + $0x408] sm:$0xff]
    %v2791 = vld [vmem:[#allocation8 + $0x410] sm:$0xff]
    %v2792 = vld [vmem:[#allocation8 + $0x418] sm:$0xff]
    %v2793 = vld [vmem:[#allocation8 + $0x420] sm:$0xff]
    %v2794 = vld [vmem:[#allocation8 + $0x428] sm:$0xff]
    %v2795 = vld [vmem:[#allocation8 + $0x430] sm:$0xff]
    %v2796 = vld [vmem:[#allocation8 + $0x438] sm:$0xff]
    %v2797 = vld [vmem:[#allocation8 + $0x440] sm:$0xff]
    %v2798 = vld [vmem:[#allocation8 + $0x448] sm:$0xff]
    %v2799 = vld [vmem:[#allocation8 + $0x450] sm:$0xff]
    %v2800 = vld [vmem:[#allocation8 + $0x458] sm:$0xff]
    %v2801 = vld [vmem:[#allocation8 + $0x460] sm:$0xff]
    %v2802 = vld [vmem:[#allocation8 + $0x468] sm:$0xff]
    %v2803 = vld [vmem:[#allocation8 + $0x470] sm:$0xff]
    %v2804 = vld [vmem:[#allocation8 + $0x478] sm:$0xff]
    %v2805 = vld [vmem:[#allocation8 + $0x480] sm:$0xff]
    %v2806 = vld [vmem:[#allocation8 + $0x488] sm:$0xff]
    %v2807 = vld [vmem:[#allocation8 + $0x490] sm:$0xff]
    %v2808 = vld [vmem:[#allocation8 + $0x498] sm:$0xff]
    %v2809 = vld [vmem:[#allocation8 + $0x4a0] sm:$0xff]
    %v2810 = vld [vmem:[#allocation8 + $0x4a8] sm:$0xff]
    %v2811 = vld [vmem:[#allocation8 + $0x4b0] sm:$0xff]
    %v2812 = vld [vmem:[#allocation8 + $0x4b8] sm:$0xff]
    %v2813 = vld [vmem:[#allocation8 + $0x4c0] sm:$0xff]
    %v2814 = vld [vmem:[#allocation8 + $0x4c8] sm:$0xff]
    %v2815 = vld [vmem:[#allocation8 + $0x4d0] sm:$0xff]
    %v2816 = vld [vmem:[#allocation8 + $0x4d8] sm:$0xff]
    %v2817 = vld [vmem:[#allocation8 + $0x4e0] sm:$0xff]
    %v2818 = vld [vmem:[#allocation8 + $0x4e8] sm:$0xff]
    %v2819 = vld [vmem:[#allocation8 + $0x4f0] sm:$0xff]
    %v2820 = vld [vmem:[#allocation8 + $0x4f8] sm:$0xff]
    %v2821 = vld [vmem:[#allocation8 + $0x500] sm:$0xff]
    %v2822 = vld [vmem:[#allocation8 + $0x508] sm:$0xff]
    %v2823 = vld [vmem:[#allocation8 + $0x510] sm:$0xff]
    %v2824 = vld [vmem:[#allocation8 + $0x518] sm:$0xff]
    %v2825 = vld [vmem:[#allocation8 + $0x520] sm:$0xff]
    %v2826 = vld [vmem:[#allocation8 + $0x528] sm:$0xff]
    %v2827 = vld [vmem:[#allocation8 + $0x530] sm:$0xff]
    %v2828 = vld [vmem:[#allocation8 + $0x538] sm:$0xff]
    %v2829 = vld [vmem:[#allocation8 + $0x540] sm:$0xff]
    %v2830 = vld [vmem:[#allocation8 + $0x548] sm:$0xff]
    %v2831 = vld [vmem:[#allocation8 + $0x550] sm:$0xff]
    %v2832 = vld [vmem:[#allocation8 + $0x558] sm:$0xff]
    %v2833 = vld [vmem:[#allocation8 + $0x560] sm:$0xff]
    %v2834 = vld [vmem:[#allocation8 + $0x568] sm:$0xff]
    %v2835 = vld [vmem:[#allocation8 + $0x570] sm:$0xff]
    %v2836 = vld [vmem:[#allocation8 + $0x578] sm:$0xff]
    %v2837 = vld [vmem:[#allocation8 + $0x580] sm:$0xff]
    %v2838 = vld [vmem:[#allocation8 + $0x588] sm:$0xff]
    %v2839 = vld [vmem:[#allocation8 + $0x590] sm:$0xff]
    %v2840 = vld [vmem:[#allocation8 + $0x598] sm:$0xff]
    %v2841 = vld [vmem:[#allocation8 + $0x5a0] sm:$0xff]
    %v2842 = vld [vmem:[#allocation8 + $0x5a8] sm:$0xff]
    %v2843 = vld [vmem:[#allocation8 + $0x5b0] sm:$0xff]
    %v2844 = vld [vmem:[#allocation8 + $0x5b8] sm:$0xff]
    %v2845 = vld [vmem:[#allocation8 + $0x5c0] sm:$0xff]
    %v2846 = vld [vmem:[#allocation8 + $0x5c8] sm:$0xff]
    %v2847 = vld [vmem:[#allocation8 + $0x5d0] sm:$0xff]
    %v2848 = vld [vmem:[#allocation8 + $0x5d8] sm:$0xff]
    %v2849 = vld [vmem:[#allocation8 + $0x5e0] sm:$0xff]
    %v2850 = vld [vmem:[#allocation8 + $0x5e8] sm:$0xff]
    %v2851 = vld [vmem:[#allocation8 + $0x5f0] sm:$0xff]
    %v2852 = vld [vmem:[#allocation8 + $0x5f8] sm:$0xff]
    %v2853 = vld [vmem:[#allocation10] sm:$0xf]
    %v2855 = vlaneseq
    %v2856 = vshrl.u32 %v2855, 7
    %v2857 = vsub.s32 0, %v2856
    %v2858 = vrot.slane %v2853, %v2857
    %v2859 = vlaneseq
    %v2860 = vshrl.u32 %v2859, 7
    %v2861 = vsub.s32 1, %v2860
    %v2862 = vrot.slane %v2853, %v2861
    %v2863 = vlaneseq
    %v2864 = vshrl.u32 %v2863, 7
    %v2865 = vsub.s32 2, %v2864
    %v2866 = vrot.slane %v2853, %v2865
    %v2867 = vlaneseq
    %v2868 = vshrl.u32 %v2867, 7
    %v2869 = vsub.s32 3, %v2868
    %v2870 = vrot.slane %v2853, %v2869
    %v3067 = vunpack.c.l.b16 %v2661
    %v3068 = vunpack.c.h.b16 %v2661
    %v3069 = vunpack.c.l.b16 %v2662
    %v3070 = vunpack.c.h.b16 %v2662
    %v3071 = vunpack.c.l.b16 %v2663
    %v3072 = vunpack.c.h.b16 %v2663
    %v3073 = vunpack.c.l.b16 %v2664
    %v3074 = vunpack.c.h.b16 %v2664
    %v3075 = vunpack.c.l.b16 %v2665
    %v3076 = vunpack.c.h.b16 %v2665
    %v3077 = vunpack.c.l.b16 %v2666
    %v3078 = vunpack.c.h.b16 %v2666
    %v3079 = vunpack.c.l.b16 %v2667
    %v3080 = vunpack.c.h.b16 %v2667
    %v3081 = vunpack.c.l.b16 %v2668
    %v3082 = vunpack.c.h.b16 %v2668
    %v3083 = vunpack.c.l.b16 %v2669
    %v3084 = vunpack.c.h.b16 %v2669
    %v3085 = vunpack.c.l.b16 %v2670
    %v3086 = vunpack.c.h.b16 %v2670
    %v3087 = vunpack.c.l.b16 %v2671
    %v3088 = vunpack.c.h.b16 %v2671
    %v3089 = vunpack.c.l.b16 %v2672
    %v3090 = vunpack.c.h.b16 %v2672
    %v3091 = vunpack.c.l.b16 %v2673
    %v3092 = vunpack.c.h.b16 %v2673
    %v3093 = vunpack.c.l.b16 %v2674
    %v3094 = vunpack.c.h.b16 %v2674
    %v3095 = vunpack.c.l.b16 %v2675
    %v3096 = vunpack.c.h.b16 %v2675
    %v3097 = vunpack.c.l.b16 %v2676
    %v3098 = vunpack.c.h.b16 %v2676
    %v3099 = vunpack.c.l.b16 %v2677
    %v3100 = vunpack.c.h.b16 %v2677
    %v3101 = vunpack.c.l.b16 %v2678
    %v3102 = vunpack.c.h.b16 %v2678
    %v3103 = vunpack.c.l.b16 %v2679
    %v3104 = vunpack.c.h.b16 %v2679
    %v3105 = vunpack.c.l.b16 %v2680
    %v3106 = vunpack.c.h.b16 %v2680
    %v3107 = vunpack.c.l.b16 %v2681
    %v3108 = vunpack.c.h.b16 %v2681
    %v3109 = vunpack.c.l.b16 %v2682
    %v3110 = vunpack.c.h.b16 %v2682
    %v3111 = vunpack.c.l.b16 %v2683
    %v3112 = vunpack.c.h.b16 %v2683
    %v3113 = vunpack.c.l.b16 %v2684
    %v3114 = vunpack.c.h.b16 %v2684
    %v3115 = vunpack.c.l.b16 %v2685
    %v3116 = vunpack.c.h.b16 %v2685
    %v3117 = vunpack.c.l.b16 %v2686
    %v3118 = vunpack.c.h.b16 %v2686
    %v3119 = vunpack.c.l.b16 %v2687
    %v3120 = vunpack.c.h.b16 %v2687
    %v3121 = vunpack.c.l.b16 %v2688
    %v3122 = vunpack.c.h.b16 %v2688
    %v3123 = vunpack.c.l.b16 %v2689
    %v3124 = vunpack.c.h.b16 %v2689
    %v3125 = vunpack.c.l.b16 %v2690
    %v3126 = vunpack.c.h.b16 %v2690
    %v3127 = vunpack.c.l.b16 %v2691
    %v3128 = vunpack.c.h.b16 %v2691
    %v3129 = vunpack.c.l.b16 %v2692
    %v3130 = vunpack.c.h.b16 %v2692
    %v3131 = vunpack.c.l.b16 %v2693
    %v3132 = vunpack.c.h.b16 %v2693
    %v3133 = vunpack.c.l.b16 %v2694
    %v3134 = vunpack.c.h.b16 %v2694
    %v3135 = vunpack.c.l.b16 %v2695
    %v3136 = vunpack.c.h.b16 %v2695
    %v3137 = vunpack.c.l.b16 %v2696
    %v3138 = vunpack.c.h.b16 %v2696
    %v3139 = vunpack.c.l.b16 %v2697
    %v3140 = vunpack.c.h.b16 %v2697
    %v3141 = vunpack.c.l.b16 %v2698
    %v3142 = vunpack.c.h.b16 %v2698
    %v3143 = vunpack.c.l.b16 %v2699
    %v3144 = vunpack.c.h.b16 %v2699
    %v3145 = vunpack.c.l.b16 %v2700
    %v3146 = vunpack.c.h.b16 %v2700
    %v3147 = vunpack.c.l.b16 %v2701
    %v3148 = vunpack.c.h.b16 %v2701
    %v3149 = vunpack.c.l.b16 %v2702
    %v3150 = vunpack.c.h.b16 %v2702
    %v3151 = vunpack.c.l.b16 %v2703
    %v3152 = vunpack.c.h.b16 %v2703
    %v3153 = vunpack.c.l.b16 %v2704
    %v3154 = vunpack.c.h.b16 %v2704
    %v3155 = vunpack.c.l.b16 %v2705
    %v3156 = vunpack.c.h.b16 %v2705
    %v3157 = vunpack.c.l.b16 %v2706
    %v3158 = vunpack.c.h.b16 %v2706
    %v3159 = vunpack.c.l.b16 %v2707
    %v3160 = vunpack.c.h.b16 %v2707
    %v3161 = vunpack.c.l.b16 %v2708
    %v3162 = vunpack.c.h.b16 %v2708
    %v3163 = vunpack.c.l.b16 %v2709
    %v3164 = vunpack.c.h.b16 %v2709
    %v3165 = vunpack.c.l.b16 %v2710
    %v3166 = vunpack.c.h.b16 %v2710
    %v3167 = vunpack.c.l.b16 %v2711
    %v3168 = vunpack.c.h.b16 %v2711
    %v3169 = vunpack.c.l.b16 %v2712
    %v3170 = vunpack.c.h.b16 %v2712
    %v3171 = vunpack.c.l.b16 %v2713
    %v3172 = vunpack.c.h.b16 %v2713
    %v3173 = vunpack.c.l.b16 %v2714
    %v3174 = vunpack.c.h.b16 %v2714
    %v3175 = vunpack.c.l.b16 %v2715
    %v3176 = vunpack.c.h.b16 %v2715
    %v3177 = vunpack.c.l.b16 %v2716
    %v3178 = vunpack.c.h.b16 %v2716
    %v3179 = vunpack.c.l.b16 %v2717
    %v3180 = vunpack.c.h.b16 %v2717
    %v3181 = vunpack.c.l.b16 %v2718
    %v3182 = vunpack.c.h.b16 %v2718
    %v3183 = vunpack.c.l.b16 %v2719
    %v3184 = vunpack.c.h.b16 %v2719
    %v3185 = vunpack.c.l.b16 %v2720
    %v3186 = vunpack.c.h.b16 %v2720
    %v3187 = vunpack.c.l.b16 %v2721
    %v3188 = vunpack.c.h.b16 %v2721
    %v3189 = vunpack.c.l.b16 %v2722
    %v3190 = vunpack.c.h.b16 %v2722
    %v3191 = vunpack.c.l.b16 %v2723
    %v3192 = vunpack.c.h.b16 %v2723
    %v3193 = vunpack.c.l.b16 %v2724
    %v3194 = vunpack.c.h.b16 %v2724
    %v3195 = vunpack.c.l.b16 %v2725
    %v3196 = vunpack.c.h.b16 %v2725
    %v3197 = vunpack.c.l.b16 %v2726
    %v3198 = vunpack.c.h.b16 %v2726
    %v3199 = vunpack.c.l.b16 %v2727
    %v3200 = vunpack.c.h.b16 %v2727
    %v3201 = vunpack.c.l.b16 %v2728
    %v3202 = vunpack.c.h.b16 %v2728
    %v3203 = vunpack.c.l.b16 %v2729
    %v3204 = vunpack.c.h.b16 %v2729
    %v3205 = vunpack.c.l.b16 %v2730
    %v3206 = vunpack.c.h.b16 %v2730
    %v3207 = vunpack.c.l.b16 %v2731
    %v3208 = vunpack.c.h.b16 %v2731
    %v3209 = vunpack.c.l.b16 %v2732
    %v3210 = vunpack.c.h.b16 %v2732
    %v3211 = vunpack.c.l.b16 %v2733
    %v3212 = vunpack.c.h.b16 %v2733
    %v3213 = vunpack.c.l.b16 %v2734
    %v3214 = vunpack.c.h.b16 %v2734
    %v3215 = vunpack.c.l.b16 %v2735
    %v3216 = vunpack.c.h.b16 %v2735
    %v3217 = vunpack.c.l.b16 %v2736
    %v3218 = vunpack.c.h.b16 %v2736
    %v3219 = vunpack.c.l.b16 %v2737
    %v3220 = vunpack.c.h.b16 %v2737
    %v3221 = vunpack.c.l.b16 %v2738
    %v3222 = vunpack.c.h.b16 %v2738
    %v3223 = vunpack.c.l.b16 %v2739
    %v3224 = vunpack.c.h.b16 %v2739
    %v3225 = vunpack.c.l.b16 %v2740
    %v3226 = vunpack.c.h.b16 %v2740
    %v3227 = vunpack.c.l.b16 %v2741
    %v3228 = vunpack.c.h.b16 %v2741
    %v3229 = vunpack.c.l.b16 %v2742
    %v3230 = vunpack.c.h.b16 %v2742
    %v3231 = vunpack.c.l.b16 %v2743
    %v3232 = vunpack.c.h.b16 %v2743
    %v3233 = vunpack.c.l.b16 %v2744
    %v3234 = vunpack.c.h.b16 %v2744
    %v3235 = vunpack.c.l.b16 %v2745
    %v3236 = vunpack.c.h.b16 %v2745
    %v3237 = vunpack.c.l.b16 %v2746
    %v3238 = vunpack.c.h.b16 %v2746
    %v3239 = vunpack.c.l.b16 %v2747
    %v3240 = vunpack.c.h.b16 %v2747
    %v3241 = vunpack.c.l.b16 %v2748
    %v3242 = vunpack.c.h.b16 %v2748
    %v3243 = vunpack.c.l.b16 %v2749
    %v3244 = vunpack.c.h.b16 %v2749
    %v3245 = vunpack.c.l.b16 %v2750
    %v3246 = vunpack.c.h.b16 %v2750
    %v3247 = vunpack.c.l.b16 %v2751
    %v3248 = vunpack.c.h.b16 %v2751
    %v3249 = vunpack.c.l.b16 %v2752
    %v3250 = vunpack.c.h.b16 %v2752
    %v3251 = vunpack.c.l.b16 %v2753
    %v3252 = vunpack.c.h.b16 %v2753
    %v3253 = vunpack.c.l.b16 %v2754
    %v3254 = vunpack.c.h.b16 %v2754
    %v3255 = vunpack.c.l.b16 %v2755
    %v3256 = vunpack.c.h.b16 %v2755
    %v3257 = vunpack.c.l.b16 %v2756
    %v3258 = vunpack.c.h.b16 %v2756
    %v3259 = vunpack.c.l.b16 %v2757
    %v3260 = vunpack.c.h.b16 %v2757
    %v3261 = vunpack.c.l.b16 %v2758
    %v3262 = vunpack.c.h.b16 %v2758
    %v3263 = vunpack.c.l.b16 %v2759
    %v3264 = vunpack.c.h.b16 %v2759
    %v3265 = vunpack.c.l.b16 %v2760
    %v3266 = vunpack.c.h.b16 %v2760
    %v3267 = vunpack.c.l.b16 %v2761
    %v3268 = vunpack.c.h.b16 %v2761
    %v3269 = vunpack.c.l.b16 %v2762
    %v3270 = vunpack.c.h.b16 %v2762
    %v3271 = vunpack.c.l.b16 %v2763
    %v3272 = vunpack.c.h.b16 %v2763
    %v3273 = vunpack.c.l.b16 %v2764
    %v3274 = vunpack.c.h.b16 %v2764
    %v3275 = vunpack.c.l.b16 %v2765
    %v3276 = vunpack.c.h.b16 %v2765
    %v3277 = vunpack.c.l.b16 %v2766
    %v3278 = vunpack.c.h.b16 %v2766
    %v3279 = vunpack.c.l.b16 %v2767
    %v3280 = vunpack.c.h.b16 %v2767
    %v3281 = vunpack.c.l.b16 %v2768
    %v3282 = vunpack.c.h.b16 %v2768
    %v3283 = vunpack.c.l.b16 %v2769
    %v3284 = vunpack.c.h.b16 %v2769
    %v3285 = vunpack.c.l.b16 %v2770
    %v3286 = vunpack.c.h.b16 %v2770
    %v3287 = vunpack.c.l.b16 %v2771
    %v3288 = vunpack.c.h.b16 %v2771
    %v3289 = vunpack.c.l.b16 %v2772
    %v3290 = vunpack.c.h.b16 %v2772
    %v3291 = vunpack.c.l.b16 %v2773
    %v3292 = vunpack.c.h.b16 %v2773
    %v3293 = vunpack.c.l.b16 %v2774
    %v3294 = vunpack.c.h.b16 %v2774
    %v3295 = vunpack.c.l.b16 %v2775
    %v3296 = vunpack.c.h.b16 %v2775
    %v3297 = vunpack.c.l.b16 %v2776
    %v3298 = vunpack.c.h.b16 %v2776
    %v3299 = vunpack.c.l.b16 %v2777
    %v3300 = vunpack.c.h.b16 %v2777
    %v3301 = vunpack.c.l.b16 %v2778
    %v3302 = vunpack.c.h.b16 %v2778
    %v3303 = vunpack.c.l.b16 %v2779
    %v3304 = vunpack.c.h.b16 %v2779
    %v3305 = vunpack.c.l.b16 %v2780
    %v3306 = vunpack.c.h.b16 %v2780
    %v3307 = vunpack.c.l.b16 %v2781
    %v3308 = vunpack.c.h.b16 %v2781
    %v3309 = vunpack.c.l.b16 %v2782
    %v3310 = vunpack.c.h.b16 %v2782
    %v3311 = vunpack.c.l.b16 %v2783
    %v3312 = vunpack.c.h.b16 %v2783
    %v3313 = vunpack.c.l.b16 %v2784
    %v3314 = vunpack.c.h.b16 %v2784
    %v3315 = vunpack.c.l.b16 %v2785
    %v3316 = vunpack.c.h.b16 %v2785
    %v3317 = vunpack.c.l.b16 %v2786
    %v3318 = vunpack.c.h.b16 %v2786
    %v3319 = vunpack.c.l.b16 %v2787
    %v3320 = vunpack.c.h.b16 %v2787
    %v3321 = vunpack.c.l.b16 %v2788
    %v3322 = vunpack.c.h.b16 %v2788
    %v3323 = vunpack.c.l.b16 %v2789
    %v3324 = vunpack.c.h.b16 %v2789
    %v3325 = vunpack.c.l.b16 %v2790
    %v3326 = vunpack.c.h.b16 %v2790
    %v3327 = vunpack.c.l.b16 %v2791
    %v3328 = vunpack.c.h.b16 %v2791
    %v3329 = vunpack.c.l.b16 %v2792
    %v3330 = vunpack.c.h.b16 %v2792
    %v3331 = vunpack.c.l.b16 %v2793
    %v3332 = vunpack.c.h.b16 %v2793
    %v3333 = vunpack.c.l.b16 %v2794
    %v3334 = vunpack.c.h.b16 %v2794
    %v3335 = vunpack.c.l.b16 %v2795
    %v3336 = vunpack.c.h.b16 %v2795
    %v3337 = vunpack.c.l.b16 %v2796
    %v3338 = vunpack.c.h.b16 %v2796
    %v3339 = vunpack.c.l.b16 %v2797
    %v3340 = vunpack.c.h.b16 %v2797
    %v3341 = vunpack.c.l.b16 %v2798
    %v3342 = vunpack.c.h.b16 %v2798
    %v3343 = vunpack.c.l.b16 %v2799
    %v3344 = vunpack.c.h.b16 %v2799
    %v3345 = vunpack.c.l.b16 %v2800
    %v3346 = vunpack.c.h.b16 %v2800
    %v3347 = vunpack.c.l.b16 %v2801
    %v3348 = vunpack.c.h.b16 %v2801
    %v3349 = vunpack.c.l.b16 %v2802
    %v3350 = vunpack.c.h.b16 %v2802
    %v3351 = vunpack.c.l.b16 %v2803
    %v3352 = vunpack.c.h.b16 %v2803
    %v3353 = vunpack.c.l.b16 %v2804
    %v3354 = vunpack.c.h.b16 %v2804
    %v3355 = vunpack.c.l.b16 %v2805
    %v3356 = vunpack.c.h.b16 %v2805
    %v3357 = vunpack.c.l.b16 %v2806
    %v3358 = vunpack.c.h.b16 %v2806
    %v3359 = vunpack.c.l.b16 %v2807
    %v3360 = vunpack.c.h.b16 %v2807
    %v3361 = vunpack.c.l.b16 %v2808
    %v3362 = vunpack.c.h.b16 %v2808
    %v3363 = vunpack.c.l.b16 %v2809
    %v3364 = vunpack.c.h.b16 %v2809
    %v3365 = vunpack.c.l.b16 %v2810
    %v3366 = vunpack.c.h.b16 %v2810
    %v3367 = vunpack.c.l.b16 %v2811
    %v3368 = vunpack.c.h.b16 %v2811
    %v3369 = vunpack.c.l.b16 %v2812
    %v3370 = vunpack.c.h.b16 %v2812
    %v3371 = vunpack.c.l.b16 %v2813
    %v3372 = vunpack.c.h.b16 %v2813
    %v3373 = vunpack.c.l.b16 %v2814
    %v3374 = vunpack.c.h.b16 %v2814
    %v3375 = vunpack.c.l.b16 %v2815
    %v3376 = vunpack.c.h.b16 %v2815
    %v3377 = vunpack.c.l.b16 %v2816
    %v3378 = vunpack.c.h.b16 %v2816
    %v3379 = vunpack.c.l.b16 %v2817
    %v3380 = vunpack.c.h.b16 %v2817
    %v3381 = vunpack.c.l.b16 %v2818
    %v3382 = vunpack.c.h.b16 %v2818
    %v3383 = vunpack.c.l.b16 %v2819
    %v3384 = vunpack.c.h.b16 %v2819
    %v3385 = vunpack.c.l.b16 %v2820
    %v3386 = vunpack.c.h.b16 %v2820
    %v3387 = vunpack.c.l.b16 %v2821
    %v3388 = vunpack.c.h.b16 %v2821
    %v3389 = vunpack.c.l.b16 %v2822
    %v3390 = vunpack.c.h.b16 %v2822
    %v3391 = vunpack.c.l.b16 %v2823
    %v3392 = vunpack.c.h.b16 %v2823
    %v3393 = vunpack.c.l.b16 %v2824
    %v3394 = vunpack.c.h.b16 %v2824
    %v3395 = vunpack.c.l.b16 %v2825
    %v3396 = vunpack.c.h.b16 %v2825
    %v3397 = vunpack.c.l.b16 %v2826
    %v3398 = vunpack.c.h.b16 %v2826
    %v3399 = vunpack.c.l.b16 %v2827
    %v3400 = vunpack.c.h.b16 %v2827
    %v3401 = vunpack.c.l.b16 %v2828
    %v3402 = vunpack.c.h.b16 %v2828
    %v3403 = vunpack.c.l.b16 %v2829
    %v3404 = vunpack.c.h.b16 %v2829
    %v3405 = vunpack.c.l.b16 %v2830
    %v3406 = vunpack.c.h.b16 %v2830
    %v3407 = vunpack.c.l.b16 %v2831
    %v3408 = vunpack.c.h.b16 %v2831
    %v3409 = vunpack.c.l.b16 %v2832
    %v3410 = vunpack.c.h.b16 %v2832
    %v3411 = vunpack.c.l.b16 %v2833
    %v3412 = vunpack.c.h.b16 %v2833
    %v3413 = vunpack.c.l.b16 %v2834
    %v3414 = vunpack.c.h.b16 %v2834
    %v3415 = vunpack.c.l.b16 %v2835
    %v3416 = vunpack.c.h.b16 %v2835
    %v3417 = vunpack.c.l.b16 %v2836
    %v3418 = vunpack.c.h.b16 %v2836
    %v3419 = vunpack.c.l.b16 %v2837
    %v3420 = vunpack.c.h.b16 %v2837
    %v3421 = vunpack.c.l.b16 %v2838
    %v3422 = vunpack.c.h.b16 %v2838
    %v3423 = vunpack.c.l.b16 %v2839
    %v3424 = vunpack.c.h.b16 %v2839
    %v3425 = vunpack.c.l.b16 %v2840
    %v3426 = vunpack.c.h.b16 %v2840
    %v3427 = vunpack.c.l.b16 %v2841
    %v3428 = vunpack.c.h.b16 %v2841
    %v3429 = vunpack.c.l.b16 %v2842
    %v3430 = vunpack.c.h.b16 %v2842
    %v3431 = vunpack.c.l.b16 %v2843
    %v3432 = vunpack.c.h.b16 %v2843
    %v3433 = vunpack.c.l.b16 %v2844
    %v3434 = vunpack.c.h.b16 %v2844
    %v3435 = vunpack.c.l.b16 %v2845
    %v3436 = vunpack.c.h.b16 %v2845
    %v3437 = vunpack.c.l.b16 %v2846
    %v3438 = vunpack.c.h.b16 %v2846
    %v3439 = vunpack.c.l.b16 %v2847
    %v3440 = vunpack.c.h.b16 %v2847
    %v3441 = vunpack.c.l.b16 %v2848
    %v3442 = vunpack.c.h.b16 %v2848
    %v3443 = vunpack.c.l.b16 %v2849
    %v3444 = vunpack.c.h.b16 %v2849
    %v3445 = vunpack.c.l.b16 %v2850
    %v3446 = vunpack.c.h.b16 %v2850
    %v3447 = vunpack.c.l.b16 %v2851
    %v3448 = vunpack.c.h.b16 %v2851
    %v3449 = vunpack.c.l.b16 %v2852
    %v3450 = vunpack.c.h.b16 %v2852
    %v3451 = vpack.c.b16 %v3071, %v3067
    %v3452 = vpack.c.b16 %v3072, %v3068
    %v3453 = vpack.c.b16 %v3073, %v3069
    %v3454 = vpack.c.b16 %v3074, %v3070
    %v3455 = vpack.c.b16 %v3079, %v3075
    %v3456 = vpack.c.b16 %v3080, %v3076
    %v3457 = vpack.c.b16 %v3081, %v3077
    %v3458 = vpack.c.b16 %v3082, %v3078
    %v3459 = vpack.c.b16 %v3087, %v3083
    %v3460 = vpack.c.b16 %v3088, %v3084
    %v3461 = vpack.c.b16 %v3089, %v3085
    %v3462 = vpack.c.b16 %v3090, %v3086
    %v3463 = vpack.c.b16 %v3095, %v3091
    %v3464 = vpack.c.b16 %v3096, %v3092
    %v3465 = vpack.c.b16 %v3097, %v3093
    %v3466 = vpack.c.b16 %v3098, %v3094
    %v3467 = vpack.c.b16 %v3103, %v3099
    %v3468 = vpack.c.b16 %v3104, %v3100
    %v3469 = vpack.c.b16 %v3105, %v3101
    %v3470 = vpack.c.b16 %v3106, %v3102
    %v3471 = vpack.c.b16 %v3111, %v3107
    %v3472 = vpack.c.b16 %v3112, %v3108
    %v3473 = vpack.c.b16 %v3113, %v3109
    %v3474 = vpack.c.b16 %v3114, %v3110
    %v3475 = vpack.c.b16 %v3119, %v3115
    %v3476 = vpack.c.b16 %v3120, %v3116
    %v3477 = vpack.c.b16 %v3121, %v3117
    %v3478 = vpack.c.b16 %v3122, %v3118
    %v3479 = vpack.c.b16 %v3127, %v3123
    %v3480 = vpack.c.b16 %v3128, %v3124
    %v3481 = vpack.c.b16 %v3129, %v3125
    %v3482 = vpack.c.b16 %v3130, %v3126
    %v3483 = vpack.c.b16 %v3135, %v3131
    %v3484 = vpack.c.b16 %v3136, %v3132
    %v3485 = vpack.c.b16 %v3137, %v3133
    %v3486 = vpack.c.b16 %v3138, %v3134
    %v3487 = vpack.c.b16 %v3143, %v3139
    %v3488 = vpack.c.b16 %v3144, %v3140
    %v3489 = vpack.c.b16 %v3145, %v3141
    %v3490 = vpack.c.b16 %v3146, %v3142
    %v3491 = vpack.c.b16 %v3151, %v3147
    %v3492 = vpack.c.b16 %v3152, %v3148
    %v3493 = vpack.c.b16 %v3153, %v3149
    %v3494 = vpack.c.b16 %v3154, %v3150
    %v3495 = vpack.c.b16 %v3159, %v3155
    %v3496 = vpack.c.b16 %v3160, %v3156
    %v3497 = vpack.c.b16 %v3161, %v3157
    %v3498 = vpack.c.b16 %v3162, %v3158
    %v3499 = vpack.c.b16 %v3167, %v3163
    %v3500 = vpack.c.b16 %v3168, %v3164
    %v3501 = vpack.c.b16 %v3169, %v3165
    %v3502 = vpack.c.b16 %v3170, %v3166
    %v3503 = vpack.c.b16 %v3175, %v3171
    %v3504 = vpack.c.b16 %v3176, %v3172
    %v3505 = vpack.c.b16 %v3177, %v3173
    %v3506 = vpack.c.b16 %v3178, %v3174
    %v3507 = vpack.c.b16 %v3183, %v3179
    %v3508 = vpack.c.b16 %v3184, %v3180
    %v3509 = vpack.c.b16 %v3185, %v3181
    %v3510 = vpack.c.b16 %v3186, %v3182
    %v3511 = vpack.c.b16 %v3191, %v3187
    %v3512 = vpack.c.b16 %v3192, %v3188
    %v3513 = vpack.c.b16 %v3193, %v3189
    %v3514 = vpack.c.b16 %v3194, %v3190
    %v3515 = vpack.c.b16 %v3199, %v3195
    %v3516 = vpack.c.b16 %v3200, %v3196
    %v3517 = vpack.c.b16 %v3201, %v3197
    %v3518 = vpack.c.b16 %v3202, %v3198
    %v3519 = vpack.c.b16 %v3207, %v3203
    %v3520 = vpack.c.b16 %v3208, %v3204
    %v3521 = vpack.c.b16 %v3209, %v3205
    %v3522 = vpack.c.b16 %v3210, %v3206
    %v3523 = vpack.c.b16 %v3215, %v3211
    %v3524 = vpack.c.b16 %v3216, %v3212
    %v3525 = vpack.c.b16 %v3217, %v3213
    %v3526 = vpack.c.b16 %v3218, %v3214
    %v3527 = vpack.c.b16 %v3223, %v3219
    %v3528 = vpack.c.b16 %v3224, %v3220
    %v3529 = vpack.c.b16 %v3225, %v3221
    %v3530 = vpack.c.b16 %v3226, %v3222
    %v3531 = vpack.c.b16 %v3231, %v3227
    %v3532 = vpack.c.b16 %v3232, %v3228
    %v3533 = vpack.c.b16 %v3233, %v3229
    %v3534 = vpack.c.b16 %v3234, %v3230
    %v3535 = vpack.c.b16 %v3239, %v3235
    %v3536 = vpack.c.b16 %v3240, %v3236
    %v3537 = vpack.c.b16 %v3241, %v3237
    %v3538 = vpack.c.b16 %v3242, %v3238
    %v3539 = vpack.c.b16 %v3247, %v3243
    %v3540 = vpack.c.b16 %v3248, %v3244
    %v3541 = vpack.c.b16 %v3249, %v3245
    %v3542 = vpack.c.b16 %v3250, %v3246
    %v3543 = vpack.c.b16 %v3255, %v3251
    %v3544 = vpack.c.b16 %v3256, %v3252
    %v3545 = vpack.c.b16 %v3257, %v3253
    %v3546 = vpack.c.b16 %v3258, %v3254
    %v3547 = vpack.c.b16 %v3263, %v3259
    %v3548 = vpack.c.b16 %v3264, %v3260
    %v3549 = vpack.c.b16 %v3265, %v3261
    %v3550 = vpack.c.b16 %v3266, %v3262
    %v3551 = vpack.c.b16 %v3271, %v3267
    %v3552 = vpack.c.b16 %v3272, %v3268
    %v3553 = vpack.c.b16 %v3273, %v3269
    %v3554 = vpack.c.b16 %v3274, %v3270
    %v3555 = vpack.c.b16 %v3279, %v3275
    %v3556 = vpack.c.b16 %v3280, %v3276
    %v3557 = vpack.c.b16 %v3281, %v3277
    %v3558 = vpack.c.b16 %v3282, %v3278
    %v3559 = vpack.c.b16 %v3287, %v3283
    %v3560 = vpack.c.b16 %v3288, %v3284
    %v3561 = vpack.c.b16 %v3289, %v3285
    %v3562 = vpack.c.b16 %v3290, %v3286
    %v3563 = vpack.c.b16 %v3295, %v3291
    %v3564 = vpack.c.b16 %v3296, %v3292
    %v3565 = vpack.c.b16 %v3297, %v3293
    %v3566 = vpack.c.b16 %v3298, %v3294
    %v3567 = vpack.c.b16 %v3303, %v3299
    %v3568 = vpack.c.b16 %v3304, %v3300
    %v3569 = vpack.c.b16 %v3305, %v3301
    %v3570 = vpack.c.b16 %v3306, %v3302
    %v3571 = vpack.c.b16 %v3311, %v3307
    %v3572 = vpack.c.b16 %v3312, %v3308
    %v3573 = vpack.c.b16 %v3313, %v3309
    %v3574 = vpack.c.b16 %v3314, %v3310
    %v3575 = vpack.c.b16 %v3319, %v3315
    %v3576 = vpack.c.b16 %v3320, %v3316
    %v3577 = vpack.c.b16 %v3321, %v3317
    %v3578 = vpack.c.b16 %v3322, %v3318
    %v3579 = vpack.c.b16 %v3327, %v3323
    %v3580 = vpack.c.b16 %v3328, %v3324
    %v3581 = vpack.c.b16 %v3329, %v3325
    %v3582 = vpack.c.b16 %v3330, %v3326
    %v3583 = vpack.c.b16 %v3335, %v3331
    %v3584 = vpack.c.b16 %v3336, %v3332
    %v3585 = vpack.c.b16 %v3337, %v3333
    %v3586 = vpack.c.b16 %v3338, %v3334
    %v3587 = vpack.c.b16 %v3343, %v3339
    %v3588 = vpack.c.b16 %v3344, %v3340
    %v3589 = vpack.c.b16 %v3345, %v3341
    %v3590 = vpack.c.b16 %v3346, %v3342
    %v3591 = vpack.c.b16 %v3351, %v3347
    %v3592 = vpack.c.b16 %v3352, %v3348
    %v3593 = vpack.c.b16 %v3353, %v3349
    %v3594 = vpack.c.b16 %v3354, %v3350
    %v3595 = vpack.c.b16 %v3359, %v3355
    %v3596 = vpack.c.b16 %v3360, %v3356
    %v3597 = vpack.c.b16 %v3361, %v3357
    %v3598 = vpack.c.b16 %v3362, %v3358
    %v3599 = vpack.c.b16 %v3367, %v3363
    %v3600 = vpack.c.b16 %v3368, %v3364
    %v3601 = vpack.c.b16 %v3369, %v3365
    %v3602 = vpack.c.b16 %v3370, %v3366
    %v3603 = vpack.c.b16 %v3375, %v3371
    %v3604 = vpack.c.b16 %v3376, %v3372
    %v3605 = vpack.c.b16 %v3377, %v3373
    %v3606 = vpack.c.b16 %v3378, %v3374
    %v3607 = vpack.c.b16 %v3383, %v3379
    %v3608 = vpack.c.b16 %v3384, %v3380
    %v3609 = vpack.c.b16 %v3385, %v3381
    %v3610 = vpack.c.b16 %v3386, %v3382
    %v3611 = vpack.c.b16 %v3391, %v3387
    %v3612 = vpack.c.b16 %v3392, %v3388
    %v3613 = vpack.c.b16 %v3393, %v3389
    %v3614 = vpack.c.b16 %v3394, %v3390
    %v3615 = vpack.c.b16 %v3399, %v3395
    %v3616 = vpack.c.b16 %v3400, %v3396
    %v3617 = vpack.c.b16 %v3401, %v3397
    %v3618 = vpack.c.b16 %v3402, %v3398
    %v3619 = vpack.c.b16 %v3407, %v3403
    %v3620 = vpack.c.b16 %v3408, %v3404
    %v3621 = vpack.c.b16 %v3409, %v3405
    %v3622 = vpack.c.b16 %v3410, %v3406
    %v3623 = vpack.c.b16 %v3415, %v3411
    %v3624 = vpack.c.b16 %v3416, %v3412
    %v3625 = vpack.c.b16 %v3417, %v3413
    %v3626 = vpack.c.b16 %v3418, %v3414
    %v3627 = vpack.c.b16 %v3423, %v3419
    %v3628 = vpack.c.b16 %v3424, %v3420
    %v3629 = vpack.c.b16 %v3425, %v3421
    %v3630 = vpack.c.b16 %v3426, %v3422
    %v3631 = vpack.c.b16 %v3431, %v3427
    %v3632 = vpack.c.b16 %v3432, %v3428
    %v3633 = vpack.c.b16 %v3433, %v3429
    %v3634 = vpack.c.b16 %v3434, %v3430
    %v3635 = vpack.c.b16 %v3439, %v3435
    %v3636 = vpack.c.b16 %v3440, %v3436
    %v3637 = vpack.c.b16 %v3441, %v3437
    %v3638 = vpack.c.b16 %v3442, %v3438
    %v3639 = vpack.c.b16 %v3447, %v3443
    %v3640 = vpack.c.b16 %v3448, %v3444
    %v3641 = vpack.c.b16 %v3449, %v3445
    %v3642 = vpack.c.b16 %v3450, %v3446
    %3835 = vmatprep.subr.bf16.mxu0 %v3452
    %3836 = vmatpush1.bf16.msra.mxu0 %v3451
    %3837 = vmatprep.subr.bf16.mxu0 %v3456
    %3838 = vmatpush1.bf16.msra.mxu0 %v3455
    %3839 = vmatprep.subr.bf16.mxu0 %v3460
    %3840 = vmatpush1.bf16.msra.mxu0 %v3459
    %3841 = vmatprep.subr.bf16.mxu0 %v3464
    %3842 = vmatpush1.bf16.msra.mxu0 %v3463
    %3843 = vmatprep.subr.bf16.mxu0 %v3468
    %3844 = vmatpush1.bf16.msra.mxu0 %v3467
    %3845 = vmatprep.subr.bf16.mxu0 %v3472
    %3846 = vmatpush1.bf16.msra.mxu0 %v3471
    %3847 = vmatprep.subr.bf16.mxu0 %v3476
    %3848 = vmatpush1.bf16.msra.mxu0 %v3475
    %3849 = vmatprep.subr.bf16.mxu0 %v3480
    %3850 = vmatpush1.bf16.msra.mxu0 %v3479
    %3851 = vmatprep.subr.bf16.mxu0 %v3484
    %3852 = vmatpush1.bf16.msra.mxu0 %v3483
    %3853 = vmatprep.subr.bf16.mxu0 %v3488
    %3854 = vmatpush1.bf16.msra.mxu0 %v3487
    %3855 = vmatprep.subr.bf16.mxu0 %v3492
    %3856 = vmatpush1.bf16.msra.mxu0 %v3491
    %3857 = vmatprep.subr.bf16.mxu0 %v3496
    %3858 = vmatpush1.bf16.msra.mxu0 %v3495
    %3859 = vmatprep.subr.bf16.mxu0 %v3500
    %3860 = vmatpush1.bf16.msra.mxu0 %v3499
    %3861 = vmatprep.subr.bf16.mxu0 %v3504
    %3862 = vmatpush1.bf16.msra.mxu0 %v3503
    %3863 = vmatprep.subr.bf16.mxu0 %v3508
    %3864 = vmatpush1.bf16.msra.mxu0 %v3507
    %3865 = vmatprep.subr.bf16.mxu0 %v3512
    %3866 = vmatpush1.bf16.msra.mxu0 %v3511
    %3867 = vmatprep.mubr.bf16.mxu0 %v2656
    %3868 = vmatmul.mubr.bf16.gmra.mrb[0].mxu0 %v2655
    %v3869 = vpop.f32.mrb[0].mxu0
    %v3870 = vadd.f32 %v2858, %v3869
    %v3871 = vpop.f32.mrb[0].mxu0
    %v3872 = vadd.f32 %v2862, %v3871
    %v3873 = vpop.f32.mrb[0].mxu0
    %v3874 = vpop.f32.mrb[0].mxu0
    %3875 = vdwg.mxu0
    %3876 = vmatprep.subr.bf16.mxu0 %v3516
    %3877 = vmatpush1.bf16.msra.mxu0 %v3515
    %3878 = vmatprep.subr.bf16.mxu0 %v3520
    %3879 = vmatpush1.bf16.msra.mxu0 %v3519
    %3880 = vmatprep.subr.bf16.mxu0 %v3524
    %3881 = vmatpush1.bf16.msra.mxu0 %v3523
    %3882 = vmatprep.subr.bf16.mxu0 %v3528
    %3883 = vmatpush1.bf16.msra.mxu0 %v3527
    %3884 = vmatprep.subr.bf16.mxu0 %v3532
    %3885 = vmatpush1.bf16.msra.mxu0 %v3531
    %3886 = vmatprep.subr.bf16.mxu0 %v3536
    %3887 = vmatpush1.bf16.msra.mxu0 %v3535
    %3888 = vmatprep.subr.bf16.mxu0 %v3540
    %3889 = vmatpush1.bf16.msra.mxu0 %v3539
    %3890 = vmatprep.subr.bf16.mxu0 %v3544
    %3891 = vmatpush1.bf16.msra.mxu0 %v3543
    %3892 = vmatprep.subr.bf16.mxu0 %v3548
    %3893 = vmatpush1.bf16.msra.mxu0 %v3547
    %3894 = vmatprep.subr.bf16.mxu0 %v3552
    %3895 = vmatpush1.bf16.msra.mxu0 %v3551
    %3896 = vmatprep.subr.bf16.mxu0 %v3556
    %3897 = vmatpush1.bf16.msra.mxu0 %v3555
    %3898 = vmatprep.subr.bf16.mxu0 %v3560
    %3899 = vmatpush1.bf16.msra.mxu0 %v3559
    %3900 = vmatprep.subr.bf16.mxu0 %v3564
    %3901 = vmatpush1.bf16.msra.mxu0 %v3563
    %3902 = vmatprep.subr.bf16.mxu0 %v3568
    %3903 = vmatpush1.bf16.msra.mxu0 %v3567
    %3904 = vmatprep.subr.bf16.mxu0 %v3572
    %3905 = vmatpush1.bf16.msra.mxu0 %v3571
    %3906 = vmatprep.subr.bf16.mxu0 %v3576
    %3907 = vmatpush1.bf16.msra.mxu0 %v3575
    %3908 = vmatprep.mubr.bf16.mxu0 %v2658
    %3909 = vmatmul.mubr.bf16.gmra.mrb[0].mxu0 %v2657
    %v3910 = vpop.f32.mrb[0].mxu0
    %v3911 = vadd.f32 %v3870, %v3910
    %v3912 = vpop.f32.mrb[0].mxu0
    %v3913 = vadd.f32 %v3872, %v3912
    %v3914 = vpop.f32.mrb[0].mxu0
    %v3915 = vpop.f32.mrb[0].mxu0
    %3916 = vdwg.mxu0
    %3917 = vmatprep.subr.bf16.mxu0 %v3580
    %3918 = vmatpush1.bf16.msra.mxu0 %v3579
    %3919 = vmatprep.subr.bf16.mxu0 %v3584
    %3920 = vmatpush1.bf16.msra.mxu0 %v3583
    %3921 = vmatprep.subr.bf16.mxu0 %v3588
    %3922 = vmatpush1.bf16.msra.mxu0 %v3587
    %3923 = vmatprep.subr.bf16.mxu0 %v3592
    %3924 = vmatpush1.bf16.msra.mxu0 %v3591
    %3925 = vmatprep.subr.bf16.mxu0 %v3596
    %3926 = vmatpush1.bf16.msra.mxu0 %v3595
    %3927 = vmatprep.subr.bf16.mxu0 %v3600
    %3928 = vmatpush1.bf16.msra.mxu0 %v3599
    %3929 = vmatprep.subr.bf16.mxu0 %v3604
    %3930 = vmatpush1.bf16.msra.mxu0 %v3603
    %3931 = vmatprep.subr.bf16.mxu0 %v3608
    %3932 = vmatpush1.bf16.msra.mxu0 %v3607
    %3933 = vmatprep.subr.bf16.mxu0 %v3612
    %3934 = vmatpush1.bf16.msra.mxu0 %v3611
    %3935 = vmatprep.subr.bf16.mxu0 %v3616
    %3936 = vmatpush1.bf16.msra.mxu0 %v3615
    %3937 = vmatprep.subr.bf16.mxu0 %v3620
    %3938 = vmatpush1.bf16.msra.mxu0 %v3619
    %3939 = vmatprep.subr.bf16.mxu0 %v3624
    %3940 = vmatpush1.bf16.msra.mxu0 %v3623
    %3941 = vmatprep.subr.bf16.mxu0 %v3628
    %3942 = vmatpush1.bf16.msra.mxu0 %v3627
    %3943 = vmatprep.subr.bf16.mxu0 %v3632
    %3944 = vmatpush1.bf16.msra.mxu0 %v3631
    %3945 = vmatprep.subr.bf16.mxu0 %v3636
    %3946 = vmatpush1.bf16.msra.mxu0 %v3635
    %3947 = vmatprep.subr.bf16.mxu0 %v3640
    %3948 = vmatpush1.bf16.msra.mxu0 %v3639
    %3949 = vmatprep.mubr.bf16.mxu0 %v2660
    %3950 = vmatmul.mubr.bf16.gmra.mrb[0].mxu0 %v2659
    %v3951 = vpop.f32.mrb[0].mxu0
    %v3952 = vadd.f32 %v3911, %v3951
    %v3953 = vpop.f32.mrb[0].mxu0
    %v3954 = vadd.f32 %v3913, %v3953
    %v3955 = vpop.f32.mrb[0].mxu0
    %v3956 = vpop.f32.mrb[0].mxu0
    %3957 = vdwg.mxu0
    %3958 = vmatprep.subr.bf16.mxu0 %v3454
    %3959 = vmatpush1.bf16.msra.mxu0 %v3453
    %3960 = vmatprep.subr.bf16.mxu0 %v3458
    %3961 = vmatpush1.bf16.msra.mxu0 %v3457
    %3962 = vmatprep.subr.bf16.mxu0 %v3462
    %3963 = vmatpush1.bf16.msra.mxu0 %v3461
    %3964 = vmatprep.subr.bf16.mxu0 %v3466
    %3965 = vmatpush1.bf16.msra.mxu0 %v3465
    %3966 = vmatprep.subr.bf16.mxu0 %v3470
    %3967 = vmatpush1.bf16.msra.mxu0 %v3469
    %3968 = vmatprep.subr.bf16.mxu0 %v3474
    %3969 = vmatpush1.bf16.msra.mxu0 %v3473
    %3970 = vmatprep.subr.bf16.mxu0 %v3478
    %3971 = vmatpush1.bf16.msra.mxu0 %v3477
    %3972 = vmatprep.subr.bf16.mxu0 %v3482
    %3973 = vmatpush1.bf16.msra.mxu0 %v3481
    %3974 = vmatprep.subr.bf16.mxu0 %v3486
    %3975 = vmatpush1.bf16.msra.mxu0 %v3485
    %3976 = vmatprep.subr.bf16.mxu0 %v3490
    %3977 = vmatpush1.bf16.msra.mxu0 %v3489
    %3978 = vmatprep.subr.bf16.mxu0 %v3494
    %3979 = vmatpush1.bf16.msra.mxu0 %v3493
    %3980 = vmatprep.subr.bf16.mxu0 %v3498
    %3981 = vmatpush1.bf16.msra.mxu0 %v3497
    %3982 = vmatprep.subr.bf16.mxu0 %v3502
    %3983 = vmatpush1.bf16.msra.mxu0 %v3501
    %3984 = vmatprep.subr.bf16.mxu0 %v3506
    %3985 = vmatpush1.bf16.msra.mxu0 %v3505
    %3986 = vmatprep.subr.bf16.mxu0 %v3510
    %3987 = vmatpush1.bf16.msra.mxu0 %v3509
    %3988 = vmatprep.subr.bf16.mxu0 %v3514
    %3989 = vmatpush1.bf16.msra.mxu0 %v3513
    %3990 = vmatprep.mubr.bf16.mxu0 %v2656
    %3991 = vmatmul.mubr.bf16.gmra.mrb[0].mxu0 %v2655
    %v3992 = vpop.f32.mrb[0].mxu0
    %v3993 = vadd.f32 %v2866, %v3992
    %v3994 = vpop.f32.mrb[0].mxu0
    %v3995 = vadd.f32 %v2870, %v3994
    %v3996 = vpop.f32.mrb[0].mxu0
    %v3997 = vpop.f32.mrb[0].mxu0
    %3998 = vdwg.mxu0
    %3999 = vmatprep.subr.bf16.mxu0 %v3518
    %4000 = vmatpush1.bf16.msra.mxu0 %v3517
    %4001 = vmatprep.subr.bf16.mxu0 %v3522
    %4002 = vmatpush1.bf16.msra.mxu0 %v3521
    %4003 = vmatprep.subr.bf16.mxu0 %v3526
    %4004 = vmatpush1.bf16.msra.mxu0 %v3525
    %4005 = vmatprep.subr.bf16.mxu0 %v3530
    %4006 = vmatpush1.bf16.msra.mxu0 %v3529
    %4007 = vmatprep.subr.bf16.mxu0 %v3534
    %4008 = vmatpush1.bf16.msra.mxu0 %v3533
    %4009 = vmatprep.subr.bf16.mxu0 %v3538
    %4010 = vmatpush1.bf16.msra.mxu0 %v3537
    %4011 = vmatprep.subr.bf16.mxu0 %v3542
    %4012 = vmatpush1.bf16.msra.mxu0 %v3541
    %4013 = vmatprep.subr.bf16.mxu0 %v3546
    %4014 = vmatpush1.bf16.msra.mxu0 %v3545
    %4015 = vmatprep.subr.bf16.mxu0 %v3550
    %4016 = vmatpush1.bf16.msra.mxu0 %v3549
    %4017 = vmatprep.subr.bf16.mxu0 %v3554
    %4018 = vmatpush1.bf16.msra.mxu0 %v3553
    %4019 = vmatprep.subr.bf16.mxu0 %v3558
    %4020 = vmatpush1.bf16.msra.mxu0 %v3557
    %4021 = vmatprep.subr.bf16.mxu0 %v3562
    %4022 = vmatpush1.bf16.msra.mxu0 %v3561
    %4023 = vmatprep.subr.bf16.mxu0 %v3566
    %4024 = vmatpush1.bf16.msra.mxu0 %v3565
    %4025 = vmatprep.subr.bf16.mxu0 %v3570
    %4026 = vmatpush1.bf16.msra.mxu0 %v3569
    %4027 = vmatprep.subr.bf16.mxu0 %v3574
    %4028 = vmatpush1.bf16.msra.mxu0 %v3573
    %4029 = vmatprep.subr.bf16.mxu0 %v3578
    %4030 = vmatpush1.bf16.msra.mxu0 %v3577
    %4031 = vmatprep.mubr.bf16.mxu0 %v2658
    %4032 = vmatmul.mubr.bf16.gmra.mrb[0].mxu0 %v2657
    %v4033 = vpop.f32.mrb[0].mxu0
    %v4034 = vadd.f32 %v3993, %v4033
    %v4035 = vpop.f32.mrb[0].mxu0
    %v4036 = vadd.f32 %v3995, %v4035
    %v4037 = vpop.f32.mrb[0].mxu0
    %v4038 = vpop.f32.mrb[0].mxu0
    %4039 = vdwg.mxu0
    %4040 = vmatprep.subr.bf16.mxu0 %v3582
    %4041 = vmatpush1.bf16.msra.mxu0 %v3581
    %4042 = vmatprep.subr.bf16.mxu0 %v3586
    %4043 = vmatpush1.bf16.msra.mxu0 %v3585
    %4044 = vmatprep.subr.bf16.mxu0 %v3590
    %4045 = vmatpush1.bf16.msra.mxu0 %v3589
    %4046 = vmatprep.subr.bf16.mxu0 %v3594
    %4047 = vmatpush1.bf16.msra.mxu0 %v3593
    %4048 = vmatprep.subr.bf16.mxu0 %v3598
    %4049 = vmatpush1.bf16.msra.mxu0 %v3597
    %4050 = vmatprep.subr.bf16.mxu0 %v3602
    %4051 = vmatpush1.bf16.msra.mxu0 %v3601
    %4052 = vmatprep.subr.bf16.mxu0 %v3606
    %4053 = vmatpush1.bf16.msra.mxu0 %v3605
    %4054 = vmatprep.subr.bf16.mxu0 %v3610
    %4055 = vmatpush1.bf16.msra.mxu0 %v3609
    %4056 = vmatprep.subr.bf16.mxu0 %v3614
    %4057 = vmatpush1.bf16.msra.mxu0 %v3613
    %4058 = vmatprep.subr.bf16.mxu0 %v3618
    %4059 = vmatpush1.bf16.msra.mxu0 %v3617
    %4060 = vmatprep.subr.bf16.mxu0 %v3622
    %4061 = vmatpush1.bf16.msra.mxu0 %v3621
    %4062 = vmatprep.subr.bf16.mxu0 %v3626
    %4063 = vmatpush1.bf16.msra.mxu0 %v3625
    %4064 = vmatprep.subr.bf16.mxu0 %v3630
    %4065 = vmatpush1.bf16.msra.mxu0 %v3629
    %4066 = vmatprep.subr.bf16.mxu0 %v3634
    %4067 = vmatpush1.bf16.msra.mxu0 %v3633
    %4068 = vmatprep.subr.bf16.mxu0 %v3638
    %4069 = vmatpush1.bf16.msra.mxu0 %v3637
    %4070 = vmatprep.subr.bf16.mxu0 %v3642
    %4071 = vmatpush1.bf16.msra.mxu0 %v3641
    %4072 = vmatprep.mubr.bf16.mxu0 %v2660
    %4073 = vmatmul.mubr.bf16.gmra.mrb[0].mxu0 %v2659
    %v4074 = vpop.f32.mrb[0].mxu0
    %v4075 = vadd.f32 %v4034, %v4074
    %v4076 = vpop.f32.mrb[0].mxu0
    %v4077 = vadd.f32 %v4036, %v4076
    %v4078 = vpop.f32.mrb[0].mxu0
    %v4079 = vpop.f32.mrb[0].mxu0
    %4080 = vdwg.mxu0
    %v4081 = vmax.f32 %v3952, 0.0
    %v4082 = vmax.f32 %v3954, 0.0
    %v4083 = vmax.f32 %v4075, 0.0
    %v4084 = vmax.f32 %v4077, 0.0
    %v4085 = vmax.f32 %v4081, %v4082
    %v4086 = vmax.f32 %v4083, %v4084
    %v4087 = vmax.f32 %v4085, %v4086
    %v4088 = vpack.c.bf16 %v4087, %v4087
    %v4089 = vld [vmem:[#allocation11] sm:$0xf]
    %v4090 = vld [vmem:[#allocation11 + $0x4] sm:$0xf]
    %v4091 = vld [vmem:[#allocation11 + $0x8] sm:$0xf]
    %v4092 = vld [vmem:[#allocation11 + $0xc] sm:$0xf]
    %v4093 = vld [vmem:[#allocation11 + $0x10] sm:$0xf]
    %v4094 = vld [vmem:[#allocation11 + $0x14] sm:$0xf]
    %v4095 = vld [vmem:[#allocation11 + $0x18] sm:$0xf]
    %v4096 = vld [vmem:[#allocation11 + $0x1c] sm:$0xf]
    %v4097 = vld [vmem:[#allocation11 + $0x20] sm:$0xf]
    %v4098 = vld [vmem:[#allocation11 + $0x24] sm:$0xf]
    %v4099 = vld [vmem:[#allocation11 + $0x28] sm:$0xf]
    %v4100 = vld [vmem:[#allocation11 + $0x2c] sm:$0xf]
    %v4101 = vld [vmem:[#allocation11 + $0x30] sm:$0xf]
    %v4102 = vld [vmem:[#allocation11 + $0x34] sm:$0xf]
    %v4103 = vld [vmem:[#allocation11 + $0x38] sm:$0xf]
    %v4104 = vld [vmem:[#allocation11 + $0x3c] sm:$0xf]
    %v4105 = vld [vmem:[#allocation13] sm:$0x1]
    %v4107 = vlaneseq
    %v4108 = vshrl.u32 %v4107, 7
    %v4109 = vsub.s32 0, %v4108
    %v4110 = vrot.slane %v4105, %v4109
    %v4128 = vunpack.c.l.b16 %v4089
    %v4129 = vunpack.c.l.b16 %v4090
    %v4130 = vunpack.c.l.b16 %v4091
    %v4131 = vunpack.c.l.b16 %v4092
    %v4132 = vunpack.c.l.b16 %v4093
    %v4133 = vunpack.c.l.b16 %v4094
    %v4134 = vunpack.c.l.b16 %v4095
    %v4135 = vunpack.c.l.b16 %v4096
    %v4136 = vunpack.c.l.b16 %v4097
    %v4137 = vunpack.c.l.b16 %v4098
    %v4138 = vunpack.c.l.b16 %v4099
    %v4139 = vunpack.c.l.b16 %v4100
    %v4140 = vunpack.c.l.b16 %v4101
    %v4141 = vunpack.c.l.b16 %v4102
    %v4142 = vunpack.c.l.b16 %v4103
    %v4143 = vunpack.c.l.b16 %v4104
    %v4144 = vpack.c.b16 %v4129, %v4128
    %v4145 = vpack.c.b16 %v4131, %v4130
    %v4146 = vpack.c.b16 %v4133, %v4132
    %v4147 = vpack.c.b16 %v4135, %v4134
    %v4148 = vpack.c.b16 %v4137, %v4136
    %v4149 = vpack.c.b16 %v4139, %v4138
    %v4150 = vpack.c.b16 %v4141, %v4140
    %v4151 = vpack.c.b16 %v4143, %v4142
    %4160 = vmatprep.subr.bf16.mxu0 0
    %4161 = vmatpush1.bf16.msra.mxu0 %v4144
    %4162 = vmatprep.subr.bf16.mxu0 0
    %4163 = vmatpush1.bf16.msra.mxu0 %v4145
    %4164 = vmatprep.subr.bf16.mxu0 0
    %4165 = vmatpush1.bf16.msra.mxu0 %v4146
    %4166 = vmatprep.subr.bf16.mxu0 0
    %4167 = vmatpush1.bf16.msra.mxu0 %v4147
    %4168 = vmatprep.subr.bf16.mxu0 0
    %4169 = vmatpush1.bf16.msra.mxu0 %v4148
    %4170 = vmatprep.subr.bf16.mxu0 0
    %4171 = vmatpush1.bf16.msra.mxu0 %v4149
    %4172 = vmatprep.subr.bf16.mxu0 0
    %4173 = vmatpush1.bf16.msra.mxu0 %v4150
    %4174 = vmatprep.subr.bf16.mxu0 0
    %4175 = vmatpush1.bf16.msra.mxu0 %v4151
    %4176 = vmatprep.subr.bf16.mxu0 0
    %4177 = vmatpush1.bf16.msra.mxu0 0
    %4178 = vmatprep.subr.bf16.mxu0 0
    %4179 = vmatpush1.bf16.msra.mxu0 0
    %4180 = vmatprep.subr.bf16.mxu0 0
    %4181 = vmatpush1.bf16.msra.mxu0 0
    %4182 = vmatprep.subr.bf16.mxu0 0
    %4183 = vmatpush1.bf16.msra.mxu0 0
    %4184 = vmatprep.subr.bf16.mxu0 0
    %4185 = vmatpush1.bf16.msra.mxu0 0
    %4186 = vmatprep.subr.bf16.mxu0 0
    %4187 = vmatpush1.bf16.msra.mxu0 0
    %4188 = vmatprep.subr.bf16.mxu0 0
    %4189 = vmatpush1.bf16.msra.mxu0 0
    %4190 = vmatprep.subr.bf16.mxu0 0
    %4191 = vmatpush1.bf16.msra.mxu0 0
    %4192 = vmatprep.mubr.bf16.mxu0 0
    %4193 = vmatmul.mubr.bf16.gmra.mrb[0].mxu0 %v4088
    %v4194 = vpop.f32.mrb[0].mxu0
    %v4195 = vadd.f32 %v4110, %v4194
    %v4196 = vpop.f32.mrb[0].mxu0
    %v4197 = vpop.f32.mrb[0].mxu0
    %v4198 = vpop.f32.mrb[0].mxu0
    %4199 = vdwg.mxu0
    %4200 = vst [vmem:[#allocation14] sm:$0xff] %v4195
    // Predicated region
    $region58: #{tpu_custom_call.1} parent=1 // pred_check
      _
    $region59: #{tpu_custom_call.1} parent=1 // pred_check_branch
      %4202 = sbr.rel (0) target = $region61
    $region60: #{tpu_custom_call.1} parent=1 // pred_region
      %s4204 = ssub.s32 128, 128
      %4205 = vsyncadd [#allocation4], %s4204
      %s4207 = sshll.u32 [#allocation14], 4
      %s4208 = int_to_ptr.vmem [resolvable:$true] %s4207
      %4210 = dma.vmem_to_hbm [thread:$0]  %s4208, 128, %s7, [#allocation4]
    $region61: #{tpu_custom_call.1} parent=1 // pred_fallthru
      _
    // Predicated region
    $region62: #{tpu_custom_call.1} parent=1 // pred_check
      _
    $region63: #{tpu_custom_call.1} parent=1 // pred_check_branch
      %4212 = sbr.rel (0) target = $region65
    $region64: #{tpu_custom_call.1} parent=1 // pred_region
      %4213 = dma.done [#allocation4], 128
    $region65: #{tpu_custom_call.1} parent=1 // pred_fallthru
      _
    %4214 = vsyncpa [#allocation3], 1
    %4215 = vsyncpa [#allocation6], 1
    %4216 = vsyncpa [#allocation9], 1
    %4217 = vsyncpa [#allocation12], 1
    %4218 = vsyncpa [#allocation4], 1

</llo_original>
